<compile_context>
chip_gen: v7x
topology: tpu7x:2x2x1
jax: 0.10.0
libtpu: 0.0.40
codegen_flags: <defaults>
</compile_context>

<pallas_src>
import functools

import jax
import jax.numpy as jnp
from jax import lax
from jax.experimental import pallas as pl
from jax.experimental.pallas import tpu as pltpu

EPS = 1e-5                      # torch.nn.BatchNorm2d default eps
MIN_PALLAS_ROWS = 128           # below this, plain XLA beats launch + pad/transpose glue
VMEM_LIMIT = 32 * 1024 * 1024


def _round_up(a, b):
    return (a + b - 1) // b * b


# -----------------------------------------------------------------------------
# Fused 1x1 conv + train-mode BatchNorm2d: single whole-array kernel.
#   x_ref  : (Cin,  Rp)  activations, rows on the lane axis (zero padded)
#   wt_ref : (Ctot, Cin) conv weight, pre-transposed
#   g_ref  : (Ctot, 1)   BN gamma
#   b_ref  : (Ctot, 1)   BN beta
#   o_ref  : (Ctot, Rp)  normalized output (lane dense)
# -----------------------------------------------------------------------------
def _fused_conv_bn_kernel(x_ref, wt_ref, g_ref, b_ref, o_ref, *, inv_rows):
    # The conv matmul is also the stats pass: batch stats of y are computed
    # directly from the conv output (zero-padded columns contribute 0).
    y = jnp.dot(wt_ref[...], x_ref[...], preferred_element_type=jnp.float32)
    mean = jnp.sum(y, axis=1, keepdims=True) * inv_rows            # (Ctot, 1)
    ey2 = jnp.sum(y * y, axis=1, keepdims=True) * inv_rows         # (Ctot, 1)
    var = jnp.maximum(ey2 - mean * mean, 0.0)                      # biased (train-mode BN)
    scale = g_ref[...] * lax.rsqrt(var + EPS)                      # EUP rsqrt
    shift = b_ref[...] - mean * scale
    o_ref[...] = y * scale + shift


def _fused_conv_bn_call(xt, wt, gamma2, beta2, rows):
    cin, rp = xt.shape
    ctot = wt.shape[0]
    kernel = functools.partial(_fused_conv_bn_kernel, inv_rows=1.0 / float(rows))
    return pl.pallas_call(
        kernel,
        out_shape=jax.ShapeDtypeStruct((ctot, rp), jnp.float32),
        grid=(1,),
        in_specs=[pl.BlockSpec((cin, rp), lambda i: (0, 0)),
                  pl.BlockSpec((ctot, cin), lambda i: (0, 0)),
                  pl.BlockSpec((ctot, 1), lambda i: (0, 0)),
                  pl.BlockSpec((ctot, 1), lambda i: (0, 0))],
        out_specs=pl.BlockSpec((ctot, rp), lambda i: (0, 0)),
        compiler_params=pltpu.CompilerParams(
            dimension_semantics=("arbitrary",),
            vmem_limit_bytes=VMEM_LIMIT),
    )(xt, wt, gamma2, beta2)


def conv1x1_bn(f_nhwc, w, gamma, beta):
    """Fused Conv2d(1x1, bias dropped) + train-mode BatchNorm2d.

    Input is NHWC, output is channel-major (Ctot, B, H, W) so the downstream
    slice / nearest-resize / K-way sum stay channel-major until a single final
    NCHW transpose per module result.  The conv bias is omitted because it is
    exactly cancelled by the BN batch-mean subtraction (forward is unchanged).
    """
    b, h, wd, cin = f_nhwc.shape
    ctot = w.shape[1]
    r = b * h * wd

    if r < MIN_PALLAS_ROWS:
        # Tiny feature (e.g. the 1x1 global-pool feature): plain XLA path.
        x = f_nhwc.reshape(r, cin)
        y = x @ w                                                  # (R, Ctot)
        mean = jnp.mean(y, axis=0)
        var = jnp.maximum(jnp.mean(y * y, axis=0) - mean * mean, 0.0)
        out = (y - mean) * (gamma * lax.rsqrt(var + EPS)) + beta
        return jnp.transpose(out.reshape(b, h, wd, ctot), (3, 0, 1, 2))

    xt = f_nhwc.reshape(r, cin).T                                  # lane-dense (Cin, rows)
    rp = _round_up(r, 128)
    if rp != r:
        xt = jnp.pad(xt, ((0, 0), (0, rp - r)))                    # zeros: no effect on sums
    y = _fused_conv_bn_call(xt, w.T, gamma.reshape(ctot, 1), beta.reshape(ctot, 1), r)
    return y[:, :r].reshape(ctot, b, h, wd)


# -----------------------------------------------------------------------------
# F.interpolate(mode='nearest') on channel-major (C, B, H, W) tensors.  Only
# identity / integer upsample / 1x1 broadcast occur; general rule as fallback.
# -----------------------------------------------------------------------------
def nearest_resize_cbhw(y, out_size):
    c, b, h, w = y.shape
    if h == out_size and w == out_size:
        return y
    if h == 1 and w == 1:
        return jnp.broadcast_to(y, (c, b, out_size, out_size))
    if out_size % h == 0 and out_size % w == 0:
        return jnp.repeat(jnp.repeat(y, out_size // h, axis=2), out_size // w, axis=3)
    idx_h = (jnp.arange(out_size) * h) // out_size                 # src = floor(dst*in/out)
    idx_w = (jnp.arange(out_size) * w) // out_size
    return y[:, :, idx_h][:, :, :, idx_w]


# -----------------------------------------------------------------------------
# Parameters: feature j is consumed by fusion modules 0..j; their independent
# 1x1 conv / BN params are concatenated along the output-channel axis.
# -----------------------------------------------------------------------------
def init_params(key, in_channels, out_channels):
    coffs = [0]
    for c in out_channels:
        coffs.append(coffs[-1] + c)
    params = []
    for j, cin in enumerate(in_channels):
        ctot = coffs[j + 1]
        key, kw = jax.random.split(key)
        bound = (3.0 / cin) ** 0.5                  # kaiming_uniform_(a=1): sqrt(3/fan_in)
        w = jax.random.uniform(kw, (cin, ctot), jnp.float32, -bound, bound)
        params.append(dict(w=w,
                           gamma=jnp.ones((ctot,), jnp.float32),
                           beta=jnp.zeros((ctot,), jnp.float32)))
    return params, coffs, key


def rm_forward(params, x_nchw, student_fn, coffs, out_shapes):
    feats_nhwc, preds = student_fn(x_nchw)
    n = len(feats_nhwc)
    # One fused conv+BN kernel per feature (serves every module that uses it).
    per_feature = [conv1x1_bn(f, p["w"], p["gamma"], p["beta"])
                   for f, p in zip(feats_nhwc, params)]            # (Ctot_j, B, H_j, W_j)
    results = []
    for i in range(n):
        s = out_shapes[i]
        lo, hi = coffs[i], coffs[i + 1]
        acc = None
        for j in range(i, n):
            piece = nearest_resize_cbhw(per_feature[j][lo:hi], s)
            acc = piece if acc is None else acc + piece            # XLA fuses the K-way sum
        results.append(jnp.transpose(acc, (1, 0, 2, 3)))           # final NCHW result
    return results, preds


class RMFrameworkPallas:
    def __init__(self, student_fn, key):
        in_channels = [16, 16, 32, 64, 64]
        out_channels = [16, 16, 32, 64, 64]
        out_shapes = [32, 32, 16, 8, 1]
        self.params, coffs, _ = init_params(key, in_channels, out_channels)
        self._forward = jax.jit(
            lambda params, x: rm_forward(params, x, student_fn, coffs, out_shapes))

    def __call__(self, x_nchw):
        return self._forward(self.params, x_nchw)


# -----------------------------------------------------------------------------
# Synthetic student (external dependency of RMFramework): plain-JAX glue that
# produces CIFAR-ResNet-style features with channels [16,16,32,64,64] at
# spatial sizes [32,32,16,8,1] plus class logits.  Features are returned NHWC
# so no NCHW round trip is needed on the kernel input path.
# TODO(synk): the real student architecture is not defined in the module; this is a stand-in.
# -----------------------------------------------------------------------------
def make_student(key):
    ks = jax.random.split(key, 5)
    w0 = jax.random.normal(ks[0], (3, 16), jnp.float32) * 0.1
    w1 = jax.random.normal(ks[1], (16, 16), jnp.float32) * 0.1
    w2 = jax.random.normal(ks[2], (16, 32), jnp.float32) * 0.1
    w3 = jax.random.normal(ks[3], (32, 64), jnp.float32) * 0.1
    wfc = jax.random.normal(ks[4], (64, 10), jnp.float32) * 0.1

    def avgpool2(x):  # NHWC 2x2 average pool
        b, h, w, c = x.shape
        return x.reshape(b, h // 2, 2, w // 2, 2, c).mean(axis=(2, 4))

    def student(x_nchw):
        x = jnp.transpose(x_nchw, (0, 2, 3, 1))                              # NHWC
        f0 = jax.nn.relu(jnp.einsum("bhwc,cd->bhwd", x, w0))                 # (B,32,32,16)
        f1 = jax.nn.relu(jnp.einsum("bhwc,cd->bhwd", f0, w1))                # (B,32,32,16)
        f2 = jax.nn.relu(jnp.einsum("bhwc,cd->bhwd", avgpool2(f1), w2))      # (B,16,16,32)
        f3 = jax.nn.relu(jnp.einsum("bhwc,cd->bhwd", avgpool2(f2), w3))      # (B,8,8,64)
        f4 = f3.mean(axis=(1, 2), keepdims=True)                             # (B,1,1,64)
        preds = f4.reshape(f4.shape[0], 64) @ wfc                            # (B,10)
        return [f0, f1, f2, f3, f4], preds                                   # NHWC feats

    return student


if __name__ == "__main__":
    key = jax.random.PRNGKey(0)
    k_x, k_student, k_params = jax.random.split(key, 3)

    x = jax.random.normal(k_x, (2, 3, 32, 32), jnp.float32)   # NCHW, CIFAR-like input

    student = make_student(k_student)
    model = RMFrameworkPallas(student, k_params)

    results, preds = model(x)
    jax.block_until_ready((results, preds))

    expected = [(2, 16, 32, 32), (2, 16, 32, 32), (2, 32, 16, 16), (2, 64, 8, 8), (2, 64, 1, 1)]
    assert [tuple(r.shape) for r in results] == expected, [r.shape for r in results]
    assert preds.shape == (2, 10)

    print("KERNEL_OK")
</pallas_src>

<mosaic_0001>
module attributes {stable_mosaic.version = 11 : i64} {
  func.func @_fused_conv_bn_kernel(%arg0: i32, %arg1: memref<64x128xf32, #tpu.memory_space<vmem>>, %arg2: memref<128x64xf32, #tpu.memory_space<vmem>>, %arg3: memref<128x1xf32, #tpu.memory_space<vmem>>, %arg4: memref<128x1xf32, #tpu.memory_space<vmem>>, %arg5: memref<128x128xf32, #tpu.memory_space<vmem>>) attributes {dimension_semantics = [#tpu.dimension_semantics<arbitrary>], iteration_bounds = array<i64: 1>, scalar_prefetch = 0 : i64, scratch_operands = 0 : i64, tpu.core_type = #tpu.core_type<tc>, window_params = [{pipeline_mode = #tpu.pipeline_mode<synchronous>, transform_indices = @transform_0, window_bounds = array<i64: 64, 128>}, {pipeline_mode = #tpu.pipeline_mode<synchronous>, transform_indices = @transform_1, window_bounds = array<i64: 128, 64>}, {pipeline_mode = #tpu.pipeline_mode<synchronous>, transform_indices = @transform_2, window_bounds = array<i64: 128, 1>}, {pipeline_mode = #tpu.pipeline_mode<synchronous>, transform_indices = @transform_3, window_bounds = array<i64: 128, 1>}, {pipeline_mode = #tpu.pipeline_mode<synchronous>, transform_indices = @transform_4, window_bounds = array<i64: 128, 128>}]} {
    %c0 = arith.constant 0 : index
    %c0_0 = arith.constant 0 : index
    %0 = vector.load %arg2[%c0, %c0_0] : memref<128x64xf32, #tpu.memory_space<vmem>>, vector<128x64xf32>
    %c0_1 = arith.constant 0 : index
    %c0_2 = arith.constant 0 : index
    %1 = vector.load %arg1[%c0_1, %c0_2] : memref<64x128xf32, #tpu.memory_space<vmem>>, vector<64x128xf32>
    %cst = arith.constant dense<0.000000e+00> : vector<128x128xf32>
    %2 = tpu.matmul %0, %1, %cst {dimension_numbers = #tpu.dot_dimension_numbers<[1], [0], [0], [1], [0, 0, 1, 1], [], []>} : vector<128x64xf32>, vector<64x128xf32>, vector<128x128xf32> -> vector<128x128xf32>
    %cst_3 = arith.constant dense<0.000000e+00> : vector<128xf32>
    %3 = vector.multi_reduction <add>, %2, %cst_3 [1] : vector<128x128xf32> to vector<128xf32>
    %4 = vector.shape_cast %3 : vector<128xf32> to vector<128x1xf32>
    %cst_4 = arith.constant 7.812500e-03 : f32
    %5 = vector.broadcast %cst_4 : f32 to vector<128x1xf32>
    %6 = arith.mulf %4, %5 : vector<128x1xf32>
    %7 = arith.mulf %2, %2 : vector<128x128xf32>
    %cst_5 = arith.constant dense<0.000000e+00> : vector<128xf32>
    %8 = vector.multi_reduction <add>, %7, %cst_5 [1] : vector<128x128xf32> to vector<128xf32>
    %9 = vector.shape_cast %8 : vector<128xf32> to vector<128x1xf32>
    %cst_6 = arith.constant 7.812500e-03 : f32
    %10 = vector.broadcast %cst_6 : f32 to vector<128x1xf32>
    %11 = arith.mulf %9, %10 : vector<128x1xf32>
    %12 = arith.mulf %6, %6 : vector<128x1xf32>
    %13 = arith.subf %11, %12 : vector<128x1xf32>
    %cst_7 = arith.constant 0.000000e+00 : f32
    %14 = vector.broadcast %cst_7 : f32 to vector<128x1xf32>
    %15 = arith.maximumf %13, %14 : vector<128x1xf32>
    %c0_8 = arith.constant 0 : index
    %c0_9 = arith.constant 0 : index
    %16 = vector.load %arg3[%c0_8, %c0_9] : memref<128x1xf32, #tpu.memory_space<vmem>>, vector<128x1xf32>
    %cst_10 = arith.constant 9.99999974E-6 : f32
    %17 = vector.broadcast %cst_10 : f32 to vector<128x1xf32>
    %18 = arith.addf %15, %17 : vector<128x1xf32>
    %19 = math.rsqrt %18 : vector<128x1xf32>
    %20 = arith.mulf %16, %19 : vector<128x1xf32>
    %c0_11 = arith.constant 0 : index
    %c0_12 = arith.constant 0 : index
    %21 = vector.load %arg4[%c0_11, %c0_12] : memref<128x1xf32, #tpu.memory_space<vmem>>, vector<128x1xf32>
    %22 = arith.mulf %6, %20 : vector<128x1xf32>
    %23 = arith.subf %21, %22 : vector<128x1xf32>
    %24 = vector.broadcast %20 : vector<128x1xf32> to vector<128x128xf32>
    %25 = arith.mulf %2, %24 : vector<128x128xf32>
    %26 = vector.broadcast %23 : vector<128x1xf32> to vector<128x128xf32>
    %27 = arith.addf %25, %26 : vector<128x128xf32>
    %c0_13 = arith.constant 0 : index
    %c0_14 = arith.constant 0 : index
    %28 = vector.load %arg5[%c0_13, %c0_14] : memref<128x128xf32, #tpu.memory_space<vmem>>, vector<128x128xf32>
    tpu.vector_store %arg5[%c0_13, %c0_14], %27 {strides = array<i32>} : memref<128x128xf32, #tpu.memory_space<vmem>>, vector<128x128xf32>,
    return
  }
  func.func @transform_0(%arg0: i32) -> (i32, i32) {
    %c0_i32 = arith.constant 0 : i32
    %c0_i32_0 = arith.constant 0 : i32
    %c0_i32_1 = arith.constant 0 : i32
    return %c0_i32, %c0_i32_0 : i32, i32
  }
  func.func @transform_1(%arg0: i32) -> (i32, i32) {
    %c0_i32 = arith.constant 0 : i32
    %c0_i32_0 = arith.constant 0 : i32
    %c0_i32_1 = arith.constant 0 : i32
    return %c0_i32, %c0_i32_0 : i32, i32
  }
  func.func @transform_2(%arg0: i32) -> (i32, i32) {
    %c0_i32 = arith.constant 0 : i32
    %c0_i32_0 = arith.constant 0 : i32
    %c0_i32_1 = arith.constant 0 : i32
    return %c0_i32, %c0_i32_0 : i32, i32
  }
  func.func @transform_3(%arg0: i32) -> (i32, i32) {
    %c0_i32 = arith.constant 0 : i32
    %c0_i32_0 = arith.constant 0 : i32
    %c0_i32_1 = arith.constant 0 : i32
    return %c0_i32, %c0_i32_0 : i32, i32
  }
  func.func @transform_4(%arg0: i32) -> (i32, i32) {
    %c0_i32 = arith.constant 0 : i32
    %c0_i32_0 = arith.constant 0 : i32
    %c0_i32_1 = arith.constant 0 : i32
    return %c0_i32, %c0_i32_0 : i32, i32
  }
}

module attributes {stable_mosaic.version = 11 : i64} {
  func.func @_fused_conv_bn_kernel(%arg0: i32, %arg1: memref<16x2048xf32, #tpu.memory_space<vmem>>, %arg2: memref<32x16xf32, #tpu.memory_space<vmem>>, %arg3: memref<32x1xf32, #tpu.memory_space<vmem>>, %arg4: memref<32x1xf32, #tpu.memory_space<vmem>>, %arg5: memref<32x2048xf32, #tpu.memory_space<vmem>>) attributes {dimension_semantics = [#tpu.dimension_semantics<arbitrary>], iteration_bounds = array<i64: 1>, scalar_prefetch = 0 : i64, scratch_operands = 0 : i64, tpu.core_type = #tpu.core_type<tc>, window_params = [{pipeline_mode = #tpu.pipeline_mode<synchronous>, transform_indices = @transform_0, window_bounds = array<i64: 16, 2048>}, {pipeline_mode = #tpu.pipeline_mode<synchronous>, transform_indices = @transform_1, window_bounds = array<i64: 32, 16>}, {pipeline_mode = #tpu.pipeline_mode<synchronous>, transform_indices = @transform_2, window_bounds = array<i64: 32, 1>}, {pipeline_mode = #tpu.pipeline_mode<synchronous>, transform_indices = @transform_3, window_bounds = array<i64: 32, 1>}, {pipeline_mode = #tpu.pipeline_mode<synchronous>, transform_indices = @transform_4, window_bounds = array<i64: 32, 2048>}]} {
    %c0 = arith.constant 0 : index
    %c0_0 = arith.constant 0 : index
    %0 = vector.load %arg2[%c0, %c0_0] : memref<32x16xf32, #tpu.memory_space<vmem>>, vector<32x16xf32>
    %c0_1 = arith.constant 0 : index
    %c0_2 = arith.constant 0 : index
    %1 = vector.load %arg1[%c0_1, %c0_2] : memref<16x2048xf32, #tpu.memory_space<vmem>>, vector<16x2048xf32>
    %cst = arith.constant dense<0.000000e+00> : vector<32x2048xf32>
    %2 = tpu.matmul %0, %1, %cst {dimension_numbers = #tpu.dot_dimension_numbers<[1], [0], [0], [1], [0, 0, 1, 1], [], []>} : vector<32x16xf32>, vector<16x2048xf32>, vector<32x2048xf32> -> vector<32x2048xf32>
    %cst_3 = arith.constant dense<0.000000e+00> : vector<32xf32>
    %3 = vector.multi_reduction <add>, %2, %cst_3 [1] : vector<32x2048xf32> to vector<32xf32>
    %4 = vector.shape_cast %3 : vector<32xf32> to vector<32x1xf32>
    %cst_4 = arith.constant 4.8828125E-4 : f32
    %5 = vector.broadcast %cst_4 : f32 to vector<32x1xf32>
    %6 = arith.mulf %4, %5 : vector<32x1xf32>
    %7 = arith.mulf %2, %2 : vector<32x2048xf32>
    %cst_5 = arith.constant dense<0.000000e+00> : vector<32xf32>
    %8 = vector.multi_reduction <add>, %7, %cst_5 [1] : vector<32x2048xf32> to vector<32xf32>
    %9 = vector.shape_cast %8 : vector<32xf32> to vector<32x1xf32>
    %cst_6 = arith.constant 4.8828125E-4 : f32
    %10 = vector.broadcast %cst_6 : f32 to vector<32x1xf32>
    %11 = arith.mulf %9, %10 : vector<32x1xf32>
    %12 = arith.mulf %6, %6 : vector<32x1xf32>
    %13 = arith.subf %11, %12 : vector<32x1xf32>
    %cst_7 = arith.constant 0.000000e+00 : f32
    %14 = vector.broadcast %cst_7 : f32 to vector<32x1xf32>
    %15 = arith.maximumf %13, %14 : vector<32x1xf32>
    %c0_8 = arith.constant 0 : index
    %c0_9 = arith.constant 0 : index
    %16 = vector.load %arg3[%c0_8, %c0_9] : memref<32x1xf32, #tpu.memory_space<vmem>>, vector<32x1xf32>
    %cst_10 = arith.constant 9.99999974E-6 : f32
    %17 = vector.broadcast %cst_10 : f32 to vector<32x1xf32>
    %18 = arith.addf %15, %17 : vector<32x1xf32>
    %19 = math.rsqrt %18 : vector<32x1xf32>
    %20 = arith.mulf %16, %19 : vector<32x1xf32>
    %c0_11 = arith.constant 0 : index
    %c0_12 = arith.constant 0 : index
    %21 = vector.load %arg4[%c0_11, %c0_12] : memref<32x1xf32, #tpu.memory_space<vmem>>, vector<32x1xf32>
    %22 = arith.mulf %6, %20 : vector<32x1xf32>
    %23 = arith.subf %21, %22 : vector<32x1xf32>
    %24 = vector.broadcast %20 : vector<32x1xf32> to vector<32x2048xf32>
    %25 = arith.mulf %2, %24 : vector<32x2048xf32>
    %26 = vector.broadcast %23 : vector<32x1xf32> to vector<32x2048xf32>
    %27 = arith.addf %25, %26 : vector<32x2048xf32>
    %c0_13 = arith.constant 0 : index
    %c0_14 = arith.constant 0 : index
    %28 = vector.load %arg5[%c0_13, %c0_14] : memref<32x2048xf32, #tpu.memory_space<vmem>>, vector<32x2048xf32>
    tpu.vector_store %arg5[%c0_13, %c0_14], %27 {strides = array<i32>} : memref<32x2048xf32, #tpu.memory_space<vmem>>, vector<32x2048xf32>,
    return
  }
  func.func @transform_0(%arg0: i32) -> (i32, i32) {
    %c0_i32 = arith.constant 0 : i32
    %c0_i32_0 = arith.constant 0 : i32
    %c0_i32_1 = arith.constant 0 : i32
    return %c0_i32, %c0_i32_0 : i32, i32
  }
  func.func @transform_1(%arg0: i32) -> (i32, i32) {
    %c0_i32 = arith.constant 0 : i32
    %c0_i32_0 = arith.constant 0 : i32
    %c0_i32_1 = arith.constant 0 : i32
    return %c0_i32, %c0_i32_0 : i32, i32
  }
  func.func @transform_2(%arg0: i32) -> (i32, i32) {
    %c0_i32 = arith.constant 0 : i32
    %c0_i32_0 = arith.constant 0 : i32
    %c0_i32_1 = arith.constant 0 : i32
    return %c0_i32, %c0_i32_0 : i32, i32
  }
  func.func @transform_3(%arg0: i32) -> (i32, i32) {
    %c0_i32 = arith.constant 0 : i32
    %c0_i32_0 = arith.constant 0 : i32
    %c0_i32_1 = arith.constant 0 : i32
    return %c0_i32, %c0_i32_0 : i32, i32
  }
  func.func @transform_4(%arg0: i32) -> (i32, i32) {
    %c0_i32 = arith.constant 0 : i32
    %c0_i32_0 = arith.constant 0 : i32
    %c0_i32_1 = arith.constant 0 : i32
    return %c0_i32, %c0_i32_0 : i32, i32
  }
}

module attributes {stable_mosaic.version = 11 : i64} {
  func.func @_fused_conv_bn_kernel(%arg0: i32, %arg1: memref<32x512xf32, #tpu.memory_space<vmem>>, %arg2: memref<64x32xf32, #tpu.memory_space<vmem>>, %arg3: memref<64x1xf32, #tpu.memory_space<vmem>>, %arg4: memref<64x1xf32, #tpu.memory_space<vmem>>, %arg5: memref<64x512xf32, #tpu.memory_space<vmem>>) attributes {dimension_semantics = [#tpu.dimension_semantics<arbitrary>], iteration_bounds = array<i64: 1>, scalar_prefetch = 0 : i64, scratch_operands = 0 : i64, tpu.core_type = #tpu.core_type<tc>, window_params = [{pipeline_mode = #tpu.pipeline_mode<synchronous>, transform_indices = @transform_0, window_bounds = array<i64: 32, 512>}, {pipeline_mode = #tpu.pipeline_mode<synchronous>, transform_indices = @transform_1, window_bounds = array<i64: 64, 32>}, {pipeline_mode = #tpu.pipeline_mode<synchronous>, transform_indices = @transform_2, window_bounds = array<i64: 64, 1>}, {pipeline_mode = #tpu.pipeline_mode<synchronous>, transform_indices = @transform_3, window_bounds = array<i64: 64, 1>}, {pipeline_mode = #tpu.pipeline_mode<synchronous>, transform_indices = @transform_4, window_bounds = array<i64: 64, 512>}]} {
    %c0 = arith.constant 0 : index
    %c0_0 = arith.constant 0 : index
    %0 = vector.load %arg2[%c0, %c0_0] : memref<64x32xf32, #tpu.memory_space<vmem>>, vector<64x32xf32>
    %c0_1 = arith.constant 0 : index
    %c0_2 = arith.constant 0 : index
    %1 = vector.load %arg1[%c0_1, %c0_2] : memref<32x512xf32, #tpu.memory_space<vmem>>, vector<32x512xf32>
    %cst = arith.constant dense<0.000000e+00> : vector<64x512xf32>
    %2 = tpu.matmul %0, %1, %cst {dimension_numbers = #tpu.dot_dimension_numbers<[1], [0], [0], [1], [0, 0, 1, 1], [], []>} : vector<64x32xf32>, vector<32x512xf32>, vector<64x512xf32> -> vector<64x512xf32>
    %cst_3 = arith.constant dense<0.000000e+00> : vector<64xf32>
    %3 = vector.multi_reduction <add>, %2, %cst_3 [1] : vector<64x512xf32> to vector<64xf32>
    %4 = vector.shape_cast %3 : vector<64xf32> to vector<64x1xf32>
    %cst_4 = arith.constant 0.001953125 : f32
    %5 = vector.broadcast %cst_4 : f32 to vector<64x1xf32>
    %6 = arith.mulf %4, %5 : vector<64x1xf32>
    %7 = arith.mulf %2, %2 : vector<64x512xf32>
    %cst_5 = arith.constant dense<0.000000e+00> : vector<64xf32>
    %8 = vector.multi_reduction <add>, %7, %cst_5 [1] : vector<64x512xf32> to vector<64xf32>
    %9 = vector.shape_cast %8 : vector<64xf32> to vector<64x1xf32>
    %cst_6 = arith.constant 0.001953125 : f32
    %10 = vector.broadcast %cst_6 : f32 to vector<64x1xf32>
    %11 = arith.mulf %9, %10 : vector<64x1xf32>
    %12 = arith.mulf %6, %6 : vector<64x1xf32>
    %13 = arith.subf %11, %12 : vector<64x1xf32>
    %cst_7 = arith.constant 0.000000e+00 : f32
    %14 = vector.broadcast %cst_7 : f32 to vector<64x1xf32>
    %15 = arith.maximumf %13, %14 : vector<64x1xf32>
    %c0_8 = arith.constant 0 : index
    %c0_9 = arith.constant 0 : index
    %16 = vector.load %arg3[%c0_8, %c0_9] : memref<64x1xf32, #tpu.memory_space<vmem>>, vector<64x1xf32>
    %cst_10 = arith.constant 9.99999974E-6 : f32
    %17 = vector.broadcast %cst_10 : f32 to vector<64x1xf32>
    %18 = arith.addf %15, %17 : vector<64x1xf32>
    %19 = math.rsqrt %18 : vector<64x1xf32>
    %20 = arith.mulf %16, %19 : vector<64x1xf32>
    %c0_11 = arith.constant 0 : index
    %c0_12 = arith.constant 0 : index
    %21 = vector.load %arg4[%c0_11, %c0_12] : memref<64x1xf32, #tpu.memory_space<vmem>>, vector<64x1xf32>
    %22 = arith.mulf %6, %20 : vector<64x1xf32>
    %23 = arith.subf %21, %22 : vector<64x1xf32>
    %24 = vector.broadcast %20 : vector<64x1xf32> to vector<64x512xf32>
    %25 = arith.mulf %2, %24 : vector<64x512xf32>
    %26 = vector.broadcast %23 : vector<64x1xf32> to vector<64x512xf32>
    %27 = arith.addf %25, %26 : vector<64x512xf32>
    %c0_13 = arith.constant 0 : index
    %c0_14 = arith.constant 0 : index
    %28 = vector.load %arg5[%c0_13, %c0_14] : memref<64x512xf32, #tpu.memory_space<vmem>>, vector<64x512xf32>
    tpu.vector_store %arg5[%c0_13, %c0_14], %27 {strides = array<i32>} : memref<64x512xf32, #tpu.memory_space<vmem>>, vector<64x512xf32>,
    return
  }
  func.func @transform_0(%arg0: i32) -> (i32, i32) {
    %c0_i32 = arith.constant 0 : i32
    %c0_i32_0 = arith.constant 0 : i32
    %c0_i32_1 = arith.constant 0 : i32
    return %c0_i32, %c0_i32_0 : i32, i32
  }
  func.func @transform_1(%arg0: i32) -> (i32, i32) {
    %c0_i32 = arith.constant 0 : i32
    %c0_i32_0 = arith.constant 0 : i32
    %c0_i32_1 = arith.constant 0 : i32
    return %c0_i32, %c0_i32_0 : i32, i32
  }
  func.func @transform_2(%arg0: i32) -> (i32, i32) {
    %c0_i32 = arith.constant 0 : i32
    %c0_i32_0 = arith.constant 0 : i32
    %c0_i32_1 = arith.constant 0 : i32
    return %c0_i32, %c0_i32_0 : i32, i32
  }
  func.func @transform_3(%arg0: i32) -> (i32, i32) {
    %c0_i32 = arith.constant 0 : i32
    %c0_i32_0 = arith.constant 0 : i32
    %c0_i32_1 = arith.constant 0 : i32
    return %c0_i32, %c0_i32_0 : i32, i32
  }
  func.func @transform_4(%arg0: i32) -> (i32, i32) {
    %c0_i32 = arith.constant 0 : i32
    %c0_i32_0 = arith.constant 0 : i32
    %c0_i32_1 = arith.constant 0 : i32
    return %c0_i32, %c0_i32_0 : i32, i32
  }
}

module attributes {stable_mosaic.version = 11 : i64} {
  func.func @_fused_conv_bn_kernel(%arg0: i32, %arg1: memref<16x2048xf32, #tpu.memory_space<vmem>>, %arg2: memref<16x16xf32, #tpu.memory_space<vmem>>, %arg3: memref<16x1xf32, #tpu.memory_space<vmem>>, %arg4: memref<16x1xf32, #tpu.memory_space<vmem>>, %arg5: memref<16x2048xf32, #tpu.memory_space<vmem>>) attributes {dimension_semantics = [#tpu.dimension_semantics<arbitrary>], iteration_bounds = array<i64: 1>, scalar_prefetch = 0 : i64, scratch_operands = 0 : i64, tpu.core_type = #tpu.core_type<tc>, window_params = [{pipeline_mode = #tpu.pipeline_mode<synchronous>, transform_indices = @transform_0, window_bounds = array<i64: 16, 2048>}, {pipeline_mode = #tpu.pipeline_mode<synchronous>, transform_indices = @transform_1, window_bounds = array<i64: 16, 16>}, {pipeline_mode = #tpu.pipeline_mode<synchronous>, transform_indices = @transform_2, window_bounds = array<i64: 16, 1>}, {pipeline_mode = #tpu.pipeline_mode<synchronous>, transform_indices = @transform_3, window_bounds = array<i64: 16, 1>}, {pipeline_mode = #tpu.pipeline_mode<synchronous>, transform_indices = @transform_4, window_bounds = array<i64: 16, 2048>}]} {
    %c0 = arith.constant 0 : index
    %c0_0 = arith.constant 0 : index
    %0 = vector.load %arg2[%c0, %c0_0] : memref<16x16xf32, #tpu.memory_space<vmem>>, vector<16x16xf32>
    %c0_1 = arith.constant 0 : index
    %c0_2 = arith.constant 0 : index
    %1 = vector.load %arg1[%c0_1, %c0_2] : memref<16x2048xf32, #tpu.memory_space<vmem>>, vector<16x2048xf32>
    %cst = arith.constant dense<0.000000e+00> : vector<16x2048xf32>
    %2 = tpu.matmul %0, %1, %cst {dimension_numbers = #tpu.dot_dimension_numbers<[1], [0], [0], [1], [0, 0, 1, 1], [], []>} : vector<16x16xf32>, vector<16x2048xf32>, vector<16x2048xf32> -> vector<16x2048xf32>
    %cst_3 = arith.constant dense<0.000000e+00> : vector<16xf32>
    %3 = vector.multi_reduction <add>, %2, %cst_3 [1] : vector<16x2048xf32> to vector<16xf32>
    %4 = vector.shape_cast %3 : vector<16xf32> to vector<16x1xf32>
    %cst_4 = arith.constant 4.8828125E-4 : f32
    %5 = vector.broadcast %cst_4 : f32 to vector<16x1xf32>
    %6 = arith.mulf %4, %5 : vector<16x1xf32>
    %7 = arith.mulf %2, %2 : vector<16x2048xf32>
    %cst_5 = arith.constant dense<0.000000e+00> : vector<16xf32>
    %8 = vector.multi_reduction <add>, %7, %cst_5 [1] : vector<16x2048xf32> to vector<16xf32>
    %9 = vector.shape_cast %8 : vector<16xf32> to vector<16x1xf32>
    %cst_6 = arith.constant 4.8828125E-4 : f32
    %10 = vector.broadcast %cst_6 : f32 to vector<16x1xf32>
    %11 = arith.mulf %9, %10 : vector<16x1xf32>
    %12 = arith.mulf %6, %6 : vector<16x1xf32>
    %13 = arith.subf %11, %12 : vector<16x1xf32>
    %cst_7 = arith.constant 0.000000e+00 : f32
    %14 = vector.broadcast %cst_7 : f32 to vector<16x1xf32>
    %15 = arith.maximumf %13, %14 : vector<16x1xf32>
    %c0_8 = arith.constant 0 : index
    %c0_9 = arith.constant 0 : index
    %16 = vector.load %arg3[%c0_8, %c0_9] : memref<16x1xf32, #tpu.memory_space<vmem>>, vector<16x1xf32>
    %cst_10 = arith.constant 9.99999974E-6 : f32
    %17 = vector.broadcast %cst_10 : f32 to vector<16x1xf32>
    %18 = arith.addf %15, %17 : vector<16x1xf32>
    %19 = math.rsqrt %18 : vector<16x1xf32>
    %20 = arith.mulf %16, %19 : vector<16x1xf32>
    %c0_11 = arith.constant 0 : index
    %c0_12 = arith.constant 0 : index
    %21 = vector.load %arg4[%c0_11, %c0_12] : memref<16x1xf32, #tpu.memory_space<vmem>>, vector<16x1xf32>
    %22 = arith.mulf %6, %20 : vector<16x1xf32>
    %23 = arith.subf %21, %22 : vector<16x1xf32>
    %24 = vector.broadcast %20 : vector<16x1xf32> to vector<16x2048xf32>
    %25 = arith.mulf %2, %24 : vector<16x2048xf32>
    %26 = vector.broadcast %23 : vector<16x1xf32> to vector<16x2048xf32>
    %27 = arith.addf %25, %26 : vector<16x2048xf32>
    %c0_13 = arith.constant 0 : index
    %c0_14 = arith.constant 0 : index
    %28 = vector.load %arg5[%c0_13, %c0_14] : memref<16x2048xf32, #tpu.memory_space<vmem>>, vector<16x2048xf32>
    tpu.vector_store %arg5[%c0_13, %c0_14], %27 {strides = array<i32>} : memref<16x2048xf32, #tpu.memory_space<vmem>>, vector<16x2048xf32>,
    return
  }
  func.func @transform_0(%arg0: i32) -> (i32, i32) {
    %c0_i32 = arith.constant 0 : i32
    %c0_i32_0 = arith.constant 0 : i32
    %c0_i32_1 = arith.constant 0 : i32
    return %c0_i32, %c0_i32_0 : i32, i32
  }
  func.func @transform_1(%arg0: i32) -> (i32, i32) {
    %c0_i32 = arith.constant 0 : i32
    %c0_i32_0 = arith.constant 0 : i32
    %c0_i32_1 = arith.constant 0 : i32
    return %c0_i32, %c0_i32_0 : i32, i32
  }
  func.func @transform_2(%arg0: i32) -> (i32, i32) {
    %c0_i32 = arith.constant 0 : i32
    %c0_i32_0 = arith.constant 0 : i32
    %c0_i32_1 = arith.constant 0 : i32
    return %c0_i32, %c0_i32_0 : i32, i32
  }
  func.func @transform_3(%arg0: i32) -> (i32, i32) {
    %c0_i32 = arith.constant 0 : i32
    %c0_i32_0 = arith.constant 0 : i32
    %c0_i32_1 = arith.constant 0 : i32
    return %c0_i32, %c0_i32_0 : i32, i32
  }
  func.func @transform_4(%arg0: i32) -> (i32, i32) {
    %c0_i32 = arith.constant 0 : i32
    %c0_i32_0 = arith.constant 0 : i32
    %c0_i32_1 = arith.constant 0 : i32
    return %c0_i32, %c0_i32_0 : i32, i32
  }
}

</mosaic_0001>

<llo_original>
// kernel: _lambda_.7
$region0: #{_lambda_.7}
  #allocation0 [shape = 'u32[]', space=smem, size = 0x4, offset = 0x4, fixed_abs, tag = 'smem constant byte address 0x4 - core index']
  #allocation1 [shape = 'u32[144,128]{1,0:T(1,128)}', space=vmem, size = 0x12000, scoped, tag = 'internal scratch']
  %s0 = inlined_call_operand.vmem [shape: f32[64,128], index: 0, kind: input, shape index: {}]
  %s1 = inlined_call_operand.vmem [shape: f32[128,64], index: 1, kind: input, shape index: {}]
  %s2 = inlined_call_operand.vmem [shape: f32[128,1], index: 2, kind: input, shape index: {}]
  %s3 = inlined_call_operand.vmem [shape: f32[128,1], index: 3, kind: input, shape index: {}]
  %s4 = inlined_call_operand.vmem [shape: f32[128,128], index: 4, kind: output, shape index: {}]
  %s5 = sld [smem:[#allocation0]]
  $region26: #{_lambda_.7} parent=0
    _
  %s7 = ssub.s32 1, %s5
  %s8 = scalar_select 0, %s7, %s5
  // Predicated region
  $region2: #{_lambda_.7} parent=0 // pred_check
    _
  $region3: #{_lambda_.7} parent=0 // pred_check_branch
    %10 = sbr.rel (0) target = $region5
  $region4: #{_lambda_.7} parent=0 // pred_region
    _
  $region5: #{_lambda_.7} parent=0 // pred_fallthru
    _
  // Predicated region
  $region6: #{_lambda_.7} parent=0 // pred_check
    _
  $region7: #{_lambda_.7} parent=0 // pred_check_branch
    %12 = sbr.rel (0) target = $region9
  $region8: #{_lambda_.7} parent=0 // pred_region
    _
  $region9: #{_lambda_.7} parent=0 // pred_fallthru
    _
  // Predicated region
  $region10: #{_lambda_.7} parent=0 // pred_check
    _
  $region11: #{_lambda_.7} parent=0 // pred_check_branch
    %14 = sbr.rel (0) target = $region13
  $region12: #{_lambda_.7} parent=0 // pred_region
    _
  $region13: #{_lambda_.7} parent=0 // pred_fallthru
    _
  // Predicated region
  $region14: #{_lambda_.7} parent=0 // pred_check
    _
  $region15: #{_lambda_.7} parent=0 // pred_check_branch
    %16 = sbr.rel (0) target = $region17
  $region16: #{_lambda_.7} parent=0 // pred_region
    _
  $region17: #{_lambda_.7} parent=0 // pred_fallthru
    _
  %v17 = vld [vmem:[%s1] sm:$0xff]
  %v18 = vld [vmem:[%s1 + $0x8] sm:$0xff]
  %v19 = vld [vmem:[%s1 + $0x10] sm:$0xff]
  %v20 = vld [vmem:[%s1 + $0x18] sm:$0xff]
  %v21 = vld [vmem:[%s1 + $0x20] sm:$0xff]
  %v22 = vld [vmem:[%s1 + $0x28] sm:$0xff]
  %v23 = vld [vmem:[%s1 + $0x30] sm:$0xff]
  %v24 = vld [vmem:[%s1 + $0x38] sm:$0xff]
  %v25 = vld [vmem:[%s1 + $0x40] sm:$0xff]
  %v26 = vld [vmem:[%s1 + $0x48] sm:$0xff]
  %v27 = vld [vmem:[%s1 + $0x50] sm:$0xff]
  %v28 = vld [vmem:[%s1 + $0x58] sm:$0xff]
  %v29 = vld [vmem:[%s1 + $0x60] sm:$0xff]
  %v30 = vld [vmem:[%s1 + $0x68] sm:$0xff]
  %v31 = vld [vmem:[%s1 + $0x70] sm:$0xff]
  %v32 = vld [vmem:[%s1 + $0x78] sm:$0xff]
  %v33 = vld [vmem:[%s0] sm:$0xff]
  %v34 = vld [vmem:[%s0 + $0x8] sm:$0xff]
  %v35 = vld [vmem:[%s0 + $0x10] sm:$0xff]
  %v36 = vld [vmem:[%s0 + $0x18] sm:$0xff]
  %v37 = vld [vmem:[%s0 + $0x20] sm:$0xff]
  %v38 = vld [vmem:[%s0 + $0x28] sm:$0xff]
  %v39 = vld [vmem:[%s0 + $0x30] sm:$0xff]
  %v40 = vld [vmem:[%s0 + $0x38] sm:$0xff]
  %vm41 = vcmask 523264
  %v43 = vsel %vm41, %v17, 0
  %v46 = vsel %vm41, %v18, 0
  %v49 = vsel %vm41, %v19, 0
  %v52 = vsel %vm41, %v20, 0
  %v55 = vsel %vm41, %v21, 0
  %v58 = vsel %vm41, %v22, 0
  %v61 = vsel %vm41, %v23, 0
  %v64 = vsel %vm41, %v24, 0
  %v67 = vsel %vm41, %v25, 0
  %v70 = vsel %vm41, %v26, 0
  %v73 = vsel %vm41, %v27, 0
  %v76 = vsel %vm41, %v28, 0
  %v79 = vsel %vm41, %v29, 0
  %v82 = vsel %vm41, %v30, 0
  %v85 = vsel %vm41, %v31, 0
  %v88 = vsel %vm41, %v32, 0
  %90 = vmatprep.subr.mxu0 0.0
  %91 = vmatpush1.msra.mxu0 %v33
  %92 = vmatprep.subr.mxu0 0.0
  %93 = vmatpush1.msra.mxu0 %v34
  %94 = vmatprep.subr.mxu0 0.0
  %95 = vmatpush1.msra.mxu0 %v35
  %96 = vmatprep.subr.mxu0 0.0
  %97 = vmatpush1.msra.mxu0 %v36
  %98 = vmatprep.subr.mxu0 0.0
  %99 = vmatpush1.msra.mxu0 %v37
  %100 = vmatprep.subr.mxu0 0.0
  %101 = vmatpush1.msra.mxu0 %v38
  %102 = vmatprep.subr.mxu0 0.0
  %103 = vmatpush1.msra.mxu0 %v39
  %104 = vmatprep.subr.mxu0 0.0
  %105 = vmatpush1.msra.mxu0 %v40
  %106 = vmatprep.subr.mxu0 0.0
  %107 = vmatpush1.msra.mxu0 0.0
  %108 = vmatprep.subr.mxu0 0.0
  %109 = vmatpush1.msra.mxu0 0.0
  %110 = vmatprep.subr.mxu0 0.0
  %111 = vmatpush1.msra.mxu0 0.0
  %112 = vmatprep.subr.mxu0 0.0
  %113 = vmatpush1.msra.mxu0 0.0
  %114 = vmatprep.subr.mxu0 0.0
  %115 = vmatpush1.msra.mxu0 0.0
  %116 = vmatprep.subr.mxu0 0.0
  %117 = vmatpush1.msra.mxu0 0.0
  %118 = vmatprep.subr.mxu0 0.0
  %119 = vmatpush1.msra.mxu0 0.0
  %120 = vmatprep.subr.mxu0 0.0
  %121 = vmatpush1.msra.mxu0 0.0
  %122 = vmatprep.subr.mxu0 0.0
  %123 = vmatpush1.msra.mxu0 0.0
  %124 = vmatprep.subr.mxu0 0.0
  %125 = vmatpush1.msra.mxu0 0.0
  %126 = vmatprep.subr.mxu0 0.0
  %127 = vmatpush1.msra.mxu0 0.0
  %128 = vmatprep.subr.mxu0 0.0
  %129 = vmatpush1.msra.mxu0 0.0
  %130 = vmatprep.subr.mxu0 0.0
  %131 = vmatpush1.msra.mxu0 0.0
  %132 = vmatprep.subr.mxu0 0.0
  %133 = vmatpush1.msra.mxu0 0.0
  %134 = vmatprep.subr.mxu0 0.0
  %135 = vmatpush1.msra.mxu0 0.0
  %136 = vmatprep.subr.mxu0 0.0
  %137 = vmatpush1.msra.mxu0 0.0
  %138 = vmatprep.subr.mxu0 0.0
  %139 = vmatpush1.msra.mxu0 0.0
  %140 = vmatprep.subr.mxu0 0.0
  %141 = vmatpush1.msra.mxu0 0.0
  %142 = vmatprep.subr.mxu0 0.0
  %143 = vmatpush1.msra.mxu0 0.0
  %144 = vmatprep.subr.mxu0 0.0
  %145 = vmatpush1.msra.mxu0 0.0
  %146 = vmatprep.subr.mxu0 0.0
  %147 = vmatpush1.msra.mxu0 0.0
  %148 = vmatprep.subr.mxu0 0.0
  %149 = vmatpush1.msra.mxu0 0.0
  %150 = vmatprep.subr.mxu0 0.0
  %151 = vmatpush1.msra.mxu0 0.0
  %152 = vmatprep.subr.mxu0 0.0
  %153 = vmatpush1.msra.mxu0 0.0
  %154 = vmatprep.mubr.f32.mxu0 0.0
  %155 = vmatmul.mubr.f32.gmra.mrb[0].mxu0 %v43
  %v156 = vpop.f32.mrb[0].mxu0
  %v157 = vadd.f32 0.0, %v156
  %v158 = vpop.f32.mrb[0].mxu0
  %159 = vmatprep.mubr.f32.mxu0 0.0
  %160 = vmatmul.mubr.f32.gmra.mrb[0].mxu0 %v46
  %v161 = vpop.f32.mrb[0].mxu0
  %v162 = vadd.f32 0.0, %v161
  %v163 = vpop.f32.mrb[0].mxu0
  %164 = vmatprep.mubr.f32.mxu0 0.0
  %165 = vmatmul.mubr.f32.gmra.mrb[0].mxu0 %v49
  %v166 = vpop.f32.mrb[0].mxu0
  %v167 = vadd.f32 0.0, %v166
  %v168 = vpop.f32.mrb[0].mxu0
  %169 = vmatprep.mubr.f32.mxu0 0.0
  %170 = vmatmul.mubr.f32.gmra.mrb[0].mxu0 %v52
  %v171 = vpop.f32.mrb[0].mxu0
  %v172 = vadd.f32 0.0, %v171
  %v173 = vpop.f32.mrb[0].mxu0
  %174 = vmatprep.mubr.f32.mxu0 0.0
  %175 = vmatmul.mubr.f32.gmra.mrb[0].mxu0 %v55
  %v176 = vpop.f32.mrb[0].mxu0
  %v177 = vadd.f32 0.0, %v176
  %v178 = vpop.f32.mrb[0].mxu0
  %179 = vmatprep.mubr.f32.mxu0 0.0
  %180 = vmatmul.mubr.f32.gmra.mrb[0].mxu0 %v58
  %v181 = vpop.f32.mrb[0].mxu0
  %v182 = vadd.f32 0.0, %v181
  %v183 = vpop.f32.mrb[0].mxu0
  %184 = vmatprep.mubr.f32.mxu0 0.0
  %185 = vmatmul.mubr.f32.gmra.mrb[0].mxu0 %v61
  %v186 = vpop.f32.mrb[0].mxu0
  %v187 = vadd.f32 0.0, %v186
  %v188 = vpop.f32.mrb[0].mxu0
  %189 = vmatprep.mubr.f32.mxu0 0.0
  %190 = vmatmul.mubr.f32.gmra.mrb[0].mxu0 %v64
  %v191 = vpop.f32.mrb[0].mxu0
  %v192 = vadd.f32 0.0, %v191
  %v193 = vpop.f32.mrb[0].mxu0
  %194 = vmatprep.mubr.f32.mxu0 0.0
  %195 = vmatmul.mubr.f32.gmra.mrb[0].mxu0 %v67
  %v196 = vpop.f32.mrb[0].mxu0
  %v197 = vadd.f32 0.0, %v196
  %v198 = vpop.f32.mrb[0].mxu0
  %199 = vmatprep.mubr.f32.mxu0 0.0
  %200 = vmatmul.mubr.f32.gmra.mrb[0].mxu0 %v70
  %v201 = vpop.f32.mrb[0].mxu0
  %v202 = vadd.f32 0.0, %v201
  %v203 = vpop.f32.mrb[0].mxu0
  %204 = vmatprep.mubr.f32.mxu0 0.0
  %205 = vmatmul.mubr.f32.gmra.mrb[0].mxu0 %v73
  %v206 = vpop.f32.mrb[0].mxu0
  %v207 = vadd.f32 0.0, %v206
  %v208 = vpop.f32.mrb[0].mxu0
  %209 = vmatprep.mubr.f32.mxu0 0.0
  %210 = vmatmul.mubr.f32.gmra.mrb[0].mxu0 %v76
  %v211 = vpop.f32.mrb[0].mxu0
  %v212 = vadd.f32 0.0, %v211
  %v213 = vpop.f32.mrb[0].mxu0
  %214 = vmatprep.mubr.f32.mxu0 0.0
  %215 = vmatmul.mubr.f32.gmra.mrb[0].mxu0 %v79
  %v216 = vpop.f32.mrb[0].mxu0
  %v217 = vadd.f32 0.0, %v216
  %v218 = vpop.f32.mrb[0].mxu0
  %219 = vmatprep.mubr.f32.mxu0 0.0
  %220 = vmatmul.mubr.f32.gmra.mrb[0].mxu0 %v82
  %v221 = vpop.f32.mrb[0].mxu0
  %v222 = vadd.f32 0.0, %v221
  %v223 = vpop.f32.mrb[0].mxu0
  %224 = vmatprep.mubr.f32.mxu0 0.0
  %225 = vmatmul.mubr.f32.gmra.mrb[0].mxu0 %v85
  %v226 = vpop.f32.mrb[0].mxu0
  %v227 = vadd.f32 0.0, %v226
  %v228 = vpop.f32.mrb[0].mxu0
  %229 = vmatprep.mubr.f32.mxu0 0.0
  %230 = vmatmul.mubr.f32.gmra.mrb[0].mxu0 %v88
  %v231 = vpop.f32.mrb[0].mxu0
  %v232 = vadd.f32 0.0, %v231
  %v233 = vpop.f32.mrb[0].mxu0
  %234 = vdwg.mxu0
  %235 = vadd.xlane.f32.xlu0 %v157
  %v236 = vpop.xlane.xlu0 %235
  %237 = vadd.xlane.f32.xlu0 %v162
  %v238 = vpop.xlane.xlu0 %237
  %239 = vadd.xlane.f32.xlu0 %v167
  %v240 = vpop.xlane.xlu0 %239
  %241 = vadd.xlane.f32.xlu0 %v172
  %v242 = vpop.xlane.xlu0 %241
  %243 = vadd.xlane.f32.xlu0 %v177
  %v244 = vpop.xlane.xlu0 %243
  %245 = vadd.xlane.f32.xlu0 %v182
  %v246 = vpop.xlane.xlu0 %245
  %247 = vadd.xlane.f32.xlu0 %v187
  %v248 = vpop.xlane.xlu0 %247
  %249 = vadd.xlane.f32.xlu0 %v192
  %v250 = vpop.xlane.xlu0 %249
  %251 = vadd.xlane.f32.xlu0 %v197
  %v252 = vpop.xlane.xlu0 %251
  %253 = vadd.xlane.f32.xlu0 %v202
  %v254 = vpop.xlane.xlu0 %253
  %255 = vadd.xlane.f32.xlu0 %v207
  %v256 = vpop.xlane.xlu0 %255
  %257 = vadd.xlane.f32.xlu0 %v212
  %v258 = vpop.xlane.xlu0 %257
  %259 = vadd.xlane.f32.xlu0 %v217
  %v260 = vpop.xlane.xlu0 %259
  %261 = vadd.xlane.f32.xlu0 %v222
  %v262 = vpop.xlane.xlu0 %261
  %263 = vadd.xlane.f32.xlu0 %v227
  %v264 = vpop.xlane.xlu0 %263
  %265 = vadd.xlane.f32.xlu0 %v232
  %v266 = vpop.xlane.xlu0 %265
  %v267 = vmul.f32 %v236, 0.0078125
  %v268 = vmul.f32 %v238, 0.0078125
  %v269 = vmul.f32 %v240, 0.0078125
  %v270 = vmul.f32 %v242, 0.0078125
  %v271 = vmul.f32 %v244, 0.0078125
  %v272 = vmul.f32 %v246, 0.0078125
  %v273 = vmul.f32 %v248, 0.0078125
  %v274 = vmul.f32 %v250, 0.0078125
  %v275 = vmul.f32 %v252, 0.0078125
  %v276 = vmul.f32 %v254, 0.0078125
  %v277 = vmul.f32 %v256, 0.0078125
  %v278 = vmul.f32 %v258, 0.0078125
  %v279 = vmul.f32 %v260, 0.0078125
  %v280 = vmul.f32 %v262, 0.0078125
  %v281 = vmul.f32 %v264, 0.0078125
  %v282 = vmul.f32 %v266, 0.0078125
  %v283 = vmul.f32 %v157, %v157
  %v284 = vmul.f32 %v162, %v162
  %v285 = vmul.f32 %v167, %v167
  %v286 = vmul.f32 %v172, %v172
  %v287 = vmul.f32 %v177, %v177
  %v288 = vmul.f32 %v182, %v182
  %v289 = vmul.f32 %v187, %v187
  %v290 = vmul.f32 %v192, %v192
  %v291 = vmul.f32 %v197, %v197
  %v292 = vmul.f32 %v202, %v202
  %v293 = vmul.f32 %v207, %v207
  %v294 = vmul.f32 %v212, %v212
  %v295 = vmul.f32 %v217, %v217
  %v296 = vmul.f32 %v222, %v222
  %v297 = vmul.f32 %v227, %v227
  %v298 = vmul.f32 %v232, %v232
  %299 = vadd.xlane.f32.xlu0 %v283
  %v300 = vpop.xlane.xlu0 %299
  %301 = vadd.xlane.f32.xlu0 %v284
  %v302 = vpop.xlane.xlu0 %301
  %303 = vadd.xlane.f32.xlu0 %v285
  %v304 = vpop.xlane.xlu0 %303
  %305 = vadd.xlane.f32.xlu0 %v286
  %v306 = vpop.xlane.xlu0 %305
  %307 = vadd.xlane.f32.xlu0 %v287
  %v308 = vpop.xlane.xlu0 %307
  %309 = vadd.xlane.f32.xlu0 %v288
  %v310 = vpop.xlane.xlu0 %309
  %311 = vadd.xlane.f32.xlu0 %v289
  %v312 = vpop.xlane.xlu0 %311
  %313 = vadd.xlane.f32.xlu0 %v290
  %v314 = vpop.xlane.xlu0 %313
  %315 = vadd.xlane.f32.xlu0 %v291
  %v316 = vpop.xlane.xlu0 %315
  %317 = vadd.xlane.f32.xlu0 %v292
  %v318 = vpop.xlane.xlu0 %317
  %319 = vadd.xlane.f32.xlu0 %v293
  %v320 = vpop.xlane.xlu0 %319
  %321 = vadd.xlane.f32.xlu0 %v294
  %v322 = vpop.xlane.xlu0 %321
  %323 = vadd.xlane.f32.xlu0 %v295
  %v324 = vpop.xlane.xlu0 %323
  %325 = vadd.xlane.f32.xlu0 %v296
  %v326 = vpop.xlane.xlu0 %325
  %327 = vadd.xlane.f32.xlu0 %v297
  %v328 = vpop.xlane.xlu0 %327
  %329 = vadd.xlane.f32.xlu0 %v298
  %v330 = vpop.xlane.xlu0 %329
  %v331 = vmul.f32 %v300, 0.0078125
  %v332 = vmul.f32 %v302, 0.0078125
  %v333 = vmul.f32 %v304, 0.0078125
  %v334 = vmul.f32 %v306, 0.0078125
  %v335 = vmul.f32 %v308, 0.0078125
  %v336 = vmul.f32 %v310, 0.0078125
  %v337 = vmul.f32 %v312, 0.0078125
  %v338 = vmul.f32 %v314, 0.0078125
  %v339 = vmul.f32 %v316, 0.0078125
  %v340 = vmul.f32 %v318, 0.0078125
  %v341 = vmul.f32 %v320, 0.0078125
  %v342 = vmul.f32 %v322, 0.0078125
  %v343 = vmul.f32 %v324, 0.0078125
  %v344 = vmul.f32 %v326, 0.0078125
  %v345 = vmul.f32 %v328, 0.0078125
  %v346 = vmul.f32 %v330, 0.0078125
  %v347 = vmul.f32 %v267, %v267
  %v348 = vmul.f32 %v268, %v268
  %v349 = vmul.f32 %v269, %v269
  %v350 = vmul.f32 %v270, %v270
  %v351 = vmul.f32 %v271, %v271
  %v352 = vmul.f32 %v272, %v272
  %v353 = vmul.f32 %v273, %v273
  %v354 = vmul.f32 %v274, %v274
  %v355 = vmul.f32 %v275, %v275
  %v356 = vmul.f32 %v276, %v276
  %v357 = vmul.f32 %v277, %v277
  %v358 = vmul.f32 %v278, %v278
  %v359 = vmul.f32 %v279, %v279
  %v360 = vmul.f32 %v280, %v280
  %v361 = vmul.f32 %v281, %v281
  %v362 = vmul.f32 %v282, %v282
  %v363 = vsub.f32 %v331, %v347
  %v364 = vsub.f32 %v332, %v348
  %v365 = vsub.f32 %v333, %v349
  %v366 = vsub.f32 %v334, %v350
  %v367 = vsub.f32 %v335, %v351
  %v368 = vsub.f32 %v336, %v352
  %v369 = vsub.f32 %v337, %v353
  %v370 = vsub.f32 %v338, %v354
  %v371 = vsub.f32 %v339, %v355
  %v372 = vsub.f32 %v340, %v356
  %v373 = vsub.f32 %v341, %v357
  %v374 = vsub.f32 %v342, %v358
  %v375 = vsub.f32 %v343, %v359
  %v376 = vsub.f32 %v344, %v360
  %v377 = vsub.f32 %v345, %v361
  %v378 = vsub.f32 %v346, %v362
  %v379 = vmax.f32 %v363, 0.0
  %v380 = vmax.f32 %v364, 0.0
  %v381 = vmax.f32 %v365, 0.0
  %v382 = vmax.f32 %v366, 0.0
  %v383 = vmax.f32 %v367, 0.0
  %v384 = vmax.f32 %v368, 0.0
  %v385 = vmax.f32 %v369, 0.0
  %v386 = vmax.f32 %v370, 0.0
  %v387 = vmax.f32 %v371, 0.0
  %v388 = vmax.f32 %v372, 0.0
  %v389 = vmax.f32 %v373, 0.0
  %v390 = vmax.f32 %v374, 0.0
  %v391 = vmax.f32 %v375, 0.0
  %v392 = vmax.f32 %v376, 0.0
  %v393 = vmax.f32 %v377, 0.0
  %v394 = vmax.f32 %v378, 0.0
  %v395 = vld [vmem:[%s2] sm:$0xff]
  %v396 = vld [vmem:[%s2 + $0x8] sm:$0xff]
  %v397 = vld [vmem:[%s2 + $0x10] sm:$0xff]
  %v398 = vld [vmem:[%s2 + $0x18] sm:$0xff]
  %v399 = vld [vmem:[%s2 + $0x20] sm:$0xff]
  %v400 = vld [vmem:[%s2 + $0x28] sm:$0xff]
  %v401 = vld [vmem:[%s2 + $0x30] sm:$0xff]
  %v402 = vld [vmem:[%s2 + $0x38] sm:$0xff]
  %v403 = vld [vmem:[%s2 + $0x40] sm:$0xff]
  %v404 = vld [vmem:[%s2 + $0x48] sm:$0xff]
  %v405 = vld [vmem:[%s2 + $0x50] sm:$0xff]
  %v406 = vld [vmem:[%s2 + $0x58] sm:$0xff]
  %v407 = vld [vmem:[%s2 + $0x60] sm:$0xff]
  %v408 = vld [vmem:[%s2 + $0x68] sm:$0xff]
  %v409 = vld [vmem:[%s2 + $0x70] sm:$0xff]
  %v410 = vld [vmem:[%s2 + $0x78] sm:$0xff]
  %v411 = vadd.f32 %v379, 1e-05
  %v412 = vadd.f32 %v380, 1e-05
  %v413 = vadd.f32 %v381, 1e-05
  %v414 = vadd.f32 %v382, 1e-05
  %v415 = vadd.f32 %v383, 1e-05
  %v416 = vadd.f32 %v384, 1e-05
  %v417 = vadd.f32 %v385, 1e-05
  %v418 = vadd.f32 %v386, 1e-05
  %v419 = vadd.f32 %v387, 1e-05
  %v420 = vadd.f32 %v388, 1e-05
  %v421 = vadd.f32 %v389, 1e-05
  %v422 = vadd.f32 %v390, 1e-05
  %v423 = vadd.f32 %v391, 1e-05
  %v424 = vadd.f32 %v392, 1e-05
  %v425 = vadd.f32 %v393, 1e-05
  %v426 = vadd.f32 %v394, 1e-05
  %v427 = vrsqrt.pop %v411
  %v428 = vrsqrt.pop %v412
  %v429 = vrsqrt.pop %v413
  %v430 = vrsqrt.pop %v414
  %v431 = vrsqrt.pop %v415
  %v432 = vrsqrt.pop %v416
  %v433 = vrsqrt.pop %v417
  %v434 = vrsqrt.pop %v418
  %v435 = vrsqrt.pop %v419
  %v436 = vrsqrt.pop %v420
  %v437 = vrsqrt.pop %v421
  %v438 = vrsqrt.pop %v422
  %v439 = vrsqrt.pop %v423
  %v440 = vrsqrt.pop %v424
  %v441 = vrsqrt.pop %v425
  %v442 = vrsqrt.pop %v426
  %v443 = vmul.f32 %v395, %v427
  %v444 = vmul.f32 %v396, %v428
  %v445 = vmul.f32 %v397, %v429
  %v446 = vmul.f32 %v398, %v430
  %v447 = vmul.f32 %v399, %v431
  %v448 = vmul.f32 %v400, %v432
  %v449 = vmul.f32 %v401, %v433
  %v450 = vmul.f32 %v402, %v434
  %v451 = vmul.f32 %v403, %v435
  %v452 = vmul.f32 %v404, %v436
  %v453 = vmul.f32 %v405, %v437
  %v454 = vmul.f32 %v406, %v438
  %v455 = vmul.f32 %v407, %v439
  %v456 = vmul.f32 %v408, %v440
  %v457 = vmul.f32 %v409, %v441
  %v458 = vmul.f32 %v410, %v442
  %v459 = vld [vmem:[%s3] sm:$0xff]
  %v460 = vld [vmem:[%s3 + $0x8] sm:$0xff]
  %v461 = vld [vmem:[%s3 + $0x10] sm:$0xff]
  %v462 = vld [vmem:[%s3 + $0x18] sm:$0xff]
  %v463 = vld [vmem:[%s3 + $0x20] sm:$0xff]
  %v464 = vld [vmem:[%s3 + $0x28] sm:$0xff]
  %v465 = vld [vmem:[%s3 + $0x30] sm:$0xff]
  %v466 = vld [vmem:[%s3 + $0x38] sm:$0xff]
  %v467 = vld [vmem:[%s3 + $0x40] sm:$0xff]
  %v468 = vld [vmem:[%s3 + $0x48] sm:$0xff]
  %v469 = vld [vmem:[%s3 + $0x50] sm:$0xff]
  %v470 = vld [vmem:[%s3 + $0x58] sm:$0xff]
  %v471 = vld [vmem:[%s3 + $0x60] sm:$0xff]
  %v472 = vld [vmem:[%s3 + $0x68] sm:$0xff]
  %v473 = vld [vmem:[%s3 + $0x70] sm:$0xff]
  %v474 = vld [vmem:[%s3 + $0x78] sm:$0xff]
  %v475 = vmul.f32 %v267, %v443
  %v476 = vmul.f32 %v268, %v444
  %v477 = vmul.f32 %v269, %v445
  %v478 = vmul.f32 %v270, %v446
  %v479 = vmul.f32 %v271, %v447
  %v480 = vmul.f32 %v272, %v448
  %v481 = vmul.f32 %v273, %v449
  %v482 = vmul.f32 %v274, %v450
  %v483 = vmul.f32 %v275, %v451
  %v484 = vmul.f32 %v276, %v452
  %v485 = vmul.f32 %v277, %v453
  %v486 = vmul.f32 %v278, %v454
  %v487 = vmul.f32 %v279, %v455
  %v488 = vmul.f32 %v280, %v456
  %v489 = vmul.f32 %v281, %v457
  %v490 = vmul.f32 %v282, %v458
  %v491 = vsub.f32 %v459, %v475
  %v492 = vsub.f32 %v460, %v476
  %v493 = vsub.f32 %v461, %v477
  %v494 = vsub.f32 %v462, %v478
  %v495 = vsub.f32 %v463, %v479
  %v496 = vsub.f32 %v464, %v480
  %v497 = vsub.f32 %v465, %v481
  %v498 = vsub.f32 %v466, %v482
  %v499 = vsub.f32 %v467, %v483
  %v500 = vsub.f32 %v468, %v484
  %v501 = vsub.f32 %v469, %v485
  %v502 = vsub.f32 %v470, %v486
  %v503 = vsub.f32 %v471, %v487
  %v504 = vsub.f32 %v472, %v488
  %v505 = vsub.f32 %v473, %v489
  %v506 = vsub.f32 %v474, %v490
  %508 = vset.pattern.permute.xlu0 0
  %509 = vperm.xlu0 %508, %v443
  %v510 = vpop.permute.xlu0 %509
  %513 = vset.pattern.permute.xlu0 0
  %514 = vperm.xlu0 %513, %v444
  %v515 = vpop.permute.xlu0 %514
  %518 = vset.pattern.permute.xlu0 0
  %519 = vperm.xlu0 %518, %v445
  %v520 = vpop.permute.xlu0 %519
  %523 = vset.pattern.permute.xlu0 0
  %524 = vperm.xlu0 %523, %v446
  %v525 = vpop.permute.xlu0 %524
  %528 = vset.pattern.permute.xlu0 0
  %529 = vperm.xlu0 %528, %v447
  %v530 = vpop.permute.xlu0 %529
  %533 = vset.pattern.permute.xlu0 0
  %534 = vperm.xlu0 %533, %v448
  %v535 = vpop.permute.xlu0 %534
  %538 = vset.pattern.permute.xlu0 0
  %539 = vperm.xlu0 %538, %v449
  %v540 = vpop.permute.xlu0 %539
  %543 = vset.pattern.permute.xlu0 0
  %544 = vperm.xlu0 %543, %v450
  %v545 = vpop.permute.xlu0 %544
  %548 = vset.pattern.permute.xlu0 0
  %549 = vperm.xlu0 %548, %v451
  %v550 = vpop.permute.xlu0 %549
  %553 = vset.pattern.permute.xlu0 0
  %554 = vperm.xlu0 %553, %v452
  %v555 = vpop.permute.xlu0 %554
  %558 = vset.pattern.permute.xlu0 0
  %559 = vperm.xlu0 %558, %v453
  %v560 = vpop.permute.xlu0 %559
  %563 = vset.pattern.permute.xlu0 0
  %564 = vperm.xlu0 %563, %v454
  %v565 = vpop.permute.xlu0 %564
  %568 = vset.pattern.permute.xlu0 0
  %569 = vperm.xlu0 %568, %v455
  %v570 = vpop.permute.xlu0 %569
  %573 = vset.pattern.permute.xlu0 0
  %574 = vperm.xlu0 %573, %v456
  %v575 = vpop.permute.xlu0 %574
  %578 = vset.pattern.permute.xlu0 0
  %579 = vperm.xlu0 %578, %v457
  %v580 = vpop.permute.xlu0 %579
  %583 = vset.pattern.permute.xlu0 0
  %584 = vperm.xlu0 %583, %v458
  %v585 = vpop.permute.xlu0 %584
  %v587 = vmul.f32 %v157, %v510
  %v588 = vmul.f32 %v162, %v515
  %v589 = vmul.f32 %v167, %v520
  %v590 = vmul.f32 %v172, %v525
  %v591 = vmul.f32 %v177, %v530
  %v592 = vmul.f32 %v182, %v535
  %v593 = vmul.f32 %v187, %v540
  %v594 = vmul.f32 %v192, %v545
  %v595 = vmul.f32 %v197, %v550
  %v596 = vmul.f32 %v202, %v555
  %v597 = vmul.f32 %v207, %v560
  %v598 = vmul.f32 %v212, %v565
  %v599 = vmul.f32 %v217, %v570
  %v600 = vmul.f32 %v222, %v575
  %v601 = vmul.f32 %v227, %v580
  %v602 = vmul.f32 %v232, %v585
  %604 = vset.pattern.permute.xlu0 0
  %605 = vperm.xlu0 %604, %v491
  %v606 = vpop.permute.xlu0 %605
  %609 = vset.pattern.permute.xlu0 0
  %610 = vperm.xlu0 %609, %v492
  %v611 = vpop.permute.xlu0 %610
  %614 = vset.pattern.permute.xlu0 0
  %615 = vperm.xlu0 %614, %v493
  %v616 = vpop.permute.xlu0 %615
  %619 = vset.pattern.permute.xlu0 0
  %620 = vperm.xlu0 %619, %v494
  %v621 = vpop.permute.xlu0 %620
  %624 = vset.pattern.permute.xlu0 0
  %625 = vperm.xlu0 %624, %v495
  %v626 = vpop.permute.xlu0 %625
  %629 = vset.pattern.permute.xlu0 0
  %630 = vperm.xlu0 %629, %v496
  %v631 = vpop.permute.xlu0 %630
  %634 = vset.pattern.permute.xlu0 0
  %635 = vperm.xlu0 %634, %v497
  %v636 = vpop.permute.xlu0 %635
  %639 = vset.pattern.permute.xlu0 0
  %640 = vperm.xlu0 %639, %v498
  %v641 = vpop.permute.xlu0 %640
  %644 = vset.pattern.permute.xlu0 0
  %645 = vperm.xlu0 %644, %v499
  %v646 = vpop.permute.xlu0 %645
  %649 = vset.pattern.permute.xlu0 0
  %650 = vperm.xlu0 %649, %v500
  %v651 = vpop.permute.xlu0 %650
  %654 = vset.pattern.permute.xlu0 0
  %655 = vperm.xlu0 %654, %v501
  %v656 = vpop.permute.xlu0 %655
  %659 = vset.pattern.permute.xlu0 0
  %660 = vperm.xlu0 %659, %v502
  %v661 = vpop.permute.xlu0 %660
  %664 = vset.pattern.permute.xlu0 0
  %665 = vperm.xlu0 %664, %v503
  %v666 = vpop.permute.xlu0 %665
  %669 = vset.pattern.permute.xlu0 0
  %670 = vperm.xlu0 %669, %v504
  %v671 = vpop.permute.xlu0 %670
  %674 = vset.pattern.permute.xlu0 0
  %675 = vperm.xlu0 %674, %v505
  %v676 = vpop.permute.xlu0 %675
  %679 = vset.pattern.permute.xlu0 0
  %680 = vperm.xlu0 %679, %v506
  %v681 = vpop.permute.xlu0 %680
  %v683 = vadd.f32 %v587, %v606
  %v684 = vadd.f32 %v588, %v611
  %v685 = vadd.f32 %v589, %v616
  %v686 = vadd.f32 %v590, %v621
  %v687 = vadd.f32 %v591, %v626
  %v688 = vadd.f32 %v592, %v631
  %v689 = vadd.f32 %v593, %v636
  %v690 = vadd.f32 %v594, %v641
  %v691 = vadd.f32 %v595, %v646
  %v692 = vadd.f32 %v596, %v651
  %v693 = vadd.f32 %v597, %v656
  %v694 = vadd.f32 %v598, %v661
  %v695 = vadd.f32 %v599, %v666
  %v696 = vadd.f32 %v600, %v671
  %v697 = vadd.f32 %v601, %v676
  %v698 = vadd.f32 %v602, %v681
  %699 = vst [vmem:[%s4] sm:$0xff] %v683
  %700 = vst [vmem:[%s4 + $0x8] sm:$0xff] %v684
  %701 = vst [vmem:[%s4 + $0x10] sm:$0xff] %v685
  %702 = vst [vmem:[%s4 + $0x18] sm:$0xff] %v686
  %703 = vst [vmem:[%s4 + $0x20] sm:$0xff] %v687
  %704 = vst [vmem:[%s4 + $0x28] sm:$0xff] %v688
  %705 = vst [vmem:[%s4 + $0x30] sm:$0xff] %v689
  %706 = vst [vmem:[%s4 + $0x38] sm:$0xff] %v690
  %707 = vst [vmem:[%s4 + $0x40] sm:$0xff] %v691
  %708 = vst [vmem:[%s4 + $0x48] sm:$0xff] %v692
  %709 = vst [vmem:[%s4 + $0x50] sm:$0xff] %v693
  %710 = vst [vmem:[%s4 + $0x58] sm:$0xff] %v694
  %711 = vst [vmem:[%s4 + $0x60] sm:$0xff] %v695
  %712 = vst [vmem:[%s4 + $0x68] sm:$0xff] %v696
  %713 = vst [vmem:[%s4 + $0x70] sm:$0xff] %v697
  %714 = vst [vmem:[%s4 + $0x78] sm:$0xff] %v698
  // Predicated region
  $region18: #{_lambda_.7} parent=0 // pred_check
    _
  $region19: #{_lambda_.7} parent=0 // pred_check_branch
    %716 = sbr.rel (0) target = $region21
  $region20: #{_lambda_.7} parent=0 // pred_region
    _
  $region21: #{_lambda_.7} parent=0 // pred_fallthru
    _
  // Predicated region
  $region22: #{_lambda_.7} parent=0 // pred_check
    _
  $region23: #{_lambda_.7} parent=0 // pred_check_branch
    %718 = sbr.rel (0) target = $region25
  $region24: #{_lambda_.7} parent=0 // pred_region
    _
  $region25: #{_lambda_.7} parent=0 // pred_fallthru
    _

// kernel: _lambda_.5
$region0: #{_lambda_.5}
  #allocation0 [shape = 'u32[]', space=smem, size = 0x4, offset = 0x4, fixed_abs, tag = 'smem constant byte address 0x4 - core index']
  #allocation1 [shape = 'u32[144,128]{1,0:T(1,128)}', space=vmem, size = 0x12000, scoped, tag = 'internal scratch']
  %s0 = inlined_call_operand.vmem [shape: f32[16,2048], index: 0, kind: input, shape index: {}]
  %s1 = inlined_call_operand.vmem [shape: f32[32,16], index: 1, kind: input, shape index: {}]
  %s2 = inlined_call_operand.vmem [shape: f32[32,1], index: 2, kind: input, shape index: {}]
  %s3 = inlined_call_operand.vmem [shape: f32[32,1], index: 3, kind: input, shape index: {}]
  %s4 = inlined_call_operand.vmem [shape: f32[32,2048], index: 4, kind: output, shape index: {}]
  %s5 = sld [smem:[#allocation0]]
  $region26: #{_lambda_.5} parent=0
    _
  %s7 = ssub.s32 1, %s5
  %s8 = scalar_select 0, %s7, %s5
  // Predicated region
  $region2: #{_lambda_.5} parent=0 // pred_check
    _
  $region3: #{_lambda_.5} parent=0 // pred_check_branch
    %10 = sbr.rel (0) target = $region5
  $region4: #{_lambda_.5} parent=0 // pred_region
    _
  $region5: #{_lambda_.5} parent=0 // pred_fallthru
    _
  // Predicated region
  $region6: #{_lambda_.5} parent=0 // pred_check
    _
  $region7: #{_lambda_.5} parent=0 // pred_check_branch
    %12 = sbr.rel (0) target = $region9
  $region8: #{_lambda_.5} parent=0 // pred_region
    _
  $region9: #{_lambda_.5} parent=0 // pred_fallthru
    _
  // Predicated region
  $region10: #{_lambda_.5} parent=0 // pred_check
    _
  $region11: #{_lambda_.5} parent=0 // pred_check_branch
    %14 = sbr.rel (0) target = $region13
  $region12: #{_lambda_.5} parent=0 // pred_region
    _
  $region13: #{_lambda_.5} parent=0 // pred_fallthru
    _
  // Predicated region
  $region14: #{_lambda_.5} parent=0 // pred_check
    _
  $region15: #{_lambda_.5} parent=0 // pred_check_branch
    %16 = sbr.rel (0) target = $region17
  $region16: #{_lambda_.5} parent=0 // pred_region
    _
  $region17: #{_lambda_.5} parent=0 // pred_fallthru
    _
  %v17 = vld [vmem:[%s1] sm:$0xff]
  %v18 = vld [vmem:[%s1 + $0x8] sm:$0xff]
  %v19 = vld [vmem:[%s1 + $0x10] sm:$0xff]
  %v20 = vld [vmem:[%s1 + $0x18] sm:$0xff]
  %v21 = vld [vmem:[%s0] sm:$0xff]
  %v22 = vld [vmem:[%s0 + $0x8] sm:$0xff]
  %v23 = vld [vmem:[%s0 + $0x10] sm:$0xff]
  %v24 = vld [vmem:[%s0 + $0x18] sm:$0xff]
  %v25 = vld [vmem:[%s0 + $0x20] sm:$0xff]
  %v26 = vld [vmem:[%s0 + $0x28] sm:$0xff]
  %v27 = vld [vmem:[%s0 + $0x30] sm:$0xff]
  %v28 = vld [vmem:[%s0 + $0x38] sm:$0xff]
  %v29 = vld [vmem:[%s0 + $0x40] sm:$0xff]
  %v30 = vld [vmem:[%s0 + $0x48] sm:$0xff]
  %v31 = vld [vmem:[%s0 + $0x50] sm:$0xff]
  %v32 = vld [vmem:[%s0 + $0x58] sm:$0xff]
  %v33 = vld [vmem:[%s0 + $0x60] sm:$0xff]
  %v34 = vld [vmem:[%s0 + $0x68] sm:$0xff]
  %v35 = vld [vmem:[%s0 + $0x70] sm:$0xff]
  %v36 = vld [vmem:[%s0 + $0x78] sm:$0xff]
  %v37 = vld [vmem:[%s0 + $0x80] sm:$0xff]
  %v38 = vld [vmem:[%s0 + $0x88] sm:$0xff]
  %v39 = vld [vmem:[%s0 + $0x90] sm:$0xff]
  %v40 = vld [vmem:[%s0 + $0x98] sm:$0xff]
  %v41 = vld [vmem:[%s0 + $0xa0] sm:$0xff]
  %v42 = vld [vmem:[%s0 + $0xa8] sm:$0xff]
  %v43 = vld [vmem:[%s0 + $0xb0] sm:$0xff]
  %v44 = vld [vmem:[%s0 + $0xb8] sm:$0xff]
  %v45 = vld [vmem:[%s0 + $0xc0] sm:$0xff]
  %v46 = vld [vmem:[%s0 + $0xc8] sm:$0xff]
  %v47 = vld [vmem:[%s0 + $0xd0] sm:$0xff]
  %v48 = vld [vmem:[%s0 + $0xd8] sm:$0xff]
  %v49 = vld [vmem:[%s0 + $0xe0] sm:$0xff]
  %v50 = vld [vmem:[%s0 + $0xe8] sm:$0xff]
  %v51 = vld [vmem:[%s0 + $0xf0] sm:$0xff]
  %v52 = vld [vmem:[%s0 + $0xf8] sm:$0xff]
  %vm53 = vcmask 130048
  %v55 = vsel %vm53, %v17, 0
  %v58 = vsel %vm53, %v18, 0
  %v61 = vsel %vm53, %v19, 0
  %v64 = vsel %vm53, %v20, 0
  %66 = vmatprep.subr.mxu0 %v22
  %67 = vmatpush1.msra.mxu0 %v21
  %68 = vmatprep.subr.mxu0 %v38
  %69 = vmatpush1.msra.mxu0 %v37
  %70 = vmatprep.subr.mxu0 0.0
  %71 = vmatpush1.msra.mxu0 0.0
  %72 = vmatprep.subr.mxu0 0.0
  %73 = vmatpush1.msra.mxu0 0.0
  %74 = vmatprep.subr.mxu0 0.0
  %75 = vmatpush1.msra.mxu0 0.0
  %76 = vmatprep.subr.mxu0 0.0
  %77 = vmatpush1.msra.mxu0 0.0
  %78 = vmatprep.subr.mxu0 0.0
  %79 = vmatpush1.msra.mxu0 0.0
  %80 = vmatprep.subr.mxu0 0.0
  %81 = vmatpush1.msra.mxu0 0.0
  %82 = vmatprep.subr.mxu0 0.0
  %83 = vmatpush1.msra.mxu0 0.0
  %84 = vmatprep.subr.mxu0 0.0
  %85 = vmatpush1.msra.mxu0 0.0
  %86 = vmatprep.subr.mxu0 0.0
  %87 = vmatpush1.msra.mxu0 0.0
  %88 = vmatprep.subr.mxu0 0.0
  %89 = vmatpush1.msra.mxu0 0.0
  %90 = vmatprep.subr.mxu0 0.0
  %91 = vmatpush1.msra.mxu0 0.0
  %92 = vmatprep.subr.mxu0 0.0
  %93 = vmatpush1.msra.mxu0 0.0
  %94 = vmatprep.subr.mxu0 0.0
  %95 = vmatpush1.msra.mxu0 0.0
  %96 = vmatprep.subr.mxu0 0.0
  %97 = vmatpush1.msra.mxu0 0.0
  %98 = vmatprep.subr.mxu0 0.0
  %99 = vmatpush1.msra.mxu0 0.0
  %100 = vmatprep.subr.mxu0 0.0
  %101 = vmatpush1.msra.mxu0 0.0
  %102 = vmatprep.subr.mxu0 0.0
  %103 = vmatpush1.msra.mxu0 0.0
  %104 = vmatprep.subr.mxu0 0.0
  %105 = vmatpush1.msra.mxu0 0.0
  %106 = vmatprep.subr.mxu0 0.0
  %107 = vmatpush1.msra.mxu0 0.0
  %108 = vmatprep.subr.mxu0 0.0
  %109 = vmatpush1.msra.mxu0 0.0
  %110 = vmatprep.subr.mxu0 0.0
  %111 = vmatpush1.msra.mxu0 0.0
  %112 = vmatprep.subr.mxu0 0.0
  %113 = vmatpush1.msra.mxu0 0.0
  %114 = vmatprep.subr.mxu0 0.0
  %115 = vmatpush1.msra.mxu0 0.0
  %116 = vmatprep.subr.mxu0 0.0
  %117 = vmatpush1.msra.mxu0 0.0
  %118 = vmatprep.subr.mxu0 0.0
  %119 = vmatpush1.msra.mxu0 0.0
  %120 = vmatprep.subr.mxu0 0.0
  %121 = vmatpush1.msra.mxu0 0.0
  %122 = vmatprep.subr.mxu0 0.0
  %123 = vmatpush1.msra.mxu0 0.0
  %124 = vmatprep.subr.mxu0 0.0
  %125 = vmatpush1.msra.mxu0 0.0
  %126 = vmatprep.subr.mxu0 0.0
  %127 = vmatpush1.msra.mxu0 0.0
  %128 = vmatprep.subr.mxu0 0.0
  %129 = vmatpush1.msra.mxu0 0.0
  %130 = vmatprep.mubr.f32.mxu0 0.0
  %131 = vmatmul.mubr.f32.gmra.mrb[0].mxu0 %v55
  %v132 = vpop.f32.mrb[0].mxu0
  %v133 = vadd.f32 0.0, %v132
  %v134 = vpop.f32.mrb[0].mxu0
  %v135 = vadd.f32 0.0, %v134
  %136 = vmatprep.mubr.f32.mxu0 0.0
  %137 = vmatmul.mubr.f32.gmra.mrb[0].mxu0 %v58
  %v138 = vpop.f32.mrb[0].mxu0
  %v139 = vadd.f32 0.0, %v138
  %v140 = vpop.f32.mrb[0].mxu0
  %v141 = vadd.f32 0.0, %v140
  %142 = vmatprep.mubr.f32.mxu0 0.0
  %143 = vmatmul.mubr.f32.gmra.mrb[0].mxu0 %v61
  %v144 = vpop.f32.mrb[0].mxu0
  %v145 = vadd.f32 0.0, %v144
  %v146 = vpop.f32.mrb[0].mxu0
  %v147 = vadd.f32 0.0, %v146
  %148 = vmatprep.mubr.f32.mxu0 0.0
  %149 = vmatmul.mubr.f32.gmra.mrb[0].mxu0 %v64
  %v150 = vpop.f32.mrb[0].mxu0
  %v151 = vadd.f32 0.0, %v150
  %v152 = vpop.f32.mrb[0].mxu0
  %v153 = vadd.f32 0.0, %v152
  %154 = vdwg.mxu0
  %155 = vmatprep.subr.mxu0 %v24
  %156 = vmatpush1.msra.mxu0 %v23
  %157 = vmatprep.subr.mxu0 %v40
  %158 = vmatpush1.msra.mxu0 %v39
  %159 = vmatprep.subr.mxu0 0.0
  %160 = vmatpush1.msra.mxu0 0.0
  %161 = vmatprep.subr.mxu0 0.0
  %162 = vmatpush1.msra.mxu0 0.0
  %163 = vmatprep.subr.mxu0 0.0
  %164 = vmatpush1.msra.mxu0 0.0
  %165 = vmatprep.subr.mxu0 0.0
  %166 = vmatpush1.msra.mxu0 0.0
  %167 = vmatprep.subr.mxu0 0.0
  %168 = vmatpush1.msra.mxu0 0.0
  %169 = vmatprep.subr.mxu0 0.0
  %170 = vmatpush1.msra.mxu0 0.0
  %171 = vmatprep.subr.mxu0 0.0
  %172 = vmatpush1.msra.mxu0 0.0
  %173 = vmatprep.subr.mxu0 0.0
  %174 = vmatpush1.msra.mxu0 0.0
  %175 = vmatprep.subr.mxu0 0.0
  %176 = vmatpush1.msra.mxu0 0.0
  %177 = vmatprep.subr.mxu0 0.0
  %178 = vmatpush1.msra.mxu0 0.0
  %179 = vmatprep.subr.mxu0 0.0
  %180 = vmatpush1.msra.mxu0 0.0
  %181 = vmatprep.subr.mxu0 0.0
  %182 = vmatpush1.msra.mxu0 0.0
  %183 = vmatprep.subr.mxu0 0.0
  %184 = vmatpush1.msra.mxu0 0.0
  %185 = vmatprep.subr.mxu0 0.0
  %186 = vmatpush1.msra.mxu0 0.0
  %187 = vmatprep.subr.mxu0 0.0
  %188 = vmatpush1.msra.mxu0 0.0
  %189 = vmatprep.subr.mxu0 0.0
  %190 = vmatpush1.msra.mxu0 0.0
  %191 = vmatprep.subr.mxu0 0.0
  %192 = vmatpush1.msra.mxu0 0.0
  %193 = vmatprep.subr.mxu0 0.0
  %194 = vmatpush1.msra.mxu0 0.0
  %195 = vmatprep.subr.mxu0 0.0
  %196 = vmatpush1.msra.mxu0 0.0
  %197 = vmatprep.subr.mxu0 0.0
  %198 = vmatpush1.msra.mxu0 0.0
  %199 = vmatprep.subr.mxu0 0.0
  %200 = vmatpush1.msra.mxu0 0.0
  %201 = vmatprep.subr.mxu0 0.0
  %202 = vmatpush1.msra.mxu0 0.0
  %203 = vmatprep.subr.mxu0 0.0
  %204 = vmatpush1.msra.mxu0 0.0
  %205 = vmatprep.subr.mxu0 0.0
  %206 = vmatpush1.msra.mxu0 0.0
  %207 = vmatprep.subr.mxu0 0.0
  %208 = vmatpush1.msra.mxu0 0.0
  %209 = vmatprep.subr.mxu0 0.0
  %210 = vmatpush1.msra.mxu0 0.0
  %211 = vmatprep.subr.mxu0 0.0
  %212 = vmatpush1.msra.mxu0 0.0
  %213 = vmatprep.subr.mxu0 0.0
  %214 = vmatpush1.msra.mxu0 0.0
  %215 = vmatprep.subr.mxu0 0.0
  %216 = vmatpush1.msra.mxu0 0.0
  %217 = vmatprep.subr.mxu0 0.0
  %218 = vmatpush1.msra.mxu0 0.0
  %219 = vmatprep.mubr.f32.mxu0 0.0
  %220 = vmatmul.mubr.f32.gmra.mrb[0].mxu0 %v55
  %v221 = vpop.f32.mrb[0].mxu0
  %v222 = vadd.f32 0.0, %v221
  %v223 = vpop.f32.mrb[0].mxu0
  %v224 = vadd.f32 0.0, %v223
  %225 = vmatprep.mubr.f32.mxu0 0.0
  %226 = vmatmul.mubr.f32.gmra.mrb[0].mxu0 %v58
  %v227 = vpop.f32.mrb[0].mxu0
  %v228 = vadd.f32 0.0, %v227
  %v229 = vpop.f32.mrb[0].mxu0
  %v230 = vadd.f32 0.0, %v229
  %231 = vmatprep.mubr.f32.mxu0 0.0
  %232 = vmatmul.mubr.f32.gmra.mrb[0].mxu0 %v61
  %v233 = vpop.f32.mrb[0].mxu0
  %v234 = vadd.f32 0.0, %v233
  %v235 = vpop.f32.mrb[0].mxu0
  %v236 = vadd.f32 0.0, %v235
  %237 = vmatprep.mubr.f32.mxu0 0.0
  %238 = vmatmul.mubr.f32.gmra.mrb[0].mxu0 %v64
  %v239 = vpop.f32.mrb[0].mxu0
  %v240 = vadd.f32 0.0, %v239
  %v241 = vpop.f32.mrb[0].mxu0
  %v242 = vadd.f32 0.0, %v241
  %243 = vdwg.mxu0
  %244 = vmatprep.subr.mxu0 %v26
  %245 = vmatpush1.msra.mxu0 %v25
  %246 = vmatprep.subr.mxu0 %v42
  %247 = vmatpush1.msra.mxu0 %v41
  %248 = vmatprep.subr.mxu0 0.0
  %249 = vmatpush1.msra.mxu0 0.0
  %250 = vmatprep.subr.mxu0 0.0
  %251 = vmatpush1.msra.mxu0 0.0
  %252 = vmatprep.subr.mxu0 0.0
  %253 = vmatpush1.msra.mxu0 0.0
  %254 = vmatprep.subr.mxu0 0.0
  %255 = vmatpush1.msra.mxu0 0.0
  %256 = vmatprep.subr.mxu0 0.0
  %257 = vmatpush1.msra.mxu0 0.0
  %258 = vmatprep.subr.mxu0 0.0
  %259 = vmatpush1.msra.mxu0 0.0
  %260 = vmatprep.subr.mxu0 0.0
  %261 = vmatpush1.msra.mxu0 0.0
  %262 = vmatprep.subr.mxu0 0.0
  %263 = vmatpush1.msra.mxu0 0.0
  %264 = vmatprep.subr.mxu0 0.0
  %265 = vmatpush1.msra.mxu0 0.0
  %266 = vmatprep.subr.mxu0 0.0
  %267 = vmatpush1.msra.mxu0 0.0
  %268 = vmatprep.subr.mxu0 0.0
  %269 = vmatpush1.msra.mxu0 0.0
  %270 = vmatprep.subr.mxu0 0.0
  %271 = vmatpush1.msra.mxu0 0.0
  %272 = vmatprep.subr.mxu0 0.0
  %273 = vmatpush1.msra.mxu0 0.0
  %274 = vmatprep.subr.mxu0 0.0
  %275 = vmatpush1.msra.mxu0 0.0
  %276 = vmatprep.subr.mxu0 0.0
  %277 = vmatpush1.msra.mxu0 0.0
  %278 = vmatprep.subr.mxu0 0.0
  %279 = vmatpush1.msra.mxu0 0.0
  %280 = vmatprep.subr.mxu0 0.0
  %281 = vmatpush1.msra.mxu0 0.0
  %282 = vmatprep.subr.mxu0 0.0
  %283 = vmatpush1.msra.mxu0 0.0
  %284 = vmatprep.subr.mxu0 0.0
  %285 = vmatpush1.msra.mxu0 0.0
  %286 = vmatprep.subr.mxu0 0.0
  %287 = vmatpush1.msra.mxu0 0.0
  %288 = vmatprep.subr.mxu0 0.0
  %289 = vmatpush1.msra.mxu0 0.0
  %290 = vmatprep.subr.mxu0 0.0
  %291 = vmatpush1.msra.mxu0 0.0
  %292 = vmatprep.subr.mxu0 0.0
  %293 = vmatpush1.msra.mxu0 0.0
  %294 = vmatprep.subr.mxu0 0.0
  %295 = vmatpush1.msra.mxu0 0.0
  %296 = vmatprep.subr.mxu0 0.0
  %297 = vmatpush1.msra.mxu0 0.0
  %298 = vmatprep.subr.mxu0 0.0
  %299 = vmatpush1.msra.mxu0 0.0
  %300 = vmatprep.subr.mxu0 0.0
  %301 = vmatpush1.msra.mxu0 0.0
  %302 = vmatprep.subr.mxu0 0.0
  %303 = vmatpush1.msra.mxu0 0.0
  %304 = vmatprep.subr.mxu0 0.0
  %305 = vmatpush1.msra.mxu0 0.0
  %306 = vmatprep.subr.mxu0 0.0
  %307 = vmatpush1.msra.mxu0 0.0
  %308 = vmatprep.mubr.f32.mxu0 0.0
  %309 = vmatmul.mubr.f32.gmra.mrb[0].mxu0 %v55
  %v310 = vpop.f32.mrb[0].mxu0
  %v311 = vadd.f32 0.0, %v310
  %v312 = vpop.f32.mrb[0].mxu0
  %v313 = vadd.f32 0.0, %v312
  %314 = vmatprep.mubr.f32.mxu0 0.0
  %315 = vmatmul.mubr.f32.gmra.mrb[0].mxu0 %v58
  %v316 = vpop.f32.mrb[0].mxu0
  %v317 = vadd.f32 0.0, %v316
  %v318 = vpop.f32.mrb[0].mxu0
  %v319 = vadd.f32 0.0, %v318
  %320 = vmatprep.mubr.f32.mxu0 0.0
  %321 = vmatmul.mubr.f32.gmra.mrb[0].mxu0 %v61
  %v322 = vpop.f32.mrb[0].mxu0
  %v323 = vadd.f32 0.0, %v322
  %v324 = vpop.f32.mrb[0].mxu0
  %v325 = vadd.f32 0.0, %v324
  %326 = vmatprep.mubr.f32.mxu0 0.0
  %327 = vmatmul.mubr.f32.gmra.mrb[0].mxu0 %v64
  %v328 = vpop.f32.mrb[0].mxu0
  %v329 = vadd.f32 0.0, %v328
  %v330 = vpop.f32.mrb[0].mxu0
  %v331 = vadd.f32 0.0, %v330
  %332 = vdwg.mxu0
  %333 = vmatprep.subr.mxu0 %v28
  %334 = vmatpush1.msra.mxu0 %v27
  %335 = vmatprep.subr.mxu0 %v44
  %336 = vmatpush1.msra.mxu0 %v43
  %337 = vmatprep.subr.mxu0 0.0
  %338 = vmatpush1.msra.mxu0 0.0
  %339 = vmatprep.subr.mxu0 0.0
  %340 = vmatpush1.msra.mxu0 0.0
  %341 = vmatprep.subr.mxu0 0.0
  %342 = vmatpush1.msra.mxu0 0.0
  %343 = vmatprep.subr.mxu0 0.0
  %344 = vmatpush1.msra.mxu0 0.0
  %345 = vmatprep.subr.mxu0 0.0
  %346 = vmatpush1.msra.mxu0 0.0
  %347 = vmatprep.subr.mxu0 0.0
  %348 = vmatpush1.msra.mxu0 0.0
  %349 = vmatprep.subr.mxu0 0.0
  %350 = vmatpush1.msra.mxu0 0.0
  %351 = vmatprep.subr.mxu0 0.0
  %352 = vmatpush1.msra.mxu0 0.0
  %353 = vmatprep.subr.mxu0 0.0
  %354 = vmatpush1.msra.mxu0 0.0
  %355 = vmatprep.subr.mxu0 0.0
  %356 = vmatpush1.msra.mxu0 0.0
  %357 = vmatprep.subr.mxu0 0.0
  %358 = vmatpush1.msra.mxu0 0.0
  %359 = vmatprep.subr.mxu0 0.0
  %360 = vmatpush1.msra.mxu0 0.0
  %361 = vmatprep.subr.mxu0 0.0
  %362 = vmatpush1.msra.mxu0 0.0
  %363 = vmatprep.subr.mxu0 0.0
  %364 = vmatpush1.msra.mxu0 0.0
  %365 = vmatprep.subr.mxu0 0.0
  %366 = vmatpush1.msra.mxu0 0.0
  %367 = vmatprep.subr.mxu0 0.0
  %368 = vmatpush1.msra.mxu0 0.0
  %369 = vmatprep.subr.mxu0 0.0
  %370 = vmatpush1.msra.mxu0 0.0
  %371 = vmatprep.subr.mxu0 0.0
  %372 = vmatpush1.msra.mxu0 0.0
  %373 = vmatprep.subr.mxu0 0.0
  %374 = vmatpush1.msra.mxu0 0.0
  %375 = vmatprep.subr.mxu0 0.0
  %376 = vmatpush1.msra.mxu0 0.0
  %377 = vmatprep.subr.mxu0 0.0
  %378 = vmatpush1.msra.mxu0 0.0
  %379 = vmatprep.subr.mxu0 0.0
  %380 = vmatpush1.msra.mxu0 0.0
  %381 = vmatprep.subr.mxu0 0.0
  %382 = vmatpush1.msra.mxu0 0.0
  %383 = vmatprep.subr.mxu0 0.0
  %384 = vmatpush1.msra.mxu0 0.0
  %385 = vmatprep.subr.mxu0 0.0
  %386 = vmatpush1.msra.mxu0 0.0
  %387 = vmatprep.subr.mxu0 0.0
  %388 = vmatpush1.msra.mxu0 0.0
  %389 = vmatprep.subr.mxu0 0.0
  %390 = vmatpush1.msra.mxu0 0.0
  %391 = vmatprep.subr.mxu0 0.0
  %392 = vmatpush1.msra.mxu0 0.0
  %393 = vmatprep.subr.mxu0 0.0
  %394 = vmatpush1.msra.mxu0 0.0
  %395 = vmatprep.subr.mxu0 0.0
  %396 = vmatpush1.msra.mxu0 0.0
  %397 = vmatprep.mubr.f32.mxu0 0.0
  %398 = vmatmul.mubr.f32.gmra.mrb[0].mxu0 %v55
  %v399 = vpop.f32.mrb[0].mxu0
  %v400 = vadd.f32 0.0, %v399
  %v401 = vpop.f32.mrb[0].mxu0
  %v402 = vadd.f32 0.0, %v401
  %403 = vmatprep.mubr.f32.mxu0 0.0
  %404 = vmatmul.mubr.f32.gmra.mrb[0].mxu0 %v58
  %v405 = vpop.f32.mrb[0].mxu0
  %v406 = vadd.f32 0.0, %v405
  %v407 = vpop.f32.mrb[0].mxu0
  %v408 = vadd.f32 0.0, %v407
  %409 = vmatprep.mubr.f32.mxu0 0.0
  %410 = vmatmul.mubr.f32.gmra.mrb[0].mxu0 %v61
  %v411 = vpop.f32.mrb[0].mxu0
  %v412 = vadd.f32 0.0, %v411
  %v413 = vpop.f32.mrb[0].mxu0
  %v414 = vadd.f32 0.0, %v413
  %415 = vmatprep.mubr.f32.mxu0 0.0
  %416 = vmatmul.mubr.f32.gmra.mrb[0].mxu0 %v64
  %v417 = vpop.f32.mrb[0].mxu0
  %v418 = vadd.f32 0.0, %v417
  %v419 = vpop.f32.mrb[0].mxu0
  %v420 = vadd.f32 0.0, %v419
  %421 = vdwg.mxu0
  %422 = vmatprep.subr.mxu0 %v30
  %423 = vmatpush1.msra.mxu0 %v29
  %424 = vmatprep.subr.mxu0 %v46
  %425 = vmatpush1.msra.mxu0 %v45
  %426 = vmatprep.subr.mxu0 0.0
  %427 = vmatpush1.msra.mxu0 0.0
  %428 = vmatprep.subr.mxu0 0.0
  %429 = vmatpush1.msra.mxu0 0.0
  %430 = vmatprep.subr.mxu0 0.0
  %431 = vmatpush1.msra.mxu0 0.0
  %432 = vmatprep.subr.mxu0 0.0
  %433 = vmatpush1.msra.mxu0 0.0
  %434 = vmatprep.subr.mxu0 0.0
  %435 = vmatpush1.msra.mxu0 0.0
  %436 = vmatprep.subr.mxu0 0.0
  %437 = vmatpush1.msra.mxu0 0.0
  %438 = vmatprep.subr.mxu0 0.0
  %439 = vmatpush1.msra.mxu0 0.0
  %440 = vmatprep.subr.mxu0 0.0
  %441 = vmatpush1.msra.mxu0 0.0
  %442 = vmatprep.subr.mxu0 0.0
  %443 = vmatpush1.msra.mxu0 0.0
  %444 = vmatprep.subr.mxu0 0.0
  %445 = vmatpush1.msra.mxu0 0.0
  %446 = vmatprep.subr.mxu0 0.0
  %447 = vmatpush1.msra.mxu0 0.0
  %448 = vmatprep.subr.mxu0 0.0
  %449 = vmatpush1.msra.mxu0 0.0
  %450 = vmatprep.subr.mxu0 0.0
  %451 = vmatpush1.msra.mxu0 0.0
  %452 = vmatprep.subr.mxu0 0.0
  %453 = vmatpush1.msra.mxu0 0.0
  %454 = vmatprep.subr.mxu0 0.0
  %455 = vmatpush1.msra.mxu0 0.0
  %456 = vmatprep.subr.mxu0 0.0
  %457 = vmatpush1.msra.mxu0 0.0
  %458 = vmatprep.subr.mxu0 0.0
  %459 = vmatpush1.msra.mxu0 0.0
  %460 = vmatprep.subr.mxu0 0.0
  %461 = vmatpush1.msra.mxu0 0.0
  %462 = vmatprep.subr.mxu0 0.0
  %463 = vmatpush1.msra.mxu0 0.0
  %464 = vmatprep.subr.mxu0 0.0
  %465 = vmatpush1.msra.mxu0 0.0
  %466 = vmatprep.subr.mxu0 0.0
  %467 = vmatpush1.msra.mxu0 0.0
  %468 = vmatprep.subr.mxu0 0.0
  %469 = vmatpush1.msra.mxu0 0.0
  %470 = vmatprep.subr.mxu0 0.0
  %471 = vmatpush1.msra.mxu0 0.0
  %472 = vmatprep.subr.mxu0 0.0
  %473 = vmatpush1.msra.mxu0 0.0
  %474 = vmatprep.subr.mxu0 0.0
  %475 = vmatpush1.msra.mxu0 0.0
  %476 = vmatprep.subr.mxu0 0.0
  %477 = vmatpush1.msra.mxu0 0.0
  %478 = vmatprep.subr.mxu0 0.0
  %479 = vmatpush1.msra.mxu0 0.0
  %480 = vmatprep.subr.mxu0 0.0
  %481 = vmatpush1.msra.mxu0 0.0
  %482 = vmatprep.subr.mxu0 0.0
  %483 = vmatpush1.msra.mxu0 0.0
  %484 = vmatprep.subr.mxu0 0.0
  %485 = vmatpush1.msra.mxu0 0.0
  %486 = vmatprep.mubr.f32.mxu0 0.0
  %487 = vmatmul.mubr.f32.gmra.mrb[0].mxu0 %v55
  %v488 = vpop.f32.mrb[0].mxu0
  %v489 = vadd.f32 0.0, %v488
  %v490 = vpop.f32.mrb[0].mxu0
  %v491 = vadd.f32 0.0, %v490
  %492 = vmatprep.mubr.f32.mxu0 0.0
  %493 = vmatmul.mubr.f32.gmra.mrb[0].mxu0 %v58
  %v494 = vpop.f32.mrb[0].mxu0
  %v495 = vadd.f32 0.0, %v494
  %v496 = vpop.f32.mrb[0].mxu0
  %v497 = vadd.f32 0.0, %v496
  %498 = vmatprep.mubr.f32.mxu0 0.0
  %499 = vmatmul.mubr.f32.gmra.mrb[0].mxu0 %v61
  %v500 = vpop.f32.mrb[0].mxu0
  %v501 = vadd.f32 0.0, %v500
  %v502 = vpop.f32.mrb[0].mxu0
  %v503 = vadd.f32 0.0, %v502
  %504 = vmatprep.mubr.f32.mxu0 0.0
  %505 = vmatmul.mubr.f32.gmra.mrb[0].mxu0 %v64
  %v506 = vpop.f32.mrb[0].mxu0
  %v507 = vadd.f32 0.0, %v506
  %v508 = vpop.f32.mrb[0].mxu0
  %v509 = vadd.f32 0.0, %v508
  %510 = vdwg.mxu0
  %511 = vmatprep.subr.mxu0 %v32
  %512 = vmatpush1.msra.mxu0 %v31
  %513 = vmatprep.subr.mxu0 %v48
  %514 = vmatpush1.msra.mxu0 %v47
  %515 = vmatprep.subr.mxu0 0.0
  %516 = vmatpush1.msra.mxu0 0.0
  %517 = vmatprep.subr.mxu0 0.0
  %518 = vmatpush1.msra.mxu0 0.0
  %519 = vmatprep.subr.mxu0 0.0
  %520 = vmatpush1.msra.mxu0 0.0
  %521 = vmatprep.subr.mxu0 0.0
  %522 = vmatpush1.msra.mxu0 0.0
  %523 = vmatprep.subr.mxu0 0.0
  %524 = vmatpush1.msra.mxu0 0.0
  %525 = vmatprep.subr.mxu0 0.0
  %526 = vmatpush1.msra.mxu0 0.0
  %527 = vmatprep.subr.mxu0 0.0
  %528 = vmatpush1.msra.mxu0 0.0
  %529 = vmatprep.subr.mxu0 0.0
  %530 = vmatpush1.msra.mxu0 0.0
  %531 = vmatprep.subr.mxu0 0.0
  %532 = vmatpush1.msra.mxu0 0.0
  %533 = vmatprep.subr.mxu0 0.0
  %534 = vmatpush1.msra.mxu0 0.0
  %535 = vmatprep.subr.mxu0 0.0
  %536 = vmatpush1.msra.mxu0 0.0
  %537 = vmatprep.subr.mxu0 0.0
  %538 = vmatpush1.msra.mxu0 0.0
  %539 = vmatprep.subr.mxu0 0.0
  %540 = vmatpush1.msra.mxu0 0.0
  %541 = vmatprep.subr.mxu0 0.0
  %542 = vmatpush1.msra.mxu0 0.0
  %543 = vmatprep.subr.mxu0 0.0
  %544 = vmatpush1.msra.mxu0 0.0
  %545 = vmatprep.subr.mxu0 0.0
  %546 = vmatpush1.msra.mxu0 0.0
  %547 = vmatprep.subr.mxu0 0.0
  %548 = vmatpush1.msra.mxu0 0.0
  %549 = vmatprep.subr.mxu0 0.0
  %550 = vmatpush1.msra.mxu0 0.0
  %551 = vmatprep.subr.mxu0 0.0
  %552 = vmatpush1.msra.mxu0 0.0
  %553 = vmatprep.subr.mxu0 0.0
  %554 = vmatpush1.msra.mxu0 0.0
  %555 = vmatprep.subr.mxu0 0.0
  %556 = vmatpush1.msra.mxu0 0.0
  %557 = vmatprep.subr.mxu0 0.0
  %558 = vmatpush1.msra.mxu0 0.0
  %559 = vmatprep.subr.mxu0 0.0
  %560 = vmatpush1.msra.mxu0 0.0
  %561 = vmatprep.subr.mxu0 0.0
  %562 = vmatpush1.msra.mxu0 0.0
  %563 = vmatprep.subr.mxu0 0.0
  %564 = vmatpush1.msra.mxu0 0.0
  %565 = vmatprep.subr.mxu0 0.0
  %566 = vmatpush1.msra.mxu0 0.0
  %567 = vmatprep.subr.mxu0 0.0
  %568 = vmatpush1.msra.mxu0 0.0
  %569 = vmatprep.subr.mxu0 0.0
  %570 = vmatpush1.msra.mxu0 0.0
  %571 = vmatprep.subr.mxu0 0.0
  %572 = vmatpush1.msra.mxu0 0.0
  %573 = vmatprep.subr.mxu0 0.0
  %574 = vmatpush1.msra.mxu0 0.0
  %575 = vmatprep.mubr.f32.mxu0 0.0
  %576 = vmatmul.mubr.f32.gmra.mrb[0].mxu0 %v55
  %v577 = vpop.f32.mrb[0].mxu0
  %v578 = vadd.f32 0.0, %v577
  %v579 = vpop.f32.mrb[0].mxu0
  %v580 = vadd.f32 0.0, %v579
  %581 = vmatprep.mubr.f32.mxu0 0.0
  %582 = vmatmul.mubr.f32.gmra.mrb[0].mxu0 %v58
  %v583 = vpop.f32.mrb[0].mxu0
  %v584 = vadd.f32 0.0, %v583
  %v585 = vpop.f32.mrb[0].mxu0
  %v586 = vadd.f32 0.0, %v585
  %587 = vmatprep.mubr.f32.mxu0 0.0
  %588 = vmatmul.mubr.f32.gmra.mrb[0].mxu0 %v61
  %v589 = vpop.f32.mrb[0].mxu0
  %v590 = vadd.f32 0.0, %v589
  %v591 = vpop.f32.mrb[0].mxu0
  %v592 = vadd.f32 0.0, %v591
  %593 = vmatprep.mubr.f32.mxu0 0.0
  %594 = vmatmul.mubr.f32.gmra.mrb[0].mxu0 %v64
  %v595 = vpop.f32.mrb[0].mxu0
  %v596 = vadd.f32 0.0, %v595
  %v597 = vpop.f32.mrb[0].mxu0
  %v598 = vadd.f32 0.0, %v597
  %599 = vdwg.mxu0
  %600 = vmatprep.subr.mxu0 %v34
  %601 = vmatpush1.msra.mxu0 %v33
  %602 = vmatprep.subr.mxu0 %v50
  %603 = vmatpush1.msra.mxu0 %v49
  %604 = vmatprep.subr.mxu0 0.0
  %605 = vmatpush1.msra.mxu0 0.0
  %606 = vmatprep.subr.mxu0 0.0
  %607 = vmatpush1.msra.mxu0 0.0
  %608 = vmatprep.subr.mxu0 0.0
  %609 = vmatpush1.msra.mxu0 0.0
  %610 = vmatprep.subr.mxu0 0.0
  %611 = vmatpush1.msra.mxu0 0.0
  %612 = vmatprep.subr.mxu0 0.0
  %613 = vmatpush1.msra.mxu0 0.0
  %614 = vmatprep.subr.mxu0 0.0
  %615 = vmatpush1.msra.mxu0 0.0
  %616 = vmatprep.subr.mxu0 0.0
  %617 = vmatpush1.msra.mxu0 0.0
  %618 = vmatprep.subr.mxu0 0.0
  %619 = vmatpush1.msra.mxu0 0.0
  %620 = vmatprep.subr.mxu0 0.0
  %621 = vmatpush1.msra.mxu0 0.0
  %622 = vmatprep.subr.mxu0 0.0
  %623 = vmatpush1.msra.mxu0 0.0
  %624 = vmatprep.subr.mxu0 0.0
  %625 = vmatpush1.msra.mxu0 0.0
  %626 = vmatprep.subr.mxu0 0.0
  %627 = vmatpush1.msra.mxu0 0.0
  %628 = vmatprep.subr.mxu0 0.0
  %629 = vmatpush1.msra.mxu0 0.0
  %630 = vmatprep.subr.mxu0 0.0
  %631 = vmatpush1.msra.mxu0 0.0
  %632 = vmatprep.subr.mxu0 0.0
  %633 = vmatpush1.msra.mxu0 0.0
  %634 = vmatprep.subr.mxu0 0.0
  %635 = vmatpush1.msra.mxu0 0.0
  %636 = vmatprep.subr.mxu0 0.0
  %637 = vmatpush1.msra.mxu0 0.0
  %638 = vmatprep.subr.mxu0 0.0
  %639 = vmatpush1.msra.mxu0 0.0
  %640 = vmatprep.subr.mxu0 0.0
  %641 = vmatpush1.msra.mxu0 0.0
  %642 = vmatprep.subr.mxu0 0.0
  %643 = vmatpush1.msra.mxu0 0.0
  %644 = vmatprep.subr.mxu0 0.0
  %645 = vmatpush1.msra.mxu0 0.0
  %646 = vmatprep.subr.mxu0 0.0
  %647 = vmatpush1.msra.mxu0 0.0
  %648 = vmatprep.subr.mxu0 0.0
  %649 = vmatpush1.msra.mxu0 0.0
  %650 = vmatprep.subr.mxu0 0.0
  %651 = vmatpush1.msra.mxu0 0.0
  %652 = vmatprep.subr.mxu0 0.0
  %653 = vmatpush1.msra.mxu0 0.0
  %654 = vmatprep.subr.mxu0 0.0
  %655 = vmatpush1.msra.mxu0 0.0
  %656 = vmatprep.subr.mxu0 0.0
  %657 = vmatpush1.msra.mxu0 0.0
  %658 = vmatprep.subr.mxu0 0.0
  %659 = vmatpush1.msra.mxu0 0.0
  %660 = vmatprep.subr.mxu0 0.0
  %661 = vmatpush1.msra.mxu0 0.0
  %662 = vmatprep.subr.mxu0 0.0
  %663 = vmatpush1.msra.mxu0 0.0
  %664 = vmatprep.mubr.f32.mxu0 0.0
  %665 = vmatmul.mubr.f32.gmra.mrb[0].mxu0 %v55
  %v666 = vpop.f32.mrb[0].mxu0
  %v667 = vadd.f32 0.0, %v666
  %v668 = vpop.f32.mrb[0].mxu0
  %v669 = vadd.f32 0.0, %v668
  %670 = vmatprep.mubr.f32.mxu0 0.0
  %671 = vmatmul.mubr.f32.gmra.mrb[0].mxu0 %v58
  %v672 = vpop.f32.mrb[0].mxu0
  %v673 = vadd.f32 0.0, %v672
  %v674 = vpop.f32.mrb[0].mxu0
  %v675 = vadd.f32 0.0, %v674
  %676 = vmatprep.mubr.f32.mxu0 0.0
  %677 = vmatmul.mubr.f32.gmra.mrb[0].mxu0 %v61
  %v678 = vpop.f32.mrb[0].mxu0
  %v679 = vadd.f32 0.0, %v678
  %v680 = vpop.f32.mrb[0].mxu0
  %v681 = vadd.f32 0.0, %v680
  %682 = vmatprep.mubr.f32.mxu0 0.0
  %683 = vmatmul.mubr.f32.gmra.mrb[0].mxu0 %v64
  %v684 = vpop.f32.mrb[0].mxu0
  %v685 = vadd.f32 0.0, %v684
  %v686 = vpop.f32.mrb[0].mxu0
  %v687 = vadd.f32 0.0, %v686
  %688 = vdwg.mxu0
  %689 = vmatprep.subr.mxu0 %v36
  %690 = vmatpush1.msra.mxu0 %v35
  %691 = vmatprep.subr.mxu0 %v52
  %692 = vmatpush1.msra.mxu0 %v51
  %693 = vmatprep.subr.mxu0 0.0
  %694 = vmatpush1.msra.mxu0 0.0
  %695 = vmatprep.subr.mxu0 0.0
  %696 = vmatpush1.msra.mxu0 0.0
  %697 = vmatprep.subr.mxu0 0.0
  %698 = vmatpush1.msra.mxu0 0.0
  %699 = vmatprep.subr.mxu0 0.0
  %700 = vmatpush1.msra.mxu0 0.0
  %701 = vmatprep.subr.mxu0 0.0
  %702 = vmatpush1.msra.mxu0 0.0
  %703 = vmatprep.subr.mxu0 0.0
  %704 = vmatpush1.msra.mxu0 0.0
  %705 = vmatprep.subr.mxu0 0.0
  %706 = vmatpush1.msra.mxu0 0.0
  %707 = vmatprep.subr.mxu0 0.0
  %708 = vmatpush1.msra.mxu0 0.0
  %709 = vmatprep.subr.mxu0 0.0
  %710 = vmatpush1.msra.mxu0 0.0
  %711 = vmatprep.subr.mxu0 0.0
  %712 = vmatpush1.msra.mxu0 0.0
  %713 = vmatprep.subr.mxu0 0.0
  %714 = vmatpush1.msra.mxu0 0.0
  %715 = vmatprep.subr.mxu0 0.0
  %716 = vmatpush1.msra.mxu0 0.0
  %717 = vmatprep.subr.mxu0 0.0
  %718 = vmatpush1.msra.mxu0 0.0
  %719 = vmatprep.subr.mxu0 0.0
  %720 = vmatpush1.msra.mxu0 0.0
  %721 = vmatprep.subr.mxu0 0.0
  %722 = vmatpush1.msra.mxu0 0.0
  %723 = vmatprep.subr.mxu0 0.0
  %724 = vmatpush1.msra.mxu0 0.0
  %725 = vmatprep.subr.mxu0 0.0
  %726 = vmatpush1.msra.mxu0 0.0
  %727 = vmatprep.subr.mxu0 0.0
  %728 = vmatpush1.msra.mxu0 0.0
  %729 = vmatprep.subr.mxu0 0.0
  %730 = vmatpush1.msra.mxu0 0.0
  %731 = vmatprep.subr.mxu0 0.0
  %732 = vmatpush1.msra.mxu0 0.0
  %733 = vmatprep.subr.mxu0 0.0
  %734 = vmatpush1.msra.mxu0 0.0
  %735 = vmatprep.subr.mxu0 0.0
  %736 = vmatpush1.msra.mxu0 0.0
  %737 = vmatprep.subr.mxu0 0.0
  %738 = vmatpush1.msra.mxu0 0.0
  %739 = vmatprep.subr.mxu0 0.0
  %740 = vmatpush1.msra.mxu0 0.0
  %741 = vmatprep.subr.mxu0 0.0
  %742 = vmatpush1.msra.mxu0 0.0
  %743 = vmatprep.subr.mxu0 0.0
  %744 = vmatpush1.msra.mxu0 0.0
  %745 = vmatprep.subr.mxu0 0.0
  %746 = vmatpush1.msra.mxu0 0.0
  %747 = vmatprep.subr.mxu0 0.0
  %748 = vmatpush1.msra.mxu0 0.0
  %749 = vmatprep.subr.mxu0 0.0
  %750 = vmatpush1.msra.mxu0 0.0
  %751 = vmatprep.subr.mxu0 0.0
  %752 = vmatpush1.msra.mxu0 0.0
  %753 = vmatprep.mubr.f32.mxu0 0.0
  %754 = vmatmul.mubr.f32.gmra.mrb[0].mxu0 %v55
  %v755 = vpop.f32.mrb[0].mxu0
  %v756 = vadd.f32 0.0, %v755
  %v757 = vpop.f32.mrb[0].mxu0
  %v758 = vadd.f32 0.0, %v757
  %759 = vmatprep.mubr.f32.mxu0 0.0
  %760 = vmatmul.mubr.f32.gmra.mrb[0].mxu0 %v58
  %v761 = vpop.f32.mrb[0].mxu0
  %v762 = vadd.f32 0.0, %v761
  %v763 = vpop.f32.mrb[0].mxu0
  %v764 = vadd.f32 0.0, %v763
  %765 = vmatprep.mubr.f32.mxu0 0.0
  %766 = vmatmul.mubr.f32.gmra.mrb[0].mxu0 %v61
  %v767 = vpop.f32.mrb[0].mxu0
  %v768 = vadd.f32 0.0, %v767
  %v769 = vpop.f32.mrb[0].mxu0
  %v770 = vadd.f32 0.0, %v769
  %771 = vmatprep.mubr.f32.mxu0 0.0
  %772 = vmatmul.mubr.f32.gmra.mrb[0].mxu0 %v64
  %v773 = vpop.f32.mrb[0].mxu0
  %v774 = vadd.f32 0.0, %v773
  %v775 = vpop.f32.mrb[0].mxu0
  %v776 = vadd.f32 0.0, %v775
  %777 = vdwg.mxu0
  %v778 = vadd.f32 %v133, %v135
  %v779 = vadd.f32 %v778, %v222
  %v780 = vadd.f32 %v779, %v224
  %v781 = vadd.f32 %v780, %v311
  %v782 = vadd.f32 %v781, %v313
  %v783 = vadd.f32 %v782, %v400
  %v784 = vadd.f32 %v783, %v402
  %v785 = vadd.f32 %v784, %v489
  %v786 = vadd.f32 %v785, %v491
  %v787 = vadd.f32 %v786, %v578
  %v788 = vadd.f32 %v787, %v580
  %v789 = vadd.f32 %v788, %v667
  %v790 = vadd.f32 %v789, %v669
  %v791 = vadd.f32 %v790, %v756
  %v792 = vadd.f32 %v791, %v758
  %793 = vadd.xlane.f32.xlu0 %v792
  %v794 = vpop.xlane.xlu0 %793
  %v795 = vadd.f32 %v139, %v141
  %v796 = vadd.f32 %v795, %v228
  %v797 = vadd.f32 %v796, %v230
  %v798 = vadd.f32 %v797, %v317
  %v799 = vadd.f32 %v798, %v319
  %v800 = vadd.f32 %v799, %v406
  %v801 = vadd.f32 %v800, %v408
  %v802 = vadd.f32 %v801, %v495
  %v803 = vadd.f32 %v802, %v497
  %v804 = vadd.f32 %v803, %v584
  %v805 = vadd.f32 %v804, %v586
  %v806 = vadd.f32 %v805, %v673
  %v807 = vadd.f32 %v806, %v675
  %v808 = vadd.f32 %v807, %v762
  %v809 = vadd.f32 %v808, %v764
  %810 = vadd.xlane.f32.xlu0 %v809
  %v811 = vpop.xlane.xlu0 %810
  %v812 = vadd.f32 %v145, %v147
  %v813 = vadd.f32 %v812, %v234
  %v814 = vadd.f32 %v813, %v236
  %v815 = vadd.f32 %v814, %v323
  %v816 = vadd.f32 %v815, %v325
  %v817 = vadd.f32 %v816, %v412
  %v818 = vadd.f32 %v817, %v414
  %v819 = vadd.f32 %v818, %v501
  %v820 = vadd.f32 %v819, %v503
  %v821 = vadd.f32 %v820, %v590
  %v822 = vadd.f32 %v821, %v592
  %v823 = vadd.f32 %v822, %v679
  %v824 = vadd.f32 %v823, %v681
  %v825 = vadd.f32 %v824, %v768
  %v826 = vadd.f32 %v825, %v770
  %827 = vadd.xlane.f32.xlu0 %v826
  %v828 = vpop.xlane.xlu0 %827
  %v829 = vadd.f32 %v151, %v153
  %v830 = vadd.f32 %v829, %v240
  %v831 = vadd.f32 %v830, %v242
  %v832 = vadd.f32 %v831, %v329
  %v833 = vadd.f32 %v832, %v331
  %v834 = vadd.f32 %v833, %v418
  %v835 = vadd.f32 %v834, %v420
  %v836 = vadd.f32 %v835, %v507
  %v837 = vadd.f32 %v836, %v509
  %v838 = vadd.f32 %v837, %v596
  %v839 = vadd.f32 %v838, %v598
  %v840 = vadd.f32 %v839, %v685
  %v841 = vadd.f32 %v840, %v687
  %v842 = vadd.f32 %v841, %v774
  %v843 = vadd.f32 %v842, %v776
  %844 = vadd.xlane.f32.xlu0 %v843
  %v845 = vpop.xlane.xlu0 %844
  %v846 = vmul.f32 %v794, 0.00048828125
  %v847 = vmul.f32 %v811, 0.00048828125
  %v848 = vmul.f32 %v828, 0.00048828125
  %v849 = vmul.f32 %v845, 0.00048828125
  %v850 = vmul.f32 %v133, %v133
  %v851 = vmul.f32 %v135, %v135
  %v852 = vmul.f32 %v222, %v222
  %v853 = vmul.f32 %v224, %v224
  %v854 = vmul.f32 %v311, %v311
  %v855 = vmul.f32 %v313, %v313
  %v856 = vmul.f32 %v400, %v400
  %v857 = vmul.f32 %v402, %v402
  %v858 = vmul.f32 %v489, %v489
  %v859 = vmul.f32 %v491, %v491
  %v860 = vmul.f32 %v578, %v578
  %v861 = vmul.f32 %v580, %v580
  %v862 = vmul.f32 %v667, %v667
  %v863 = vmul.f32 %v669, %v669
  %v864 = vmul.f32 %v756, %v756
  %v865 = vmul.f32 %v758, %v758
  %v866 = vmul.f32 %v139, %v139
  %v867 = vmul.f32 %v141, %v141
  %v868 = vmul.f32 %v228, %v228
  %v869 = vmul.f32 %v230, %v230
  %v870 = vmul.f32 %v317, %v317
  %v871 = vmul.f32 %v319, %v319
  %v872 = vmul.f32 %v406, %v406
  %v873 = vmul.f32 %v408, %v408
  %v874 = vmul.f32 %v495, %v495
  %v875 = vmul.f32 %v497, %v497
  %v876 = vmul.f32 %v584, %v584
  %v877 = vmul.f32 %v586, %v586
  %v878 = vmul.f32 %v673, %v673
  %v879 = vmul.f32 %v675, %v675
  %v880 = vmul.f32 %v762, %v762
  %v881 = vmul.f32 %v764, %v764
  %v882 = vmul.f32 %v145, %v145
  %v883 = vmul.f32 %v147, %v147
  %v884 = vmul.f32 %v234, %v234
  %v885 = vmul.f32 %v236, %v236
  %v886 = vmul.f32 %v323, %v323
  %v887 = vmul.f32 %v325, %v325
  %v888 = vmul.f32 %v412, %v412
  %v889 = vmul.f32 %v414, %v414
  %v890 = vmul.f32 %v501, %v501
  %v891 = vmul.f32 %v503, %v503
  %v892 = vmul.f32 %v590, %v590
  %v893 = vmul.f32 %v592, %v592
  %v894 = vmul.f32 %v679, %v679
  %v895 = vmul.f32 %v681, %v681
  %v896 = vmul.f32 %v768, %v768
  %v897 = vmul.f32 %v770, %v770
  %v898 = vmul.f32 %v151, %v151
  %v899 = vmul.f32 %v153, %v153
  %v900 = vmul.f32 %v240, %v240
  %v901 = vmul.f32 %v242, %v242
  %v902 = vmul.f32 %v329, %v329
  %v903 = vmul.f32 %v331, %v331
  %v904 = vmul.f32 %v418, %v418
  %v905 = vmul.f32 %v420, %v420
  %v906 = vmul.f32 %v507, %v507
  %v907 = vmul.f32 %v509, %v509
  %v908 = vmul.f32 %v596, %v596
  %v909 = vmul.f32 %v598, %v598
  %v910 = vmul.f32 %v685, %v685
  %v911 = vmul.f32 %v687, %v687
  %v912 = vmul.f32 %v774, %v774
  %v913 = vmul.f32 %v776, %v776
  %v914 = vadd.f32 %v850, %v851
  %v915 = vadd.f32 %v914, %v852
  %v916 = vadd.f32 %v915, %v853
  %v917 = vadd.f32 %v916, %v854
  %v918 = vadd.f32 %v917, %v855
  %v919 = vadd.f32 %v918, %v856
  %v920 = vadd.f32 %v919, %v857
  %v921 = vadd.f32 %v920, %v858
  %v922 = vadd.f32 %v921, %v859
  %v923 = vadd.f32 %v922, %v860
  %v924 = vadd.f32 %v923, %v861
  %v925 = vadd.f32 %v924, %v862
  %v926 = vadd.f32 %v925, %v863
  %v927 = vadd.f32 %v926, %v864
  %v928 = vadd.f32 %v927, %v865
  %929 = vadd.xlane.f32.xlu0 %v928
  %v930 = vpop.xlane.xlu0 %929
  %v931 = vadd.f32 %v866, %v867
  %v932 = vadd.f32 %v931, %v868
  %v933 = vadd.f32 %v932, %v869
  %v934 = vadd.f32 %v933, %v870
  %v935 = vadd.f32 %v934, %v871
  %v936 = vadd.f32 %v935, %v872
  %v937 = vadd.f32 %v936, %v873
  %v938 = vadd.f32 %v937, %v874
  %v939 = vadd.f32 %v938, %v875
  %v940 = vadd.f32 %v939, %v876
  %v941 = vadd.f32 %v940, %v877
  %v942 = vadd.f32 %v941, %v878
  %v943 = vadd.f32 %v942, %v879
  %v944 = vadd.f32 %v943, %v880
  %v945 = vadd.f32 %v944, %v881
  %946 = vadd.xlane.f32.xlu0 %v945
  %v947 = vpop.xlane.xlu0 %946
  %v948 = vadd.f32 %v882, %v883
  %v949 = vadd.f32 %v948, %v884
  %v950 = vadd.f32 %v949, %v885
  %v951 = vadd.f32 %v950, %v886
  %v952 = vadd.f32 %v951, %v887
  %v953 = vadd.f32 %v952, %v888
  %v954 = vadd.f32 %v953, %v889
  %v955 = vadd.f32 %v954, %v890
  %v956 = vadd.f32 %v955, %v891
  %v957 = vadd.f32 %v956, %v892
  %v958 = vadd.f32 %v957, %v893
  %v959 = vadd.f32 %v958, %v894
  %v960 = vadd.f32 %v959, %v895
  %v961 = vadd.f32 %v960, %v896
  %v962 = vadd.f32 %v961, %v897
  %963 = vadd.xlane.f32.xlu0 %v962
  %v964 = vpop.xlane.xlu0 %963
  %v965 = vadd.f32 %v898, %v899
  %v966 = vadd.f32 %v965, %v900
  %v967 = vadd.f32 %v966, %v901
  %v968 = vadd.f32 %v967, %v902
  %v969 = vadd.f32 %v968, %v903
  %v970 = vadd.f32 %v969, %v904
  %v971 = vadd.f32 %v970, %v905
  %v972 = vadd.f32 %v971, %v906
  %v973 = vadd.f32 %v972, %v907
  %v974 = vadd.f32 %v973, %v908
  %v975 = vadd.f32 %v974, %v909
  %v976 = vadd.f32 %v975, %v910
  %v977 = vadd.f32 %v976, %v911
  %v978 = vadd.f32 %v977, %v912
  %v979 = vadd.f32 %v978, %v913
  %980 = vadd.xlane.f32.xlu0 %v979
  %v981 = vpop.xlane.xlu0 %980
  %v982 = vmul.f32 %v930, 0.00048828125
  %v983 = vmul.f32 %v947, 0.00048828125
  %v984 = vmul.f32 %v964, 0.00048828125
  %v985 = vmul.f32 %v981, 0.00048828125
  %v986 = vmul.f32 %v846, %v846
  %v987 = vmul.f32 %v847, %v847
  %v988 = vmul.f32 %v848, %v848
  %v989 = vmul.f32 %v849, %v849
  %v990 = vsub.f32 %v982, %v986
  %v991 = vsub.f32 %v983, %v987
  %v992 = vsub.f32 %v984, %v988
  %v993 = vsub.f32 %v985, %v989
  %v994 = vmax.f32 %v990, 0.0
  %v995 = vmax.f32 %v991, 0.0
  %v996 = vmax.f32 %v992, 0.0
  %v997 = vmax.f32 %v993, 0.0
  %v998 = vld [vmem:[%s2] sm:$0xff]
  %v999 = vld [vmem:[%s2 + $0x8] sm:$0xff]
  %v1000 = vld [vmem:[%s2 + $0x10] sm:$0xff]
  %v1001 = vld [vmem:[%s2 + $0x18] sm:$0xff]
  %v1002 = vadd.f32 %v994, 1e-05
  %v1003 = vadd.f32 %v995, 1e-05
  %v1004 = vadd.f32 %v996, 1e-05
  %v1005 = vadd.f32 %v997, 1e-05
  %v1006 = vrsqrt.pop %v1002
  %v1007 = vrsqrt.pop %v1003
  %v1008 = vrsqrt.pop %v1004
  %v1009 = vrsqrt.pop %v1005
  %v1010 = vmul.f32 %v998, %v1006
  %v1011 = vmul.f32 %v999, %v1007
  %v1012 = vmul.f32 %v1000, %v1008
  %v1013 = vmul.f32 %v1001, %v1009
  %v1014 = vld [vmem:[%s3] sm:$0xff]
  %v1015 = vld [vmem:[%s3 + $0x8] sm:$0xff]
  %v1016 = vld [vmem:[%s3 + $0x10] sm:$0xff]
  %v1017 = vld [vmem:[%s3 + $0x18] sm:$0xff]
  %v1018 = vmul.f32 %v846, %v1010
  %v1019 = vmul.f32 %v847, %v1011
  %v1020 = vmul.f32 %v848, %v1012
  %v1021 = vmul.f32 %v849, %v1013
  %v1022 = vsub.f32 %v1014, %v1018
  %v1023 = vsub.f32 %v1015, %v1019
  %v1024 = vsub.f32 %v1016, %v1020
  %v1025 = vsub.f32 %v1017, %v1021
  %1027 = vset.pattern.permute.xlu0 0
  %1028 = vperm.xlu0 %1027, %v1010
  %v1029 = vpop.permute.xlu0 %1028
  %1032 = vset.pattern.permute.xlu0 0
  %1033 = vperm.xlu0 %1032, %v1011
  %v1034 = vpop.permute.xlu0 %1033
  %1037 = vset.pattern.permute.xlu0 0
  %1038 = vperm.xlu0 %1037, %v1012
  %v1039 = vpop.permute.xlu0 %1038
  %1042 = vset.pattern.permute.xlu0 0
  %1043 = vperm.xlu0 %1042, %v1013
  %v1044 = vpop.permute.xlu0 %1043
  %v1046 = vmul.f32 %v133, %v1029
  %v1047 = vmul.f32 %v135, %v1029
  %v1048 = vmul.f32 %v222, %v1029
  %v1049 = vmul.f32 %v224, %v1029
  %v1050 = vmul.f32 %v311, %v1029
  %v1051 = vmul.f32 %v313, %v1029
  %v1052 = vmul.f32 %v400, %v1029
  %v1053 = vmul.f32 %v402, %v1029
  %v1054 = vmul.f32 %v489, %v1029
  %v1055 = vmul.f32 %v491, %v1029
  %v1056 = vmul.f32 %v578, %v1029
  %v1057 = vmul.f32 %v580, %v1029
  %v1058 = vmul.f32 %v667, %v1029
  %v1059 = vmul.f32 %v669, %v1029
  %v1060 = vmul.f32 %v756, %v1029
  %v1061 = vmul.f32 %v758, %v1029
  %v1062 = vmul.f32 %v139, %v1034
  %v1063 = vmul.f32 %v141, %v1034
  %v1064 = vmul.f32 %v228, %v1034
  %v1065 = vmul.f32 %v230, %v1034
  %v1066 = vmul.f32 %v317, %v1034
  %v1067 = vmul.f32 %v319, %v1034
  %v1068 = vmul.f32 %v406, %v1034
  %v1069 = vmul.f32 %v408, %v1034
  %v1070 = vmul.f32 %v495, %v1034
  %v1071 = vmul.f32 %v497, %v1034
  %v1072 = vmul.f32 %v584, %v1034
  %v1073 = vmul.f32 %v586, %v1034
  %v1074 = vmul.f32 %v673, %v1034
  %v1075 = vmul.f32 %v675, %v1034
  %v1076 = vmul.f32 %v762, %v1034
  %v1077 = vmul.f32 %v764, %v1034
  %v1078 = vmul.f32 %v145, %v1039
  %v1079 = vmul.f32 %v147, %v1039
  %v1080 = vmul.f32 %v234, %v1039
  %v1081 = vmul.f32 %v236, %v1039
  %v1082 = vmul.f32 %v323, %v1039
  %v1083 = vmul.f32 %v325, %v1039
  %v1084 = vmul.f32 %v412, %v1039
  %v1085 = vmul.f32 %v414, %v1039
  %v1086 = vmul.f32 %v501, %v1039
  %v1087 = vmul.f32 %v503, %v1039
  %v1088 = vmul.f32 %v590, %v1039
  %v1089 = vmul.f32 %v592, %v1039
  %v1090 = vmul.f32 %v679, %v1039
  %v1091 = vmul.f32 %v681, %v1039
  %v1092 = vmul.f32 %v768, %v1039
  %v1093 = vmul.f32 %v770, %v1039
  %v1094 = vmul.f32 %v151, %v1044
  %v1095 = vmul.f32 %v153, %v1044
  %v1096 = vmul.f32 %v240, %v1044
  %v1097 = vmul.f32 %v242, %v1044
  %v1098 = vmul.f32 %v329, %v1044
  %v1099 = vmul.f32 %v331, %v1044
  %v1100 = vmul.f32 %v418, %v1044
  %v1101 = vmul.f32 %v420, %v1044
  %v1102 = vmul.f32 %v507, %v1044
  %v1103 = vmul.f32 %v509, %v1044
  %v1104 = vmul.f32 %v596, %v1044
  %v1105 = vmul.f32 %v598, %v1044
  %v1106 = vmul.f32 %v685, %v1044
  %v1107 = vmul.f32 %v687, %v1044
  %v1108 = vmul.f32 %v774, %v1044
  %v1109 = vmul.f32 %v776, %v1044
  %1111 = vset.pattern.permute.xlu0 0
  %1112 = vperm.xlu0 %1111, %v1022
  %v1113 = vpop.permute.xlu0 %1112
  %1116 = vset.pattern.permute.xlu0 0
  %1117 = vperm.xlu0 %1116, %v1023
  %v1118 = vpop.permute.xlu0 %1117
  %1121 = vset.pattern.permute.xlu0 0
  %1122 = vperm.xlu0 %1121, %v1024
  %v1123 = vpop.permute.xlu0 %1122
  %1126 = vset.pattern.permute.xlu0 0
  %1127 = vperm.xlu0 %1126, %v1025
  %v1128 = vpop.permute.xlu0 %1127
  %v1130 = vadd.f32 %v1046, %v1113
  %v1131 = vadd.f32 %v1047, %v1113
  %v1132 = vadd.f32 %v1048, %v1113
  %v1133 = vadd.f32 %v1049, %v1113
  %v1134 = vadd.f32 %v1050, %v1113
  %v1135 = vadd.f32 %v1051, %v1113
  %v1136 = vadd.f32 %v1052, %v1113
  %v1137 = vadd.f32 %v1053, %v1113
  %v1138 = vadd.f32 %v1054, %v1113
  %v1139 = vadd.f32 %v1055, %v1113
  %v1140 = vadd.f32 %v1056, %v1113
  %v1141 = vadd.f32 %v1057, %v1113
  %v1142 = vadd.f32 %v1058, %v1113
  %v1143 = vadd.f32 %v1059, %v1113
  %v1144 = vadd.f32 %v1060, %v1113
  %v1145 = vadd.f32 %v1061, %v1113
  %v1146 = vadd.f32 %v1062, %v1118
  %v1147 = vadd.f32 %v1063, %v1118
  %v1148 = vadd.f32 %v1064, %v1118
  %v1149 = vadd.f32 %v1065, %v1118
  %v1150 = vadd.f32 %v1066, %v1118
  %v1151 = vadd.f32 %v1067, %v1118
  %v1152 = vadd.f32 %v1068, %v1118
  %v1153 = vadd.f32 %v1069, %v1118
  %v1154 = vadd.f32 %v1070, %v1118
  %v1155 = vadd.f32 %v1071, %v1118
  %v1156 = vadd.f32 %v1072, %v1118
  %v1157 = vadd.f32 %v1073, %v1118
  %v1158 = vadd.f32 %v1074, %v1118
  %v1159 = vadd.f32 %v1075, %v1118
  %v1160 = vadd.f32 %v1076, %v1118
  %v1161 = vadd.f32 %v1077, %v1118
  %v1162 = vadd.f32 %v1078, %v1123
  %v1163 = vadd.f32 %v1079, %v1123
  %v1164 = vadd.f32 %v1080, %v1123
  %v1165 = vadd.f32 %v1081, %v1123
  %v1166 = vadd.f32 %v1082, %v1123
  %v1167 = vadd.f32 %v1083, %v1123
  %v1168 = vadd.f32 %v1084, %v1123
  %v1169 = vadd.f32 %v1085, %v1123
  %v1170 = vadd.f32 %v1086, %v1123
  %v1171 = vadd.f32 %v1087, %v1123
  %v1172 = vadd.f32 %v1088, %v1123
  %v1173 = vadd.f32 %v1089, %v1123
  %v1174 = vadd.f32 %v1090, %v1123
  %v1175 = vadd.f32 %v1091, %v1123
  %v1176 = vadd.f32 %v1092, %v1123
  %v1177 = vadd.f32 %v1093, %v1123
  %v1178 = vadd.f32 %v1094, %v1128
  %v1179 = vadd.f32 %v1095, %v1128
  %v1180 = vadd.f32 %v1096, %v1128
  %v1181 = vadd.f32 %v1097, %v1128
  %v1182 = vadd.f32 %v1098, %v1128
  %v1183 = vadd.f32 %v1099, %v1128
  %v1184 = vadd.f32 %v1100, %v1128
  %v1185 = vadd.f32 %v1101, %v1128
  %v1186 = vadd.f32 %v1102, %v1128
  %v1187 = vadd.f32 %v1103, %v1128
  %v1188 = vadd.f32 %v1104, %v1128
  %v1189 = vadd.f32 %v1105, %v1128
  %v1190 = vadd.f32 %v1106, %v1128
  %v1191 = vadd.f32 %v1107, %v1128
  %v1192 = vadd.f32 %v1108, %v1128
  %v1193 = vadd.f32 %v1109, %v1128
  %1194 = vst [vmem:[%s4] sm:$0xff] %v1130
  %1195 = vst [vmem:[%s4 + $0x8] sm:$0xff] %v1131
  %1196 = vst [vmem:[%s4 + $0x10] sm:$0xff] %v1132
  %1197 = vst [vmem:[%s4 + $0x18] sm:$0xff] %v1133
  %1198 = vst [vmem:[%s4 + $0x20] sm:$0xff] %v1134
  %1199 = vst [vmem:[%s4 + $0x28] sm:$0xff] %v1135
  %1200 = vst [vmem:[%s4 + $0x30] sm:$0xff] %v1136
  %1201 = vst [vmem:[%s4 + $0x38] sm:$0xff] %v1137
  %1202 = vst [vmem:[%s4 + $0x40] sm:$0xff] %v1138
  %1203 = vst [vmem:[%s4 + $0x48] sm:$0xff] %v1139
  %1204 = vst [vmem:[%s4 + $0x50] sm:$0xff] %v1140
  %1205 = vst [vmem:[%s4 + $0x58] sm:$0xff] %v1141
  %1206 = vst [vmem:[%s4 + $0x60] sm:$0xff] %v1142
  %1207 = vst [vmem:[%s4 + $0x68] sm:$0xff] %v1143
  %1208 = vst [vmem:[%s4 + $0x70] sm:$0xff] %v1144
  %1209 = vst [vmem:[%s4 + $0x78] sm:$0xff] %v1145
  %1210 = vst [vmem:[%s4 + $0x80] sm:$0xff] %v1146
  %1211 = vst [vmem:[%s4 + $0x88] sm:$0xff] %v1147
  %1212 = vst [vmem:[%s4 + $0x90] sm:$0xff] %v1148
  %1213 = vst [vmem:[%s4 + $0x98] sm:$0xff] %v1149
  %1214 = vst [vmem:[%s4 + $0xa0] sm:$0xff] %v1150
  %1215 = vst [vmem:[%s4 + $0xa8] sm:$0xff] %v1151
  %1216 = vst [vmem:[%s4 + $0xb0] sm:$0xff] %v1152
  %1217 = vst [vmem:[%s4 + $0xb8] sm:$0xff] %v1153
  %1218 = vst [vmem:[%s4 + $0xc0] sm:$0xff] %v1154
  %1219 = vst [vmem:[%s4 + $0xc8] sm:$0xff] %v1155
  %1220 = vst [vmem:[%s4 + $0xd0] sm:$0xff] %v1156
  %1221 = vst [vmem:[%s4 + $0xd8] sm:$0xff] %v1157
  %1222 = vst [vmem:[%s4 + $0xe0] sm:$0xff] %v1158
  %1223 = vst [vmem:[%s4 + $0xe8] sm:$0xff] %v1159
  %1224 = vst [vmem:[%s4 + $0xf0] sm:$0xff] %v1160
  %1225 = vst [vmem:[%s4 + $0xf8] sm:$0xff] %v1161
  %1226 = vst [vmem:[%s4 + $0x100] sm:$0xff] %v1162
  %1227 = vst [vmem:[%s4 + $0x108] sm:$0xff] %v1163
  %1228 = vst [vmem:[%s4 + $0x110] sm:$0xff] %v1164
  %1229 = vst [vmem:[%s4 + $0x118] sm:$0xff] %v1165
  %1230 = vst [vmem:[%s4 + $0x120] sm:$0xff] %v1166
  %1231 = vst [vmem:[%s4 + $0x128] sm:$0xff] %v1167
  %1232 = vst [vmem:[%s4 + $0x130] sm:$0xff] %v1168
  %1233 = vst [vmem:[%s4 + $0x138] sm:$0xff] %v1169
  %1234 = vst [vmem:[%s4 + $0x140] sm:$0xff] %v1170
  %1235 = vst [vmem:[%s4 + $0x148] sm:$0xff] %v1171
  %1236 = vst [vmem:[%s4 + $0x150] sm:$0xff] %v1172
  %1237 = vst [vmem:[%s4 + $0x158] sm:$0xff] %v1173
  %1238 = vst [vmem:[%s4 + $0x160] sm:$0xff] %v1174
  %1239 = vst [vmem:[%s4 + $0x168] sm:$0xff] %v1175
  %1240 = vst [vmem:[%s4 + $0x170] sm:$0xff] %v1176
  %1241 = vst [vmem:[%s4 + $0x178] sm:$0xff] %v1177
  %1242 = vst [vmem:[%s4 + $0x180] sm:$0xff] %v1178
  %1243 = vst [vmem:[%s4 + $0x188] sm:$0xff] %v1179
  %1244 = vst [vmem:[%s4 + $0x190] sm:$0xff] %v1180
  %1245 = vst [vmem:[%s4 + $0x198] sm:$0xff] %v1181
  %1246 = vst [vmem:[%s4 + $0x1a0] sm:$0xff] %v1182
  %1247 = vst [vmem:[%s4 + $0x1a8] sm:$0xff] %v1183
  %1248 = vst [vmem:[%s4 + $0x1b0] sm:$0xff] %v1184
  %1249 = vst [vmem:[%s4 + $0x1b8] sm:$0xff] %v1185
  %1250 = vst [vmem:[%s4 + $0x1c0] sm:$0xff] %v1186
  %1251 = vst [vmem:[%s4 + $0x1c8] sm:$0xff] %v1187
  %1252 = vst [vmem:[%s4 + $0x1d0] sm:$0xff] %v1188
  %1253 = vst [vmem:[%s4 + $0x1d8] sm:$0xff] %v1189
  %1254 = vst [vmem:[%s4 + $0x1e0] sm:$0xff] %v1190
  %1255 = vst [vmem:[%s4 + $0x1e8] sm:$0xff] %v1191
  %1256 = vst [vmem:[%s4 + $0x1f0] sm:$0xff] %v1192
  %1257 = vst [vmem:[%s4 + $0x1f8] sm:$0xff] %v1193
  // Predicated region
  $region18: #{_lambda_.5} parent=0 // pred_check
    _
  $region19: #{_lambda_.5} parent=0 // pred_check_branch
    %1259 = sbr.rel (0) target = $region21
  $region20: #{_lambda_.5} parent=0 // pred_region
    _
  $region21: #{_lambda_.5} parent=0 // pred_fallthru
    _
  // Predicated region
  $region22: #{_lambda_.5} parent=0 // pred_check
    _
  $region23: #{_lambda_.5} parent=0 // pred_check_branch
    %1261 = sbr.rel (0) target = $region25
  $region24: #{_lambda_.5} parent=0 // pred_region
    _
  $region25: #{_lambda_.5} parent=0 // pred_fallthru
    _

// kernel: _lambda_.6
$region0: #{_lambda_.6}
  #allocation0 [shape = 'u32[]', space=smem, size = 0x4, offset = 0x4, fixed_abs, tag = 'smem constant byte address 0x4 - core index']
  #allocation1 [shape = 'u32[144,128]{1,0:T(1,128)}', space=vmem, size = 0x12000, scoped, tag = 'internal scratch']
  %s0 = inlined_call_operand.vmem [shape: f32[32,512], index: 0, kind: input, shape index: {}]
  %s1 = inlined_call_operand.vmem [shape: f32[64,32], index: 1, kind: input, shape index: {}]
  %s2 = inlined_call_operand.vmem [shape: f32[64,1], index: 2, kind: input, shape index: {}]
  %s3 = inlined_call_operand.vmem [shape: f32[64,1], index: 3, kind: input, shape index: {}]
  %s4 = inlined_call_operand.vmem [shape: f32[64,512], index: 4, kind: output, shape index: {}]
  %s5 = sld [smem:[#allocation0]]
  $region26: #{_lambda_.6} parent=0
    _
  %s7 = ssub.s32 1, %s5
  %s8 = scalar_select 0, %s7, %s5
  // Predicated region
  $region2: #{_lambda_.6} parent=0 // pred_check
    _
  $region3: #{_lambda_.6} parent=0 // pred_check_branch
    %10 = sbr.rel (0) target = $region5
  $region4: #{_lambda_.6} parent=0 // pred_region
    _
  $region5: #{_lambda_.6} parent=0 // pred_fallthru
    _
  // Predicated region
  $region6: #{_lambda_.6} parent=0 // pred_check
    _
  $region7: #{_lambda_.6} parent=0 // pred_check_branch
    %12 = sbr.rel (0) target = $region9
  $region8: #{_lambda_.6} parent=0 // pred_region
    _
  $region9: #{_lambda_.6} parent=0 // pred_fallthru
    _
  // Predicated region
  $region10: #{_lambda_.6} parent=0 // pred_check
    _
  $region11: #{_lambda_.6} parent=0 // pred_check_branch
    %14 = sbr.rel (0) target = $region13
  $region12: #{_lambda_.6} parent=0 // pred_region
    _
  $region13: #{_lambda_.6} parent=0 // pred_fallthru
    _
  // Predicated region
  $region14: #{_lambda_.6} parent=0 // pred_check
    _
  $region15: #{_lambda_.6} parent=0 // pred_check_branch
    %16 = sbr.rel (0) target = $region17
  $region16: #{_lambda_.6} parent=0 // pred_region
    _
  $region17: #{_lambda_.6} parent=0 // pred_fallthru
    _
  %v17 = vld [vmem:[%s1] sm:$0xff]
  %v18 = vld [vmem:[%s1 + $0x8] sm:$0xff]
  %v19 = vld [vmem:[%s1 + $0x10] sm:$0xff]
  %v20 = vld [vmem:[%s1 + $0x18] sm:$0xff]
  %v21 = vld [vmem:[%s1 + $0x20] sm:$0xff]
  %v22 = vld [vmem:[%s1 + $0x28] sm:$0xff]
  %v23 = vld [vmem:[%s1 + $0x30] sm:$0xff]
  %v24 = vld [vmem:[%s1 + $0x38] sm:$0xff]
  %v25 = vld [vmem:[%s0] sm:$0xff]
  %v26 = vld [vmem:[%s0 + $0x8] sm:$0xff]
  %v27 = vld [vmem:[%s0 + $0x10] sm:$0xff]
  %v28 = vld [vmem:[%s0 + $0x18] sm:$0xff]
  %v29 = vld [vmem:[%s0 + $0x20] sm:$0xff]
  %v30 = vld [vmem:[%s0 + $0x28] sm:$0xff]
  %v31 = vld [vmem:[%s0 + $0x30] sm:$0xff]
  %v32 = vld [vmem:[%s0 + $0x38] sm:$0xff]
  %v33 = vld [vmem:[%s0 + $0x40] sm:$0xff]
  %v34 = vld [vmem:[%s0 + $0x48] sm:$0xff]
  %v35 = vld [vmem:[%s0 + $0x50] sm:$0xff]
  %v36 = vld [vmem:[%s0 + $0x58] sm:$0xff]
  %v37 = vld [vmem:[%s0 + $0x60] sm:$0xff]
  %v38 = vld [vmem:[%s0 + $0x68] sm:$0xff]
  %v39 = vld [vmem:[%s0 + $0x70] sm:$0xff]
  %v40 = vld [vmem:[%s0 + $0x78] sm:$0xff]
  %vm41 = vcmask 261120
  %v43 = vsel %vm41, %v17, 0
  %v46 = vsel %vm41, %v18, 0
  %v49 = vsel %vm41, %v19, 0
  %v52 = vsel %vm41, %v20, 0
  %v55 = vsel %vm41, %v21, 0
  %v58 = vsel %vm41, %v22, 0
  %v61 = vsel %vm41, %v23, 0
  %v64 = vsel %vm41, %v24, 0
  %66 = vmatprep.subr.mxu0 %v26
  %67 = vmatpush1.msra.mxu0 %v25
  %68 = vmatprep.subr.mxu0 %v30
  %69 = vmatpush1.msra.mxu0 %v29
  %70 = vmatprep.subr.mxu0 %v34
  %71 = vmatpush1.msra.mxu0 %v33
  %72 = vmatprep.subr.mxu0 %v38
  %73 = vmatpush1.msra.mxu0 %v37
  %74 = vmatprep.subr.mxu0 0.0
  %75 = vmatpush1.msra.mxu0 0.0
  %76 = vmatprep.subr.mxu0 0.0
  %77 = vmatpush1.msra.mxu0 0.0
  %78 = vmatprep.subr.mxu0 0.0
  %79 = vmatpush1.msra.mxu0 0.0
  %80 = vmatprep.subr.mxu0 0.0
  %81 = vmatpush1.msra.mxu0 0.0
  %82 = vmatprep.subr.mxu0 0.0
  %83 = vmatpush1.msra.mxu0 0.0
  %84 = vmatprep.subr.mxu0 0.0
  %85 = vmatpush1.msra.mxu0 0.0
  %86 = vmatprep.subr.mxu0 0.0
  %87 = vmatpush1.msra.mxu0 0.0
  %88 = vmatprep.subr.mxu0 0.0
  %89 = vmatpush1.msra.mxu0 0.0
  %90 = vmatprep.subr.mxu0 0.0
  %91 = vmatpush1.msra.mxu0 0.0
  %92 = vmatprep.subr.mxu0 0.0
  %93 = vmatpush1.msra.mxu0 0.0
  %94 = vmatprep.subr.mxu0 0.0
  %95 = vmatpush1.msra.mxu0 0.0
  %96 = vmatprep.subr.mxu0 0.0
  %97 = vmatpush1.msra.mxu0 0.0
  %98 = vmatprep.subr.mxu0 0.0
  %99 = vmatpush1.msra.mxu0 0.0
  %100 = vmatprep.subr.mxu0 0.0
  %101 = vmatpush1.msra.mxu0 0.0
  %102 = vmatprep.subr.mxu0 0.0
  %103 = vmatpush1.msra.mxu0 0.0
  %104 = vmatprep.subr.mxu0 0.0
  %105 = vmatpush1.msra.mxu0 0.0
  %106 = vmatprep.subr.mxu0 0.0
  %107 = vmatpush1.msra.mxu0 0.0
  %108 = vmatprep.subr.mxu0 0.0
  %109 = vmatpush1.msra.mxu0 0.0
  %110 = vmatprep.subr.mxu0 0.0
  %111 = vmatpush1.msra.mxu0 0.0
  %112 = vmatprep.subr.mxu0 0.0
  %113 = vmatpush1.msra.mxu0 0.0
  %114 = vmatprep.subr.mxu0 0.0
  %115 = vmatpush1.msra.mxu0 0.0
  %116 = vmatprep.subr.mxu0 0.0
  %117 = vmatpush1.msra.mxu0 0.0
  %118 = vmatprep.subr.mxu0 0.0
  %119 = vmatpush1.msra.mxu0 0.0
  %120 = vmatprep.subr.mxu0 0.0
  %121 = vmatpush1.msra.mxu0 0.0
  %122 = vmatprep.subr.mxu0 0.0
  %123 = vmatpush1.msra.mxu0 0.0
  %124 = vmatprep.subr.mxu0 0.0
  %125 = vmatpush1.msra.mxu0 0.0
  %126 = vmatprep.subr.mxu0 0.0
  %127 = vmatpush1.msra.mxu0 0.0
  %128 = vmatprep.subr.mxu0 0.0
  %129 = vmatpush1.msra.mxu0 0.0
  %130 = vmatprep.mubr.f32.mxu0 0.0
  %131 = vmatmul.mubr.f32.gmra.mrb[0].mxu0 %v43
  %v132 = vpop.f32.mrb[0].mxu0
  %v133 = vadd.f32 0.0, %v132
  %v134 = vpop.f32.mrb[0].mxu0
  %v135 = vadd.f32 0.0, %v134
  %136 = vmatprep.mubr.f32.mxu0 0.0
  %137 = vmatmul.mubr.f32.gmra.mrb[0].mxu0 %v46
  %v138 = vpop.f32.mrb[0].mxu0
  %v139 = vadd.f32 0.0, %v138
  %v140 = vpop.f32.mrb[0].mxu0
  %v141 = vadd.f32 0.0, %v140
  %142 = vmatprep.mubr.f32.mxu0 0.0
  %143 = vmatmul.mubr.f32.gmra.mrb[0].mxu0 %v49
  %v144 = vpop.f32.mrb[0].mxu0
  %v145 = vadd.f32 0.0, %v144
  %v146 = vpop.f32.mrb[0].mxu0
  %v147 = vadd.f32 0.0, %v146
  %148 = vmatprep.mubr.f32.mxu0 0.0
  %149 = vmatmul.mubr.f32.gmra.mrb[0].mxu0 %v52
  %v150 = vpop.f32.mrb[0].mxu0
  %v151 = vadd.f32 0.0, %v150
  %v152 = vpop.f32.mrb[0].mxu0
  %v153 = vadd.f32 0.0, %v152
  %154 = vmatprep.mubr.f32.mxu0 0.0
  %155 = vmatmul.mubr.f32.gmra.mrb[0].mxu0 %v55
  %v156 = vpop.f32.mrb[0].mxu0
  %v157 = vadd.f32 0.0, %v156
  %v158 = vpop.f32.mrb[0].mxu0
  %v159 = vadd.f32 0.0, %v158
  %160 = vmatprep.mubr.f32.mxu0 0.0
  %161 = vmatmul.mubr.f32.gmra.mrb[0].mxu0 %v58
  %v162 = vpop.f32.mrb[0].mxu0
  %v163 = vadd.f32 0.0, %v162
  %v164 = vpop.f32.mrb[0].mxu0
  %v165 = vadd.f32 0.0, %v164
  %166 = vmatprep.mubr.f32.mxu0 0.0
  %167 = vmatmul.mubr.f32.gmra.mrb[0].mxu0 %v61
  %v168 = vpop.f32.mrb[0].mxu0
  %v169 = vadd.f32 0.0, %v168
  %v170 = vpop.f32.mrb[0].mxu0
  %v171 = vadd.f32 0.0, %v170
  %172 = vmatprep.mubr.f32.mxu0 0.0
  %173 = vmatmul.mubr.f32.gmra.mrb[0].mxu0 %v64
  %v174 = vpop.f32.mrb[0].mxu0
  %v175 = vadd.f32 0.0, %v174
  %v176 = vpop.f32.mrb[0].mxu0
  %v177 = vadd.f32 0.0, %v176
  %178 = vdwg.mxu0
  %179 = vmatprep.subr.mxu0 %v28
  %180 = vmatpush1.msra.mxu0 %v27
  %181 = vmatprep.subr.mxu0 %v32
  %182 = vmatpush1.msra.mxu0 %v31
  %183 = vmatprep.subr.mxu0 %v36
  %184 = vmatpush1.msra.mxu0 %v35
  %185 = vmatprep.subr.mxu0 %v40
  %186 = vmatpush1.msra.mxu0 %v39
  %187 = vmatprep.subr.mxu0 0.0
  %188 = vmatpush1.msra.mxu0 0.0
  %189 = vmatprep.subr.mxu0 0.0
  %190 = vmatpush1.msra.mxu0 0.0
  %191 = vmatprep.subr.mxu0 0.0
  %192 = vmatpush1.msra.mxu0 0.0
  %193 = vmatprep.subr.mxu0 0.0
  %194 = vmatpush1.msra.mxu0 0.0
  %195 = vmatprep.subr.mxu0 0.0
  %196 = vmatpush1.msra.mxu0 0.0
  %197 = vmatprep.subr.mxu0 0.0
  %198 = vmatpush1.msra.mxu0 0.0
  %199 = vmatprep.subr.mxu0 0.0
  %200 = vmatpush1.msra.mxu0 0.0
  %201 = vmatprep.subr.mxu0 0.0
  %202 = vmatpush1.msra.mxu0 0.0
  %203 = vmatprep.subr.mxu0 0.0
  %204 = vmatpush1.msra.mxu0 0.0
  %205 = vmatprep.subr.mxu0 0.0
  %206 = vmatpush1.msra.mxu0 0.0
  %207 = vmatprep.subr.mxu0 0.0
  %208 = vmatpush1.msra.mxu0 0.0
  %209 = vmatprep.subr.mxu0 0.0
  %210 = vmatpush1.msra.mxu0 0.0
  %211 = vmatprep.subr.mxu0 0.0
  %212 = vmatpush1.msra.mxu0 0.0
  %213 = vmatprep.subr.mxu0 0.0
  %214 = vmatpush1.msra.mxu0 0.0
  %215 = vmatprep.subr.mxu0 0.0
  %216 = vmatpush1.msra.mxu0 0.0
  %217 = vmatprep.subr.mxu0 0.0
  %218 = vmatpush1.msra.mxu0 0.0
  %219 = vmatprep.subr.mxu0 0.0
  %220 = vmatpush1.msra.mxu0 0.0
  %221 = vmatprep.subr.mxu0 0.0
  %222 = vmatpush1.msra.mxu0 0.0
  %223 = vmatprep.subr.mxu0 0.0
  %224 = vmatpush1.msra.mxu0 0.0
  %225 = vmatprep.subr.mxu0 0.0
  %226 = vmatpush1.msra.mxu0 0.0
  %227 = vmatprep.subr.mxu0 0.0
  %228 = vmatpush1.msra.mxu0 0.0
  %229 = vmatprep.subr.mxu0 0.0
  %230 = vmatpush1.msra.mxu0 0.0
  %231 = vmatprep.subr.mxu0 0.0
  %232 = vmatpush1.msra.mxu0 0.0
  %233 = vmatprep.subr.mxu0 0.0
  %234 = vmatpush1.msra.mxu0 0.0
  %235 = vmatprep.subr.mxu0 0.0
  %236 = vmatpush1.msra.mxu0 0.0
  %237 = vmatprep.subr.mxu0 0.0
  %238 = vmatpush1.msra.mxu0 0.0
  %239 = vmatprep.subr.mxu0 0.0
  %240 = vmatpush1.msra.mxu0 0.0
  %241 = vmatprep.subr.mxu0 0.0
  %242 = vmatpush1.msra.mxu0 0.0
  %243 = vmatprep.mubr.f32.mxu0 0.0
  %244 = vmatmul.mubr.f32.gmra.mrb[0].mxu0 %v43
  %v245 = vpop.f32.mrb[0].mxu0
  %v246 = vadd.f32 0.0, %v245
  %v247 = vpop.f32.mrb[0].mxu0
  %v248 = vadd.f32 0.0, %v247
  %249 = vmatprep.mubr.f32.mxu0 0.0
  %250 = vmatmul.mubr.f32.gmra.mrb[0].mxu0 %v46
  %v251 = vpop.f32.mrb[0].mxu0
  %v252 = vadd.f32 0.0, %v251
  %v253 = vpop.f32.mrb[0].mxu0
  %v254 = vadd.f32 0.0, %v253
  %255 = vmatprep.mubr.f32.mxu0 0.0
  %256 = vmatmul.mubr.f32.gmra.mrb[0].mxu0 %v49
  %v257 = vpop.f32.mrb[0].mxu0
  %v258 = vadd.f32 0.0, %v257
  %v259 = vpop.f32.mrb[0].mxu0
  %v260 = vadd.f32 0.0, %v259
  %261 = vmatprep.mubr.f32.mxu0 0.0
  %262 = vmatmul.mubr.f32.gmra.mrb[0].mxu0 %v52
  %v263 = vpop.f32.mrb[0].mxu0
  %v264 = vadd.f32 0.0, %v263
  %v265 = vpop.f32.mrb[0].mxu0
  %v266 = vadd.f32 0.0, %v265
  %267 = vmatprep.mubr.f32.mxu0 0.0
  %268 = vmatmul.mubr.f32.gmra.mrb[0].mxu0 %v55
  %v269 = vpop.f32.mrb[0].mxu0
  %v270 = vadd.f32 0.0, %v269
  %v271 = vpop.f32.mrb[0].mxu0
  %v272 = vadd.f32 0.0, %v271
  %273 = vmatprep.mubr.f32.mxu0 0.0
  %274 = vmatmul.mubr.f32.gmra.mrb[0].mxu0 %v58
  %v275 = vpop.f32.mrb[0].mxu0
  %v276 = vadd.f32 0.0, %v275
  %v277 = vpop.f32.mrb[0].mxu0
  %v278 = vadd.f32 0.0, %v277
  %279 = vmatprep.mubr.f32.mxu0 0.0
  %280 = vmatmul.mubr.f32.gmra.mrb[0].mxu0 %v61
  %v281 = vpop.f32.mrb[0].mxu0
  %v282 = vadd.f32 0.0, %v281
  %v283 = vpop.f32.mrb[0].mxu0
  %v284 = vadd.f32 0.0, %v283
  %285 = vmatprep.mubr.f32.mxu0 0.0
  %286 = vmatmul.mubr.f32.gmra.mrb[0].mxu0 %v64
  %v287 = vpop.f32.mrb[0].mxu0
  %v288 = vadd.f32 0.0, %v287
  %v289 = vpop.f32.mrb[0].mxu0
  %v290 = vadd.f32 0.0, %v289
  %291 = vdwg.mxu0
  %v292 = vadd.f32 %v133, %v135
  %v293 = vadd.f32 %v292, %v246
  %v294 = vadd.f32 %v293, %v248
  %295 = vadd.xlane.f32.xlu0 %v294
  %v296 = vpop.xlane.xlu0 %295
  %v297 = vadd.f32 %v139, %v141
  %v298 = vadd.f32 %v297, %v252
  %v299 = vadd.f32 %v298, %v254
  %300 = vadd.xlane.f32.xlu0 %v299
  %v301 = vpop.xlane.xlu0 %300
  %v302 = vadd.f32 %v145, %v147
  %v303 = vadd.f32 %v302, %v258
  %v304 = vadd.f32 %v303, %v260
  %305 = vadd.xlane.f32.xlu0 %v304
  %v306 = vpop.xlane.xlu0 %305
  %v307 = vadd.f32 %v151, %v153
  %v308 = vadd.f32 %v307, %v264
  %v309 = vadd.f32 %v308, %v266
  %310 = vadd.xlane.f32.xlu0 %v309
  %v311 = vpop.xlane.xlu0 %310
  %v312 = vadd.f32 %v157, %v159
  %v313 = vadd.f32 %v312, %v270
  %v314 = vadd.f32 %v313, %v272
  %315 = vadd.xlane.f32.xlu0 %v314
  %v316 = vpop.xlane.xlu0 %315
  %v317 = vadd.f32 %v163, %v165
  %v318 = vadd.f32 %v317, %v276
  %v319 = vadd.f32 %v318, %v278
  %320 = vadd.xlane.f32.xlu0 %v319
  %v321 = vpop.xlane.xlu0 %320
  %v322 = vadd.f32 %v169, %v171
  %v323 = vadd.f32 %v322, %v282
  %v324 = vadd.f32 %v323, %v284
  %325 = vadd.xlane.f32.xlu0 %v324
  %v326 = vpop.xlane.xlu0 %325
  %v327 = vadd.f32 %v175, %v177
  %v328 = vadd.f32 %v327, %v288
  %v329 = vadd.f32 %v328, %v290
  %330 = vadd.xlane.f32.xlu0 %v329
  %v331 = vpop.xlane.xlu0 %330
  %v332 = vmul.f32 %v296, 0.001953125
  %v333 = vmul.f32 %v301, 0.001953125
  %v334 = vmul.f32 %v306, 0.001953125
  %v335 = vmul.f32 %v311, 0.001953125
  %v336 = vmul.f32 %v316, 0.001953125
  %v337 = vmul.f32 %v321, 0.001953125
  %v338 = vmul.f32 %v326, 0.001953125
  %v339 = vmul.f32 %v331, 0.001953125
  %v340 = vmul.f32 %v133, %v133
  %v341 = vmul.f32 %v135, %v135
  %v342 = vmul.f32 %v246, %v246
  %v343 = vmul.f32 %v248, %v248
  %v344 = vmul.f32 %v139, %v139
  %v345 = vmul.f32 %v141, %v141
  %v346 = vmul.f32 %v252, %v252
  %v347 = vmul.f32 %v254, %v254
  %v348 = vmul.f32 %v145, %v145
  %v349 = vmul.f32 %v147, %v147
  %v350 = vmul.f32 %v258, %v258
  %v351 = vmul.f32 %v260, %v260
  %v352 = vmul.f32 %v151, %v151
  %v353 = vmul.f32 %v153, %v153
  %v354 = vmul.f32 %v264, %v264
  %v355 = vmul.f32 %v266, %v266
  %v356 = vmul.f32 %v157, %v157
  %v357 = vmul.f32 %v159, %v159
  %v358 = vmul.f32 %v270, %v270
  %v359 = vmul.f32 %v272, %v272
  %v360 = vmul.f32 %v163, %v163
  %v361 = vmul.f32 %v165, %v165
  %v362 = vmul.f32 %v276, %v276
  %v363 = vmul.f32 %v278, %v278
  %v364 = vmul.f32 %v169, %v169
  %v365 = vmul.f32 %v171, %v171
  %v366 = vmul.f32 %v282, %v282
  %v367 = vmul.f32 %v284, %v284
  %v368 = vmul.f32 %v175, %v175
  %v369 = vmul.f32 %v177, %v177
  %v370 = vmul.f32 %v288, %v288
  %v371 = vmul.f32 %v290, %v290
  %v372 = vadd.f32 %v340, %v341
  %v373 = vadd.f32 %v372, %v342
  %v374 = vadd.f32 %v373, %v343
  %375 = vadd.xlane.f32.xlu0 %v374
  %v376 = vpop.xlane.xlu0 %375
  %v377 = vadd.f32 %v344, %v345
  %v378 = vadd.f32 %v377, %v346
  %v379 = vadd.f32 %v378, %v347
  %380 = vadd.xlane.f32.xlu0 %v379
  %v381 = vpop.xlane.xlu0 %380
  %v382 = vadd.f32 %v348, %v349
  %v383 = vadd.f32 %v382, %v350
  %v384 = vadd.f32 %v383, %v351
  %385 = vadd.xlane.f32.xlu0 %v384
  %v386 = vpop.xlane.xlu0 %385
  %v387 = vadd.f32 %v352, %v353
  %v388 = vadd.f32 %v387, %v354
  %v389 = vadd.f32 %v388, %v355
  %390 = vadd.xlane.f32.xlu0 %v389
  %v391 = vpop.xlane.xlu0 %390
  %v392 = vadd.f32 %v356, %v357
  %v393 = vadd.f32 %v392, %v358
  %v394 = vadd.f32 %v393, %v359
  %395 = vadd.xlane.f32.xlu0 %v394
  %v396 = vpop.xlane.xlu0 %395
  %v397 = vadd.f32 %v360, %v361
  %v398 = vadd.f32 %v397, %v362
  %v399 = vadd.f32 %v398, %v363
  %400 = vadd.xlane.f32.xlu0 %v399
  %v401 = vpop.xlane.xlu0 %400
  %v402 = vadd.f32 %v364, %v365
  %v403 = vadd.f32 %v402, %v366
  %v404 = vadd.f32 %v403, %v367
  %405 = vadd.xlane.f32.xlu0 %v404
  %v406 = vpop.xlane.xlu0 %405
  %v407 = vadd.f32 %v368, %v369
  %v408 = vadd.f32 %v407, %v370
  %v409 = vadd.f32 %v408, %v371
  %410 = vadd.xlane.f32.xlu0 %v409
  %v411 = vpop.xlane.xlu0 %410
  %v412 = vmul.f32 %v376, 0.001953125
  %v413 = vmul.f32 %v381, 0.001953125
  %v414 = vmul.f32 %v386, 0.001953125
  %v415 = vmul.f32 %v391, 0.001953125
  %v416 = vmul.f32 %v396, 0.001953125
  %v417 = vmul.f32 %v401, 0.001953125
  %v418 = vmul.f32 %v406, 0.001953125
  %v419 = vmul.f32 %v411, 0.001953125
  %v420 = vmul.f32 %v332, %v332
  %v421 = vmul.f32 %v333, %v333
  %v422 = vmul.f32 %v334, %v334
  %v423 = vmul.f32 %v335, %v335
  %v424 = vmul.f32 %v336, %v336
  %v425 = vmul.f32 %v337, %v337
  %v426 = vmul.f32 %v338, %v338
  %v427 = vmul.f32 %v339, %v339
  %v428 = vsub.f32 %v412, %v420
  %v429 = vsub.f32 %v413, %v421
  %v430 = vsub.f32 %v414, %v422
  %v431 = vsub.f32 %v415, %v423
  %v432 = vsub.f32 %v416, %v424
  %v433 = vsub.f32 %v417, %v425
  %v434 = vsub.f32 %v418, %v426
  %v435 = vsub.f32 %v419, %v427
  %v436 = vmax.f32 %v428, 0.0
  %v437 = vmax.f32 %v429, 0.0
  %v438 = vmax.f32 %v430, 0.0
  %v439 = vmax.f32 %v431, 0.0
  %v440 = vmax.f32 %v432, 0.0
  %v441 = vmax.f32 %v433, 0.0
  %v442 = vmax.f32 %v434, 0.0
  %v443 = vmax.f32 %v435, 0.0
  %v444 = vld [vmem:[%s2] sm:$0xff]
  %v445 = vld [vmem:[%s2 + $0x8] sm:$0xff]
  %v446 = vld [vmem:[%s2 + $0x10] sm:$0xff]
  %v447 = vld [vmem:[%s2 + $0x18] sm:$0xff]
  %v448 = vld [vmem:[%s2 + $0x20] sm:$0xff]
  %v449 = vld [vmem:[%s2 + $0x28] sm:$0xff]
  %v450 = vld [vmem:[%s2 + $0x30] sm:$0xff]
  %v451 = vld [vmem:[%s2 + $0x38] sm:$0xff]
  %v452 = vadd.f32 %v436, 1e-05
  %v453 = vadd.f32 %v437, 1e-05
  %v454 = vadd.f32 %v438, 1e-05
  %v455 = vadd.f32 %v439, 1e-05
  %v456 = vadd.f32 %v440, 1e-05
  %v457 = vadd.f32 %v441, 1e-05
  %v458 = vadd.f32 %v442, 1e-05
  %v459 = vadd.f32 %v443, 1e-05
  %v460 = vrsqrt.pop %v452
  %v461 = vrsqrt.pop %v453
  %v462 = vrsqrt.pop %v454
  %v463 = vrsqrt.pop %v455
  %v464 = vrsqrt.pop %v456
  %v465 = vrsqrt.pop %v457
  %v466 = vrsqrt.pop %v458
  %v467 = vrsqrt.pop %v459
  %v468 = vmul.f32 %v444, %v460
  %v469 = vmul.f32 %v445, %v461
  %v470 = vmul.f32 %v446, %v462
  %v471 = vmul.f32 %v447, %v463
  %v472 = vmul.f32 %v448, %v464
  %v473 = vmul.f32 %v449, %v465
  %v474 = vmul.f32 %v450, %v466
  %v475 = vmul.f32 %v451, %v467
  %v476 = vld [vmem:[%s3] sm:$0xff]
  %v477 = vld [vmem:[%s3 + $0x8] sm:$0xff]
  %v478 = vld [vmem:[%s3 + $0x10] sm:$0xff]
  %v479 = vld [vmem:[%s3 + $0x18] sm:$0xff]
  %v480 = vld [vmem:[%s3 + $0x20] sm:$0xff]
  %v481 = vld [vmem:[%s3 + $0x28] sm:$0xff]
  %v482 = vld [vmem:[%s3 + $0x30] sm:$0xff]
  %v483 = vld [vmem:[%s3 + $0x38] sm:$0xff]
  %v484 = vmul.f32 %v332, %v468
  %v485 = vmul.f32 %v333, %v469
  %v486 = vmul.f32 %v334, %v470
  %v487 = vmul.f32 %v335, %v471
  %v488 = vmul.f32 %v336, %v472
  %v489 = vmul.f32 %v337, %v473
  %v490 = vmul.f32 %v338, %v474
  %v491 = vmul.f32 %v339, %v475
  %v492 = vsub.f32 %v476, %v484
  %v493 = vsub.f32 %v477, %v485
  %v494 = vsub.f32 %v478, %v486
  %v495 = vsub.f32 %v479, %v487
  %v496 = vsub.f32 %v480, %v488
  %v497 = vsub.f32 %v481, %v489
  %v498 = vsub.f32 %v482, %v490
  %v499 = vsub.f32 %v483, %v491
  %501 = vset.pattern.permute.xlu0 0
  %502 = vperm.xlu0 %501, %v468
  %v503 = vpop.permute.xlu0 %502
  %506 = vset.pattern.permute.xlu0 0
  %507 = vperm.xlu0 %506, %v469
  %v508 = vpop.permute.xlu0 %507
  %511 = vset.pattern.permute.xlu0 0
  %512 = vperm.xlu0 %511, %v470
  %v513 = vpop.permute.xlu0 %512
  %516 = vset.pattern.permute.xlu0 0
  %517 = vperm.xlu0 %516, %v471
  %v518 = vpop.permute.xlu0 %517
  %521 = vset.pattern.permute.xlu0 0
  %522 = vperm.xlu0 %521, %v472
  %v523 = vpop.permute.xlu0 %522
  %526 = vset.pattern.permute.xlu0 0
  %527 = vperm.xlu0 %526, %v473
  %v528 = vpop.permute.xlu0 %527
  %531 = vset.pattern.permute.xlu0 0
  %532 = vperm.xlu0 %531, %v474
  %v533 = vpop.permute.xlu0 %532
  %536 = vset.pattern.permute.xlu0 0
  %537 = vperm.xlu0 %536, %v475
  %v538 = vpop.permute.xlu0 %537
  %v540 = vmul.f32 %v133, %v503
  %v541 = vmul.f32 %v135, %v503
  %v542 = vmul.f32 %v246, %v503
  %v543 = vmul.f32 %v248, %v503
  %v544 = vmul.f32 %v139, %v508
  %v545 = vmul.f32 %v141, %v508
  %v546 = vmul.f32 %v252, %v508
  %v547 = vmul.f32 %v254, %v508
  %v548 = vmul.f32 %v145, %v513
  %v549 = vmul.f32 %v147, %v513
  %v550 = vmul.f32 %v258, %v513
  %v551 = vmul.f32 %v260, %v513
  %v552 = vmul.f32 %v151, %v518
  %v553 = vmul.f32 %v153, %v518
  %v554 = vmul.f32 %v264, %v518
  %v555 = vmul.f32 %v266, %v518
  %v556 = vmul.f32 %v157, %v523
  %v557 = vmul.f32 %v159, %v523
  %v558 = vmul.f32 %v270, %v523
  %v559 = vmul.f32 %v272, %v523
  %v560 = vmul.f32 %v163, %v528
  %v561 = vmul.f32 %v165, %v528
  %v562 = vmul.f32 %v276, %v528
  %v563 = vmul.f32 %v278, %v528
  %v564 = vmul.f32 %v169, %v533
  %v565 = vmul.f32 %v171, %v533
  %v566 = vmul.f32 %v282, %v533
  %v567 = vmul.f32 %v284, %v533
  %v568 = vmul.f32 %v175, %v538
  %v569 = vmul.f32 %v177, %v538
  %v570 = vmul.f32 %v288, %v538
  %v571 = vmul.f32 %v290, %v538
  %573 = vset.pattern.permute.xlu0 0
  %574 = vperm.xlu0 %573, %v492
  %v575 = vpop.permute.xlu0 %574
  %578 = vset.pattern.permute.xlu0 0
  %579 = vperm.xlu0 %578, %v493
  %v580 = vpop.permute.xlu0 %579
  %583 = vset.pattern.permute.xlu0 0
  %584 = vperm.xlu0 %583, %v494
  %v585 = vpop.permute.xlu0 %584
  %588 = vset.pattern.permute.xlu0 0
  %589 = vperm.xlu0 %588, %v495
  %v590 = vpop.permute.xlu0 %589
  %593 = vset.pattern.permute.xlu0 0
  %594 = vperm.xlu0 %593, %v496
  %v595 = vpop.permute.xlu0 %594
  %598 = vset.pattern.permute.xlu0 0
  %599 = vperm.xlu0 %598, %v497
  %v600 = vpop.permute.xlu0 %599
  %603 = vset.pattern.permute.xlu0 0
  %604 = vperm.xlu0 %603, %v498
  %v605 = vpop.permute.xlu0 %604
  %608 = vset.pattern.permute.xlu0 0
  %609 = vperm.xlu0 %608, %v499
  %v610 = vpop.permute.xlu0 %609
  %v612 = vadd.f32 %v540, %v575
  %v613 = vadd.f32 %v541, %v575
  %v614 = vadd.f32 %v542, %v575
  %v615 = vadd.f32 %v543, %v575
  %v616 = vadd.f32 %v544, %v580
  %v617 = vadd.f32 %v545, %v580
  %v618 = vadd.f32 %v546, %v580
  %v619 = vadd.f32 %v547, %v580
  %v620 = vadd.f32 %v548, %v585
  %v621 = vadd.f32 %v549, %v585
  %v622 = vadd.f32 %v550, %v585
  %v623 = vadd.f32 %v551, %v585
  %v624 = vadd.f32 %v552, %v590
  %v625 = vadd.f32 %v553, %v590
  %v626 = vadd.f32 %v554, %v590
  %v627 = vadd.f32 %v555, %v590
  %v628 = vadd.f32 %v556, %v595
  %v629 = vadd.f32 %v557, %v595
  %v630 = vadd.f32 %v558, %v595
  %v631 = vadd.f32 %v559, %v595
  %v632 = vadd.f32 %v560, %v600
  %v633 = vadd.f32 %v561, %v600
  %v634 = vadd.f32 %v562, %v600
  %v635 = vadd.f32 %v563, %v600
  %v636 = vadd.f32 %v564, %v605
  %v637 = vadd.f32 %v565, %v605
  %v638 = vadd.f32 %v566, %v605
  %v639 = vadd.f32 %v567, %v605
  %v640 = vadd.f32 %v568, %v610
  %v641 = vadd.f32 %v569, %v610
  %v642 = vadd.f32 %v570, %v610
  %v643 = vadd.f32 %v571, %v610
  %644 = vst [vmem:[%s4] sm:$0xff] %v612
  %645 = vst [vmem:[%s4 + $0x8] sm:$0xff] %v613
  %646 = vst [vmem:[%s4 + $0x10] sm:$0xff] %v614
  %647 = vst [vmem:[%s4 + $0x18] sm:$0xff] %v615
  %648 = vst [vmem:[%s4 + $0x20] sm:$0xff] %v616
  %649 = vst [vmem:[%s4 + $0x28] sm:$0xff] %v617
  %650 = vst [vmem:[%s4 + $0x30] sm:$0xff] %v618
  %651 = vst [vmem:[%s4 + $0x38] sm:$0xff] %v619
  %652 = vst [vmem:[%s4 + $0x40] sm:$0xff] %v620
  %653 = vst [vmem:[%s4 + $0x48] sm:$0xff] %v621
  %654 = vst [vmem:[%s4 + $0x50] sm:$0xff] %v622
  %655 = vst [vmem:[%s4 + $0x58] sm:$0xff] %v623
  %656 = vst [vmem:[%s4 + $0x60] sm:$0xff] %v624
  %657 = vst [vmem:[%s4 + $0x68] sm:$0xff] %v625
  %658 = vst [vmem:[%s4 + $0x70] sm:$0xff] %v626
  %659 = vst [vmem:[%s4 + $0x78] sm:$0xff] %v627
  %660 = vst [vmem:[%s4 + $0x80] sm:$0xff] %v628
  %661 = vst [vmem:[%s4 + $0x88] sm:$0xff] %v629
  %662 = vst [vmem:[%s4 + $0x90] sm:$0xff] %v630
  %663 = vst [vmem:[%s4 + $0x98] sm:$0xff] %v631
  %664 = vst [vmem:[%s4 + $0xa0] sm:$0xff] %v632
  %665 = vst [vmem:[%s4 + $0xa8] sm:$0xff] %v633
  %666 = vst [vmem:[%s4 + $0xb0] sm:$0xff] %v634
  %667 = vst [vmem:[%s4 + $0xb8] sm:$0xff] %v635
  %668 = vst [vmem:[%s4 + $0xc0] sm:$0xff] %v636
  %669 = vst [vmem:[%s4 + $0xc8] sm:$0xff] %v637
  %670 = vst [vmem:[%s4 + $0xd0] sm:$0xff] %v638
  %671 = vst [vmem:[%s4 + $0xd8] sm:$0xff] %v639
  %672 = vst [vmem:[%s4 + $0xe0] sm:$0xff] %v640
  %673 = vst [vmem:[%s4 + $0xe8] sm:$0xff] %v641
  %674 = vst [vmem:[%s4 + $0xf0] sm:$0xff] %v642
  %675 = vst [vmem:[%s4 + $0xf8] sm:$0xff] %v643
  // Predicated region
  $region18: #{_lambda_.6} parent=0 // pred_check
    _
  $region19: #{_lambda_.6} parent=0 // pred_check_branch
    %677 = sbr.rel (0) target = $region21
  $region20: #{_lambda_.6} parent=0 // pred_region
    _
  $region21: #{_lambda_.6} parent=0 // pred_fallthru
    _
  // Predicated region
  $region22: #{_lambda_.6} parent=0 // pred_check
    _
  $region23: #{_lambda_.6} parent=0 // pred_check_branch
    %679 = sbr.rel (0) target = $region25
  $region24: #{_lambda_.6} parent=0 // pred_region
    _
  $region25: #{_lambda_.6} parent=0 // pred_fallthru
    _

// kernel: _lambda_.4
$region0: #{_lambda_.4}
  #allocation0 [shape = 'u32[]', space=smem, size = 0x4, offset = 0x4, fixed_abs, tag = 'smem constant byte address 0x4 - core index']
  #allocation1 [shape = 'u32[144,128]{1,0:T(1,128)}', space=vmem, size = 0x12000, scoped, tag = 'internal scratch']
  %s0 = inlined_call_operand.vmem [shape: f32[16,2048], index: 0, kind: input, shape index: {}]
  %s1 = inlined_call_operand.vmem [shape: f32[16,16], index: 1, kind: input, shape index: {}]
  %s2 = inlined_call_operand.vmem [shape: f32[16,1], index: 2, kind: input, shape index: {}]
  %s3 = inlined_call_operand.vmem [shape: f32[16,1], index: 3, kind: input, shape index: {}]
  %s4 = inlined_call_operand.vmem [shape: f32[16,2048], index: 4, kind: output, shape index: {}]
  %s5 = sld [smem:[#allocation0]]
  $region26: #{_lambda_.4} parent=0
    _
  %s7 = ssub.s32 1, %s5
  %s8 = scalar_select 0, %s7, %s5
  // Predicated region
  $region2: #{_lambda_.4} parent=0 // pred_check
    _
  $region3: #{_lambda_.4} parent=0 // pred_check_branch
    %10 = sbr.rel (0) target = $region5
  $region4: #{_lambda_.4} parent=0 // pred_region
    _
  $region5: #{_lambda_.4} parent=0 // pred_fallthru
    _
  // Predicated region
  $region6: #{_lambda_.4} parent=0 // pred_check
    _
  $region7: #{_lambda_.4} parent=0 // pred_check_branch
    %12 = sbr.rel (0) target = $region9
  $region8: #{_lambda_.4} parent=0 // pred_region
    _
  $region9: #{_lambda_.4} parent=0 // pred_fallthru
    _
  // Predicated region
  $region10: #{_lambda_.4} parent=0 // pred_check
    _
  $region11: #{_lambda_.4} parent=0 // pred_check_branch
    %14 = sbr.rel (0) target = $region13
  $region12: #{_lambda_.4} parent=0 // pred_region
    _
  $region13: #{_lambda_.4} parent=0 // pred_fallthru
    _
  // Predicated region
  $region14: #{_lambda_.4} parent=0 // pred_check
    _
  $region15: #{_lambda_.4} parent=0 // pred_check_branch
    %16 = sbr.rel (0) target = $region17
  $region16: #{_lambda_.4} parent=0 // pred_region
    _
  $region17: #{_lambda_.4} parent=0 // pred_fallthru
    _
  %v17 = vld [vmem:[%s1] sm:$0xff]
  %v18 = vld [vmem:[%s1 + $0x8] sm:$0xff]
  %v19 = vld [vmem:[%s0] sm:$0xff]
  %v20 = vld [vmem:[%s0 + $0x8] sm:$0xff]
  %v21 = vld [vmem:[%s0 + $0x10] sm:$0xff]
  %v22 = vld [vmem:[%s0 + $0x18] sm:$0xff]
  %v23 = vld [vmem:[%s0 + $0x20] sm:$0xff]
  %v24 = vld [vmem:[%s0 + $0x28] sm:$0xff]
  %v25 = vld [vmem:[%s0 + $0x30] sm:$0xff]
  %v26 = vld [vmem:[%s0 + $0x38] sm:$0xff]
  %v27 = vld [vmem:[%s0 + $0x40] sm:$0xff]
  %v28 = vld [vmem:[%s0 + $0x48] sm:$0xff]
  %v29 = vld [vmem:[%s0 + $0x50] sm:$0xff]
  %v30 = vld [vmem:[%s0 + $0x58] sm:$0xff]
  %v31 = vld [vmem:[%s0 + $0x60] sm:$0xff]
  %v32 = vld [vmem:[%s0 + $0x68] sm:$0xff]
  %v33 = vld [vmem:[%s0 + $0x70] sm:$0xff]
  %v34 = vld [vmem:[%s0 + $0x78] sm:$0xff]
  %v35 = vld [vmem:[%s0 + $0x80] sm:$0xff]
  %v36 = vld [vmem:[%s0 + $0x88] sm:$0xff]
  %v37 = vld [vmem:[%s0 + $0x90] sm:$0xff]
  %v38 = vld [vmem:[%s0 + $0x98] sm:$0xff]
  %v39 = vld [vmem:[%s0 + $0xa0] sm:$0xff]
  %v40 = vld [vmem:[%s0 + $0xa8] sm:$0xff]
  %v41 = vld [vmem:[%s0 + $0xb0] sm:$0xff]
  %v42 = vld [vmem:[%s0 + $0xb8] sm:$0xff]
  %v43 = vld [vmem:[%s0 + $0xc0] sm:$0xff]
  %v44 = vld [vmem:[%s0 + $0xc8] sm:$0xff]
  %v45 = vld [vmem:[%s0 + $0xd0] sm:$0xff]
  %v46 = vld [vmem:[%s0 + $0xd8] sm:$0xff]
  %v47 = vld [vmem:[%s0 + $0xe0] sm:$0xff]
  %v48 = vld [vmem:[%s0 + $0xe8] sm:$0xff]
  %v49 = vld [vmem:[%s0 + $0xf0] sm:$0xff]
  %v50 = vld [vmem:[%s0 + $0xf8] sm:$0xff]
  %vm51 = vcmask 130048
  %v53 = vsel %vm51, %v17, 0
  %v56 = vsel %vm51, %v18, 0
  %58 = vmatprep.subr.mxu0 %v20
  %59 = vmatpush1.msra.mxu0 %v19
  %60 = vmatprep.subr.mxu0 %v36
  %61 = vmatpush1.msra.mxu0 %v35
  %62 = vmatprep.subr.mxu0 0.0
  %63 = vmatpush1.msra.mxu0 0.0
  %64 = vmatprep.subr.mxu0 0.0
  %65 = vmatpush1.msra.mxu0 0.0
  %66 = vmatprep.subr.mxu0 0.0
  %67 = vmatpush1.msra.mxu0 0.0
  %68 = vmatprep.subr.mxu0 0.0
  %69 = vmatpush1.msra.mxu0 0.0
  %70 = vmatprep.subr.mxu0 0.0
  %71 = vmatpush1.msra.mxu0 0.0
  %72 = vmatprep.subr.mxu0 0.0
  %73 = vmatpush1.msra.mxu0 0.0
  %74 = vmatprep.subr.mxu0 0.0
  %75 = vmatpush1.msra.mxu0 0.0
  %76 = vmatprep.subr.mxu0 0.0
  %77 = vmatpush1.msra.mxu0 0.0
  %78 = vmatprep.subr.mxu0 0.0
  %79 = vmatpush1.msra.mxu0 0.0
  %80 = vmatprep.subr.mxu0 0.0
  %81 = vmatpush1.msra.mxu0 0.0
  %82 = vmatprep.subr.mxu0 0.0
  %83 = vmatpush1.msra.mxu0 0.0
  %84 = vmatprep.subr.mxu0 0.0
  %85 = vmatpush1.msra.mxu0 0.0
  %86 = vmatprep.subr.mxu0 0.0
  %87 = vmatpush1.msra.mxu0 0.0
  %88 = vmatprep.subr.mxu0 0.0
  %89 = vmatpush1.msra.mxu0 0.0
  %90 = vmatprep.subr.mxu0 0.0
  %91 = vmatpush1.msra.mxu0 0.0
  %92 = vmatprep.subr.mxu0 0.0
  %93 = vmatpush1.msra.mxu0 0.0
  %94 = vmatprep.subr.mxu0 0.0
  %95 = vmatpush1.msra.mxu0 0.0
  %96 = vmatprep.subr.mxu0 0.0
  %97 = vmatpush1.msra.mxu0 0.0
  %98 = vmatprep.subr.mxu0 0.0
  %99 = vmatpush1.msra.mxu0 0.0
  %100 = vmatprep.subr.mxu0 0.0
  %101 = vmatpush1.msra.mxu0 0.0
  %102 = vmatprep.subr.mxu0 0.0
  %103 = vmatpush1.msra.mxu0 0.0
  %104 = vmatprep.subr.mxu0 0.0
  %105 = vmatpush1.msra.mxu0 0.0
  %106 = vmatprep.subr.mxu0 0.0
  %107 = vmatpush1.msra.mxu0 0.0
  %108 = vmatprep.subr.mxu0 0.0
  %109 = vmatpush1.msra.mxu0 0.0
  %110 = vmatprep.subr.mxu0 0.0
  %111 = vmatpush1.msra.mxu0 0.0
  %112 = vmatprep.subr.mxu0 0.0
  %113 = vmatpush1.msra.mxu0 0.0
  %114 = vmatprep.subr.mxu0 0.0
  %115 = vmatpush1.msra.mxu0 0.0
  %116 = vmatprep.subr.mxu0 0.0
  %117 = vmatpush1.msra.mxu0 0.0
  %118 = vmatprep.subr.mxu0 0.0
  %119 = vmatpush1.msra.mxu0 0.0
  %120 = vmatprep.subr.mxu0 0.0
  %121 = vmatpush1.msra.mxu0 0.0
  %122 = vmatprep.mubr.f32.mxu0 0.0
  %123 = vmatmul.mubr.f32.gmra.mrb[0].mxu0 %v53
  %v124 = vpop.f32.mrb[0].mxu0
  %v125 = vadd.f32 0.0, %v124
  %v126 = vpop.f32.mrb[0].mxu0
  %v127 = vadd.f32 0.0, %v126
  %128 = vmatprep.mubr.f32.mxu0 0.0
  %129 = vmatmul.mubr.f32.gmra.mrb[0].mxu0 %v56
  %v130 = vpop.f32.mrb[0].mxu0
  %v131 = vadd.f32 0.0, %v130
  %v132 = vpop.f32.mrb[0].mxu0
  %v133 = vadd.f32 0.0, %v132
  %134 = vdwg.mxu0
  %135 = vmatprep.subr.mxu0 %v22
  %136 = vmatpush1.msra.mxu0 %v21
  %137 = vmatprep.subr.mxu0 %v38
  %138 = vmatpush1.msra.mxu0 %v37
  %139 = vmatprep.subr.mxu0 0.0
  %140 = vmatpush1.msra.mxu0 0.0
  %141 = vmatprep.subr.mxu0 0.0
  %142 = vmatpush1.msra.mxu0 0.0
  %143 = vmatprep.subr.mxu0 0.0
  %144 = vmatpush1.msra.mxu0 0.0
  %145 = vmatprep.subr.mxu0 0.0
  %146 = vmatpush1.msra.mxu0 0.0
  %147 = vmatprep.subr.mxu0 0.0
  %148 = vmatpush1.msra.mxu0 0.0
  %149 = vmatprep.subr.mxu0 0.0
  %150 = vmatpush1.msra.mxu0 0.0
  %151 = vmatprep.subr.mxu0 0.0
  %152 = vmatpush1.msra.mxu0 0.0
  %153 = vmatprep.subr.mxu0 0.0
  %154 = vmatpush1.msra.mxu0 0.0
  %155 = vmatprep.subr.mxu0 0.0
  %156 = vmatpush1.msra.mxu0 0.0
  %157 = vmatprep.subr.mxu0 0.0
  %158 = vmatpush1.msra.mxu0 0.0
  %159 = vmatprep.subr.mxu0 0.0
  %160 = vmatpush1.msra.mxu0 0.0
  %161 = vmatprep.subr.mxu0 0.0
  %162 = vmatpush1.msra.mxu0 0.0
  %163 = vmatprep.subr.mxu0 0.0
  %164 = vmatpush1.msra.mxu0 0.0
  %165 = vmatprep.subr.mxu0 0.0
  %166 = vmatpush1.msra.mxu0 0.0
  %167 = vmatprep.subr.mxu0 0.0
  %168 = vmatpush1.msra.mxu0 0.0
  %169 = vmatprep.subr.mxu0 0.0
  %170 = vmatpush1.msra.mxu0 0.0
  %171 = vmatprep.subr.mxu0 0.0
  %172 = vmatpush1.msra.mxu0 0.0
  %173 = vmatprep.subr.mxu0 0.0
  %174 = vmatpush1.msra.mxu0 0.0
  %175 = vmatprep.subr.mxu0 0.0
  %176 = vmatpush1.msra.mxu0 0.0
  %177 = vmatprep.subr.mxu0 0.0
  %178 = vmatpush1.msra.mxu0 0.0
  %179 = vmatprep.subr.mxu0 0.0
  %180 = vmatpush1.msra.mxu0 0.0
  %181 = vmatprep.subr.mxu0 0.0
  %182 = vmatpush1.msra.mxu0 0.0
  %183 = vmatprep.subr.mxu0 0.0
  %184 = vmatpush1.msra.mxu0 0.0
  %185 = vmatprep.subr.mxu0 0.0
  %186 = vmatpush1.msra.mxu0 0.0
  %187 = vmatprep.subr.mxu0 0.0
  %188 = vmatpush1.msra.mxu0 0.0
  %189 = vmatprep.subr.mxu0 0.0
  %190 = vmatpush1.msra.mxu0 0.0
  %191 = vmatprep.subr.mxu0 0.0
  %192 = vmatpush1.msra.mxu0 0.0
  %193 = vmatprep.subr.mxu0 0.0
  %194 = vmatpush1.msra.mxu0 0.0
  %195 = vmatprep.subr.mxu0 0.0
  %196 = vmatpush1.msra.mxu0 0.0
  %197 = vmatprep.subr.mxu0 0.0
  %198 = vmatpush1.msra.mxu0 0.0
  %199 = vmatprep.mubr.f32.mxu0 0.0
  %200 = vmatmul.mubr.f32.gmra.mrb[0].mxu0 %v53
  %v201 = vpop.f32.mrb[0].mxu0
  %v202 = vadd.f32 0.0, %v201
  %v203 = vpop.f32.mrb[0].mxu0
  %v204 = vadd.f32 0.0, %v203
  %205 = vmatprep.mubr.f32.mxu0 0.0
  %206 = vmatmul.mubr.f32.gmra.mrb[0].mxu0 %v56
  %v207 = vpop.f32.mrb[0].mxu0
  %v208 = vadd.f32 0.0, %v207
  %v209 = vpop.f32.mrb[0].mxu0
  %v210 = vadd.f32 0.0, %v209
  %211 = vdwg.mxu0
  %212 = vmatprep.subr.mxu0 %v24
  %213 = vmatpush1.msra.mxu0 %v23
  %214 = vmatprep.subr.mxu0 %v40
  %215 = vmatpush1.msra.mxu0 %v39
  %216 = vmatprep.subr.mxu0 0.0
  %217 = vmatpush1.msra.mxu0 0.0
  %218 = vmatprep.subr.mxu0 0.0
  %219 = vmatpush1.msra.mxu0 0.0
  %220 = vmatprep.subr.mxu0 0.0
  %221 = vmatpush1.msra.mxu0 0.0
  %222 = vmatprep.subr.mxu0 0.0
  %223 = vmatpush1.msra.mxu0 0.0
  %224 = vmatprep.subr.mxu0 0.0
  %225 = vmatpush1.msra.mxu0 0.0
  %226 = vmatprep.subr.mxu0 0.0
  %227 = vmatpush1.msra.mxu0 0.0
  %228 = vmatprep.subr.mxu0 0.0
  %229 = vmatpush1.msra.mxu0 0.0
  %230 = vmatprep.subr.mxu0 0.0
  %231 = vmatpush1.msra.mxu0 0.0
  %232 = vmatprep.subr.mxu0 0.0
  %233 = vmatpush1.msra.mxu0 0.0
  %234 = vmatprep.subr.mxu0 0.0
  %235 = vmatpush1.msra.mxu0 0.0
  %236 = vmatprep.subr.mxu0 0.0
  %237 = vmatpush1.msra.mxu0 0.0
  %238 = vmatprep.subr.mxu0 0.0
  %239 = vmatpush1.msra.mxu0 0.0
  %240 = vmatprep.subr.mxu0 0.0
  %241 = vmatpush1.msra.mxu0 0.0
  %242 = vmatprep.subr.mxu0 0.0
  %243 = vmatpush1.msra.mxu0 0.0
  %244 = vmatprep.subr.mxu0 0.0
  %245 = vmatpush1.msra.mxu0 0.0
  %246 = vmatprep.subr.mxu0 0.0
  %247 = vmatpush1.msra.mxu0 0.0
  %248 = vmatprep.subr.mxu0 0.0
  %249 = vmatpush1.msra.mxu0 0.0
  %250 = vmatprep.subr.mxu0 0.0
  %251 = vmatpush1.msra.mxu0 0.0
  %252 = vmatprep.subr.mxu0 0.0
  %253 = vmatpush1.msra.mxu0 0.0
  %254 = vmatprep.subr.mxu0 0.0
  %255 = vmatpush1.msra.mxu0 0.0
  %256 = vmatprep.subr.mxu0 0.0
  %257 = vmatpush1.msra.mxu0 0.0
  %258 = vmatprep.subr.mxu0 0.0
  %259 = vmatpush1.msra.mxu0 0.0
  %260 = vmatprep.subr.mxu0 0.0
  %261 = vmatpush1.msra.mxu0 0.0
  %262 = vmatprep.subr.mxu0 0.0
  %263 = vmatpush1.msra.mxu0 0.0
  %264 = vmatprep.subr.mxu0 0.0
  %265 = vmatpush1.msra.mxu0 0.0
  %266 = vmatprep.subr.mxu0 0.0
  %267 = vmatpush1.msra.mxu0 0.0
  %268 = vmatprep.subr.mxu0 0.0
  %269 = vmatpush1.msra.mxu0 0.0
  %270 = vmatprep.subr.mxu0 0.0
  %271 = vmatpush1.msra.mxu0 0.0
  %272 = vmatprep.subr.mxu0 0.0
  %273 = vmatpush1.msra.mxu0 0.0
  %274 = vmatprep.subr.mxu0 0.0
  %275 = vmatpush1.msra.mxu0 0.0
  %276 = vmatprep.mubr.f32.mxu0 0.0
  %277 = vmatmul.mubr.f32.gmra.mrb[0].mxu0 %v53
  %v278 = vpop.f32.mrb[0].mxu0
  %v279 = vadd.f32 0.0, %v278
  %v280 = vpop.f32.mrb[0].mxu0
  %v281 = vadd.f32 0.0, %v280
  %282 = vmatprep.mubr.f32.mxu0 0.0
  %283 = vmatmul.mubr.f32.gmra.mrb[0].mxu0 %v56
  %v284 = vpop.f32.mrb[0].mxu0
  %v285 = vadd.f32 0.0, %v284
  %v286 = vpop.f32.mrb[0].mxu0
  %v287 = vadd.f32 0.0, %v286
  %288 = vdwg.mxu0
  %289 = vmatprep.subr.mxu0 %v26
  %290 = vmatpush1.msra.mxu0 %v25
  %291 = vmatprep.subr.mxu0 %v42
  %292 = vmatpush1.msra.mxu0 %v41
  %293 = vmatprep.subr.mxu0 0.0
  %294 = vmatpush1.msra.mxu0 0.0
  %295 = vmatprep.subr.mxu0 0.0
  %296 = vmatpush1.msra.mxu0 0.0
  %297 = vmatprep.subr.mxu0 0.0
  %298 = vmatpush1.msra.mxu0 0.0
  %299 = vmatprep.subr.mxu0 0.0
  %300 = vmatpush1.msra.mxu0 0.0
  %301 = vmatprep.subr.mxu0 0.0
  %302 = vmatpush1.msra.mxu0 0.0
  %303 = vmatprep.subr.mxu0 0.0
  %304 = vmatpush1.msra.mxu0 0.0
  %305 = vmatprep.subr.mxu0 0.0
  %306 = vmatpush1.msra.mxu0 0.0
  %307 = vmatprep.subr.mxu0 0.0
  %308 = vmatpush1.msra.mxu0 0.0
  %309 = vmatprep.subr.mxu0 0.0
  %310 = vmatpush1.msra.mxu0 0.0
  %311 = vmatprep.subr.mxu0 0.0
  %312 = vmatpush1.msra.mxu0 0.0
  %313 = vmatprep.subr.mxu0 0.0
  %314 = vmatpush1.msra.mxu0 0.0
  %315 = vmatprep.subr.mxu0 0.0
  %316 = vmatpush1.msra.mxu0 0.0
  %317 = vmatprep.subr.mxu0 0.0
  %318 = vmatpush1.msra.mxu0 0.0
  %319 = vmatprep.subr.mxu0 0.0
  %320 = vmatpush1.msra.mxu0 0.0
  %321 = vmatprep.subr.mxu0 0.0
  %322 = vmatpush1.msra.mxu0 0.0
  %323 = vmatprep.subr.mxu0 0.0
  %324 = vmatpush1.msra.mxu0 0.0
  %325 = vmatprep.subr.mxu0 0.0
  %326 = vmatpush1.msra.mxu0 0.0
  %327 = vmatprep.subr.mxu0 0.0
  %328 = vmatpush1.msra.mxu0 0.0
  %329 = vmatprep.subr.mxu0 0.0
  %330 = vmatpush1.msra.mxu0 0.0
  %331 = vmatprep.subr.mxu0 0.0
  %332 = vmatpush1.msra.mxu0 0.0
  %333 = vmatprep.subr.mxu0 0.0
  %334 = vmatpush1.msra.mxu0 0.0
  %335 = vmatprep.subr.mxu0 0.0
  %336 = vmatpush1.msra.mxu0 0.0
  %337 = vmatprep.subr.mxu0 0.0
  %338 = vmatpush1.msra.mxu0 0.0
  %339 = vmatprep.subr.mxu0 0.0
  %340 = vmatpush1.msra.mxu0 0.0
  %341 = vmatprep.subr.mxu0 0.0
  %342 = vmatpush1.msra.mxu0 0.0
  %343 = vmatprep.subr.mxu0 0.0
  %344 = vmatpush1.msra.mxu0 0.0
  %345 = vmatprep.subr.mxu0 0.0
  %346 = vmatpush1.msra.mxu0 0.0
  %347 = vmatprep.subr.mxu0 0.0
  %348 = vmatpush1.msra.mxu0 0.0
  %349 = vmatprep.subr.mxu0 0.0
  %350 = vmatpush1.msra.mxu0 0.0
  %351 = vmatprep.subr.mxu0 0.0
  %352 = vmatpush1.msra.mxu0 0.0
  %353 = vmatprep.mubr.f32.mxu0 0.0
  %354 = vmatmul.mubr.f32.gmra.mrb[0].mxu0 %v53
  %v355 = vpop.f32.mrb[0].mxu0
  %v356 = vadd.f32 0.0, %v355
  %v357 = vpop.f32.mrb[0].mxu0
  %v358 = vadd.f32 0.0, %v357
  %359 = vmatprep.mubr.f32.mxu0 0.0
  %360 = vmatmul.mubr.f32.gmra.mrb[0].mxu0 %v56
  %v361 = vpop.f32.mrb[0].mxu0
  %v362 = vadd.f32 0.0, %v361
  %v363 = vpop.f32.mrb[0].mxu0
  %v364 = vadd.f32 0.0, %v363
  %365 = vdwg.mxu0
  %366 = vmatprep.subr.mxu0 %v28
  %367 = vmatpush1.msra.mxu0 %v27
  %368 = vmatprep.subr.mxu0 %v44
  %369 = vmatpush1.msra.mxu0 %v43
  %370 = vmatprep.subr.mxu0 0.0
  %371 = vmatpush1.msra.mxu0 0.0
  %372 = vmatprep.subr.mxu0 0.0
  %373 = vmatpush1.msra.mxu0 0.0
  %374 = vmatprep.subr.mxu0 0.0
  %375 = vmatpush1.msra.mxu0 0.0
  %376 = vmatprep.subr.mxu0 0.0
  %377 = vmatpush1.msra.mxu0 0.0
  %378 = vmatprep.subr.mxu0 0.0
  %379 = vmatpush1.msra.mxu0 0.0
  %380 = vmatprep.subr.mxu0 0.0
  %381 = vmatpush1.msra.mxu0 0.0
  %382 = vmatprep.subr.mxu0 0.0
  %383 = vmatpush1.msra.mxu0 0.0
  %384 = vmatprep.subr.mxu0 0.0
  %385 = vmatpush1.msra.mxu0 0.0
  %386 = vmatprep.subr.mxu0 0.0
  %387 = vmatpush1.msra.mxu0 0.0
  %388 = vmatprep.subr.mxu0 0.0
  %389 = vmatpush1.msra.mxu0 0.0
  %390 = vmatprep.subr.mxu0 0.0
  %391 = vmatpush1.msra.mxu0 0.0
  %392 = vmatprep.subr.mxu0 0.0
  %393 = vmatpush1.msra.mxu0 0.0
  %394 = vmatprep.subr.mxu0 0.0
  %395 = vmatpush1.msra.mxu0 0.0
  %396 = vmatprep.subr.mxu0 0.0
  %397 = vmatpush1.msra.mxu0 0.0
  %398 = vmatprep.subr.mxu0 0.0
  %399 = vmatpush1.msra.mxu0 0.0
  %400 = vmatprep.subr.mxu0 0.0
  %401 = vmatpush1.msra.mxu0 0.0
  %402 = vmatprep.subr.mxu0 0.0
  %403 = vmatpush1.msra.mxu0 0.0
  %404 = vmatprep.subr.mxu0 0.0
  %405 = vmatpush1.msra.mxu0 0.0
  %406 = vmatprep.subr.mxu0 0.0
  %407 = vmatpush1.msra.mxu0 0.0
  %408 = vmatprep.subr.mxu0 0.0
  %409 = vmatpush1.msra.mxu0 0.0
  %410 = vmatprep.subr.mxu0 0.0
  %411 = vmatpush1.msra.mxu0 0.0
  %412 = vmatprep.subr.mxu0 0.0
  %413 = vmatpush1.msra.mxu0 0.0
  %414 = vmatprep.subr.mxu0 0.0
  %415 = vmatpush1.msra.mxu0 0.0
  %416 = vmatprep.subr.mxu0 0.0
  %417 = vmatpush1.msra.mxu0 0.0
  %418 = vmatprep.subr.mxu0 0.0
  %419 = vmatpush1.msra.mxu0 0.0
  %420 = vmatprep.subr.mxu0 0.0
  %421 = vmatpush1.msra.mxu0 0.0
  %422 = vmatprep.subr.mxu0 0.0
  %423 = vmatpush1.msra.mxu0 0.0
  %424 = vmatprep.subr.mxu0 0.0
  %425 = vmatpush1.msra.mxu0 0.0
  %426 = vmatprep.subr.mxu0 0.0
  %427 = vmatpush1.msra.mxu0 0.0
  %428 = vmatprep.subr.mxu0 0.0
  %429 = vmatpush1.msra.mxu0 0.0
  %430 = vmatprep.mubr.f32.mxu0 0.0
  %431 = vmatmul.mubr.f32.gmra.mrb[0].mxu0 %v53
  %v432 = vpop.f32.mrb[0].mxu0
  %v433 = vadd.f32 0.0, %v432
  %v434 = vpop.f32.mrb[0].mxu0
  %v435 = vadd.f32 0.0, %v434
  %436 = vmatprep.mubr.f32.mxu0 0.0
  %437 = vmatmul.mubr.f32.gmra.mrb[0].mxu0 %v56
  %v438 = vpop.f32.mrb[0].mxu0
  %v439 = vadd.f32 0.0, %v438
  %v440 = vpop.f32.mrb[0].mxu0
  %v441 = vadd.f32 0.0, %v440
  %442 = vdwg.mxu0
  %443 = vmatprep.subr.mxu0 %v30
  %444 = vmatpush1.msra.mxu0 %v29
  %445 = vmatprep.subr.mxu0 %v46
  %446 = vmatpush1.msra.mxu0 %v45
  %447 = vmatprep.subr.mxu0 0.0
  %448 = vmatpush1.msra.mxu0 0.0
  %449 = vmatprep.subr.mxu0 0.0
  %450 = vmatpush1.msra.mxu0 0.0
  %451 = vmatprep.subr.mxu0 0.0
  %452 = vmatpush1.msra.mxu0 0.0
  %453 = vmatprep.subr.mxu0 0.0
  %454 = vmatpush1.msra.mxu0 0.0
  %455 = vmatprep.subr.mxu0 0.0
  %456 = vmatpush1.msra.mxu0 0.0
  %457 = vmatprep.subr.mxu0 0.0
  %458 = vmatpush1.msra.mxu0 0.0
  %459 = vmatprep.subr.mxu0 0.0
  %460 = vmatpush1.msra.mxu0 0.0
  %461 = vmatprep.subr.mxu0 0.0
  %462 = vmatpush1.msra.mxu0 0.0
  %463 = vmatprep.subr.mxu0 0.0
  %464 = vmatpush1.msra.mxu0 0.0
  %465 = vmatprep.subr.mxu0 0.0
  %466 = vmatpush1.msra.mxu0 0.0
  %467 = vmatprep.subr.mxu0 0.0
  %468 = vmatpush1.msra.mxu0 0.0
  %469 = vmatprep.subr.mxu0 0.0
  %470 = vmatpush1.msra.mxu0 0.0
  %471 = vmatprep.subr.mxu0 0.0
  %472 = vmatpush1.msra.mxu0 0.0
  %473 = vmatprep.subr.mxu0 0.0
  %474 = vmatpush1.msra.mxu0 0.0
  %475 = vmatprep.subr.mxu0 0.0
  %476 = vmatpush1.msra.mxu0 0.0
  %477 = vmatprep.subr.mxu0 0.0
  %478 = vmatpush1.msra.mxu0 0.0
  %479 = vmatprep.subr.mxu0 0.0
  %480 = vmatpush1.msra.mxu0 0.0
  %481 = vmatprep.subr.mxu0 0.0
  %482 = vmatpush1.msra.mxu0 0.0
  %483 = vmatprep.subr.mxu0 0.0
  %484 = vmatpush1.msra.mxu0 0.0
  %485 = vmatprep.subr.mxu0 0.0
  %486 = vmatpush1.msra.mxu0 0.0
  %487 = vmatprep.subr.mxu0 0.0
  %488 = vmatpush1.msra.mxu0 0.0
  %489 = vmatprep.subr.mxu0 0.0
  %490 = vmatpush1.msra.mxu0 0.0
  %491 = vmatprep.subr.mxu0 0.0
  %492 = vmatpush1.msra.mxu0 0.0
  %493 = vmatprep.subr.mxu0 0.0
  %494 = vmatpush1.msra.mxu0 0.0
  %495 = vmatprep.subr.mxu0 0.0
  %496 = vmatpush1.msra.mxu0 0.0
  %497 = vmatprep.subr.mxu0 0.0
  %498 = vmatpush1.msra.mxu0 0.0
  %499 = vmatprep.subr.mxu0 0.0
  %500 = vmatpush1.msra.mxu0 0.0
  %501 = vmatprep.subr.mxu0 0.0
  %502 = vmatpush1.msra.mxu0 0.0
  %503 = vmatprep.subr.mxu0 0.0
  %504 = vmatpush1.msra.mxu0 0.0
  %505 = vmatprep.subr.mxu0 0.0
  %506 = vmatpush1.msra.mxu0 0.0
  %507 = vmatprep.mubr.f32.mxu0 0.0
  %508 = vmatmul.mubr.f32.gmra.mrb[0].mxu0 %v53
  %v509 = vpop.f32.mrb[0].mxu0
  %v510 = vadd.f32 0.0, %v509
  %v511 = vpop.f32.mrb[0].mxu0
  %v512 = vadd.f32 0.0, %v511
  %513 = vmatprep.mubr.f32.mxu0 0.0
  %514 = vmatmul.mubr.f32.gmra.mrb[0].mxu0 %v56
  %v515 = vpop.f32.mrb[0].mxu0
  %v516 = vadd.f32 0.0, %v515
  %v517 = vpop.f32.mrb[0].mxu0
  %v518 = vadd.f32 0.0, %v517
  %519 = vdwg.mxu0
  %520 = vmatprep.subr.mxu0 %v32
  %521 = vmatpush1.msra.mxu0 %v31
  %522 = vmatprep.subr.mxu0 %v48
  %523 = vmatpush1.msra.mxu0 %v47
  %524 = vmatprep.subr.mxu0 0.0
  %525 = vmatpush1.msra.mxu0 0.0
  %526 = vmatprep.subr.mxu0 0.0
  %527 = vmatpush1.msra.mxu0 0.0
  %528 = vmatprep.subr.mxu0 0.0
  %529 = vmatpush1.msra.mxu0 0.0
  %530 = vmatprep.subr.mxu0 0.0
  %531 = vmatpush1.msra.mxu0 0.0
  %532 = vmatprep.subr.mxu0 0.0
  %533 = vmatpush1.msra.mxu0 0.0
  %534 = vmatprep.subr.mxu0 0.0
  %535 = vmatpush1.msra.mxu0 0.0
  %536 = vmatprep.subr.mxu0 0.0
  %537 = vmatpush1.msra.mxu0 0.0
  %538 = vmatprep.subr.mxu0 0.0
  %539 = vmatpush1.msra.mxu0 0.0
  %540 = vmatprep.subr.mxu0 0.0
  %541 = vmatpush1.msra.mxu0 0.0
  %542 = vmatprep.subr.mxu0 0.0
  %543 = vmatpush1.msra.mxu0 0.0
  %544 = vmatprep.subr.mxu0 0.0
  %545 = vmatpush1.msra.mxu0 0.0
  %546 = vmatprep.subr.mxu0 0.0
  %547 = vmatpush1.msra.mxu0 0.0
  %548 = vmatprep.subr.mxu0 0.0
  %549 = vmatpush1.msra.mxu0 0.0
  %550 = vmatprep.subr.mxu0 0.0
  %551 = vmatpush1.msra.mxu0 0.0
  %552 = vmatprep.subr.mxu0 0.0
  %553 = vmatpush1.msra.mxu0 0.0
  %554 = vmatprep.subr.mxu0 0.0
  %555 = vmatpush1.msra.mxu0 0.0
  %556 = vmatprep.subr.mxu0 0.0
  %557 = vmatpush1.msra.mxu0 0.0
  %558 = vmatprep.subr.mxu0 0.0
  %559 = vmatpush1.msra.mxu0 0.0
  %560 = vmatprep.subr.mxu0 0.0
  %561 = vmatpush1.msra.mxu0 0.0
  %562 = vmatprep.subr.mxu0 0.0
  %563 = vmatpush1.msra.mxu0 0.0
  %564 = vmatprep.subr.mxu0 0.0
  %565 = vmatpush1.msra.mxu0 0.0
  %566 = vmatprep.subr.mxu0 0.0
  %567 = vmatpush1.msra.mxu0 0.0
  %568 = vmatprep.subr.mxu0 0.0
  %569 = vmatpush1.msra.mxu0 0.0
  %570 = vmatprep.subr.mxu0 0.0
  %571 = vmatpush1.msra.mxu0 0.0
  %572 = vmatprep.subr.mxu0 0.0
  %573 = vmatpush1.msra.mxu0 0.0
  %574 = vmatprep.subr.mxu0 0.0
  %575 = vmatpush1.msra.mxu0 0.0
  %576 = vmatprep.subr.mxu0 0.0
  %577 = vmatpush1.msra.mxu0 0.0
  %578 = vmatprep.subr.mxu0 0.0
  %579 = vmatpush1.msra.mxu0 0.0
  %580 = vmatprep.subr.mxu0 0.0
  %581 = vmatpush1.msra.mxu0 0.0
  %582 = vmatprep.subr.mxu0 0.0
  %583 = vmatpush1.msra.mxu0 0.0
  %584 = vmatprep.mubr.f32.mxu0 0.0
  %585 = vmatmul.mubr.f32.gmra.mrb[0].mxu0 %v53
  %v586 = vpop.f32.mrb[0].mxu0
  %v587 = vadd.f32 0.0, %v586
  %v588 = vpop.f32.mrb[0].mxu0
  %v589 = vadd.f32 0.0, %v588
  %590 = vmatprep.mubr.f32.mxu0 0.0
  %591 = vmatmul.mubr.f32.gmra.mrb[0].mxu0 %v56
  %v592 = vpop.f32.mrb[0].mxu0
  %v593 = vadd.f32 0.0, %v592
  %v594 = vpop.f32.mrb[0].mxu0
  %v595 = vadd.f32 0.0, %v594
  %596 = vdwg.mxu0
  %597 = vmatprep.subr.mxu0 %v34
  %598 = vmatpush1.msra.mxu0 %v33
  %599 = vmatprep.subr.mxu0 %v50
  %600 = vmatpush1.msra.mxu0 %v49
  %601 = vmatprep.subr.mxu0 0.0
  %602 = vmatpush1.msra.mxu0 0.0
  %603 = vmatprep.subr.mxu0 0.0
  %604 = vmatpush1.msra.mxu0 0.0
  %605 = vmatprep.subr.mxu0 0.0
  %606 = vmatpush1.msra.mxu0 0.0
  %607 = vmatprep.subr.mxu0 0.0
  %608 = vmatpush1.msra.mxu0 0.0
  %609 = vmatprep.subr.mxu0 0.0
  %610 = vmatpush1.msra.mxu0 0.0
  %611 = vmatprep.subr.mxu0 0.0
  %612 = vmatpush1.msra.mxu0 0.0
  %613 = vmatprep.subr.mxu0 0.0
  %614 = vmatpush1.msra.mxu0 0.0
  %615 = vmatprep.subr.mxu0 0.0
  %616 = vmatpush1.msra.mxu0 0.0
  %617 = vmatprep.subr.mxu0 0.0
  %618 = vmatpush1.msra.mxu0 0.0
  %619 = vmatprep.subr.mxu0 0.0
  %620 = vmatpush1.msra.mxu0 0.0
  %621 = vmatprep.subr.mxu0 0.0
  %622 = vmatpush1.msra.mxu0 0.0
  %623 = vmatprep.subr.mxu0 0.0
  %624 = vmatpush1.msra.mxu0 0.0
  %625 = vmatprep.subr.mxu0 0.0
  %626 = vmatpush1.msra.mxu0 0.0
  %627 = vmatprep.subr.mxu0 0.0
  %628 = vmatpush1.msra.mxu0 0.0
  %629 = vmatprep.subr.mxu0 0.0
  %630 = vmatpush1.msra.mxu0 0.0
  %631 = vmatprep.subr.mxu0 0.0
  %632 = vmatpush1.msra.mxu0 0.0
  %633 = vmatprep.subr.mxu0 0.0
  %634 = vmatpush1.msra.mxu0 0.0
  %635 = vmatprep.subr.mxu0 0.0
  %636 = vmatpush1.msra.mxu0 0.0
  %637 = vmatprep.subr.mxu0 0.0
  %638 = vmatpush1.msra.mxu0 0.0
  %639 = vmatprep.subr.mxu0 0.0
  %640 = vmatpush1.msra.mxu0 0.0
  %641 = vmatprep.subr.mxu0 0.0
  %642 = vmatpush1.msra.mxu0 0.0
  %643 = vmatprep.subr.mxu0 0.0
  %644 = vmatpush1.msra.mxu0 0.0
  %645 = vmatprep.subr.mxu0 0.0
  %646 = vmatpush1.msra.mxu0 0.0
  %647 = vmatprep.subr.mxu0 0.0
  %648 = vmatpush1.msra.mxu0 0.0
  %649 = vmatprep.subr.mxu0 0.0
  %650 = vmatpush1.msra.mxu0 0.0
  %651 = vmatprep.subr.mxu0 0.0
  %652 = vmatpush1.msra.mxu0 0.0
  %653 = vmatprep.subr.mxu0 0.0
  %654 = vmatpush1.msra.mxu0 0.0
  %655 = vmatprep.subr.mxu0 0.0
  %656 = vmatpush1.msra.mxu0 0.0
  %657 = vmatprep.subr.mxu0 0.0
  %658 = vmatpush1.msra.mxu0 0.0
  %659 = vmatprep.subr.mxu0 0.0
  %660 = vmatpush1.msra.mxu0 0.0
  %661 = vmatprep.mubr.f32.mxu0 0.0
  %662 = vmatmul.mubr.f32.gmra.mrb[0].mxu0 %v53
  %v663 = vpop.f32.mrb[0].mxu0
  %v664 = vadd.f32 0.0, %v663
  %v665 = vpop.f32.mrb[0].mxu0
  %v666 = vadd.f32 0.0, %v665
  %667 = vmatprep.mubr.f32.mxu0 0.0
  %668 = vmatmul.mubr.f32.gmra.mrb[0].mxu0 %v56
  %v669 = vpop.f32.mrb[0].mxu0
  %v670 = vadd.f32 0.0, %v669
  %v671 = vpop.f32.mrb[0].mxu0
  %v672 = vadd.f32 0.0, %v671
  %673 = vdwg.mxu0
  %v674 = vadd.f32 %v125, %v127
  %v675 = vadd.f32 %v674, %v202
  %v676 = vadd.f32 %v675, %v204
  %v677 = vadd.f32 %v676, %v279
  %v678 = vadd.f32 %v677, %v281
  %v679 = vadd.f32 %v678, %v356
  %v680 = vadd.f32 %v679, %v358
  %v681 = vadd.f32 %v680, %v433
  %v682 = vadd.f32 %v681, %v435
  %v683 = vadd.f32 %v682, %v510
  %v684 = vadd.f32 %v683, %v512
  %v685 = vadd.f32 %v684, %v587
  %v686 = vadd.f32 %v685, %v589
  %v687 = vadd.f32 %v686, %v664
  %v688 = vadd.f32 %v687, %v666
  %689 = vadd.xlane.f32.xlu0 %v688
  %v690 = vpop.xlane.xlu0 %689
  %v691 = vadd.f32 %v131, %v133
  %v692 = vadd.f32 %v691, %v208
  %v693 = vadd.f32 %v692, %v210
  %v694 = vadd.f32 %v693, %v285
  %v695 = vadd.f32 %v694, %v287
  %v696 = vadd.f32 %v695, %v362
  %v697 = vadd.f32 %v696, %v364
  %v698 = vadd.f32 %v697, %v439
  %v699 = vadd.f32 %v698, %v441
  %v700 = vadd.f32 %v699, %v516
  %v701 = vadd.f32 %v700, %v518
  %v702 = vadd.f32 %v701, %v593
  %v703 = vadd.f32 %v702, %v595
  %v704 = vadd.f32 %v703, %v670
  %v705 = vadd.f32 %v704, %v672
  %706 = vadd.xlane.f32.xlu0 %v705
  %v707 = vpop.xlane.xlu0 %706
  %v708 = vmul.f32 %v690, 0.00048828125
  %v709 = vmul.f32 %v707, 0.00048828125
  %v710 = vmul.f32 %v125, %v125
  %v711 = vmul.f32 %v127, %v127
  %v712 = vmul.f32 %v202, %v202
  %v713 = vmul.f32 %v204, %v204
  %v714 = vmul.f32 %v279, %v279
  %v715 = vmul.f32 %v281, %v281
  %v716 = vmul.f32 %v356, %v356
  %v717 = vmul.f32 %v358, %v358
  %v718 = vmul.f32 %v433, %v433
  %v719 = vmul.f32 %v435, %v435
  %v720 = vmul.f32 %v510, %v510
  %v721 = vmul.f32 %v512, %v512
  %v722 = vmul.f32 %v587, %v587
  %v723 = vmul.f32 %v589, %v589
  %v724 = vmul.f32 %v664, %v664
  %v725 = vmul.f32 %v666, %v666
  %v726 = vmul.f32 %v131, %v131
  %v727 = vmul.f32 %v133, %v133
  %v728 = vmul.f32 %v208, %v208
  %v729 = vmul.f32 %v210, %v210
  %v730 = vmul.f32 %v285, %v285
  %v731 = vmul.f32 %v287, %v287
  %v732 = vmul.f32 %v362, %v362
  %v733 = vmul.f32 %v364, %v364
  %v734 = vmul.f32 %v439, %v439
  %v735 = vmul.f32 %v441, %v441
  %v736 = vmul.f32 %v516, %v516
  %v737 = vmul.f32 %v518, %v518
  %v738 = vmul.f32 %v593, %v593
  %v739 = vmul.f32 %v595, %v595
  %v740 = vmul.f32 %v670, %v670
  %v741 = vmul.f32 %v672, %v672
  %v742 = vadd.f32 %v710, %v711
  %v743 = vadd.f32 %v742, %v712
  %v744 = vadd.f32 %v743, %v713
  %v745 = vadd.f32 %v744, %v714
  %v746 = vadd.f32 %v745, %v715
  %v747 = vadd.f32 %v746, %v716
  %v748 = vadd.f32 %v747, %v717
  %v749 = vadd.f32 %v748, %v718
  %v750 = vadd.f32 %v749, %v719
  %v751 = vadd.f32 %v750, %v720
  %v752 = vadd.f32 %v751, %v721
  %v753 = vadd.f32 %v752, %v722
  %v754 = vadd.f32 %v753, %v723
  %v755 = vadd.f32 %v754, %v724
  %v756 = vadd.f32 %v755, %v725
  %757 = vadd.xlane.f32.xlu0 %v756
  %v758 = vpop.xlane.xlu0 %757
  %v759 = vadd.f32 %v726, %v727
  %v760 = vadd.f32 %v759, %v728
  %v761 = vadd.f32 %v760, %v729
  %v762 = vadd.f32 %v761, %v730
  %v763 = vadd.f32 %v762, %v731
  %v764 = vadd.f32 %v763, %v732
  %v765 = vadd.f32 %v764, %v733
  %v766 = vadd.f32 %v765, %v734
  %v767 = vadd.f32 %v766, %v735
  %v768 = vadd.f32 %v767, %v736
  %v769 = vadd.f32 %v768, %v737
  %v770 = vadd.f32 %v769, %v738
  %v771 = vadd.f32 %v770, %v739
  %v772 = vadd.f32 %v771, %v740
  %v773 = vadd.f32 %v772, %v741
  %774 = vadd.xlane.f32.xlu0 %v773
  %v775 = vpop.xlane.xlu0 %774
  %v776 = vmul.f32 %v758, 0.00048828125
  %v777 = vmul.f32 %v775, 0.00048828125
  %v778 = vmul.f32 %v708, %v708
  %v779 = vmul.f32 %v709, %v709
  %v780 = vsub.f32 %v776, %v778
  %v781 = vsub.f32 %v777, %v779
  %v782 = vmax.f32 %v780, 0.0
  %v783 = vmax.f32 %v781, 0.0
  %v784 = vld [vmem:[%s2] sm:$0xff]
  %v785 = vld [vmem:[%s2 + $0x8] sm:$0xff]
  %v786 = vadd.f32 %v782, 1e-05
  %v787 = vadd.f32 %v783, 1e-05
  %v788 = vrsqrt.pop %v786
  %v789 = vrsqrt.pop %v787
  %v790 = vmul.f32 %v784, %v788
  %v791 = vmul.f32 %v785, %v789
  %v792 = vld [vmem:[%s3] sm:$0xff]
  %v793 = vld [vmem:[%s3 + $0x8] sm:$0xff]
  %v794 = vmul.f32 %v708, %v790
  %v795 = vmul.f32 %v709, %v791
  %v796 = vsub.f32 %v792, %v794
  %v797 = vsub.f32 %v793, %v795
  %799 = vset.pattern.permute.xlu0 0
  %800 = vperm.xlu0 %799, %v790
  %v801 = vpop.permute.xlu0 %800
  %804 = vset.pattern.permute.xlu0 0
  %805 = vperm.xlu0 %804, %v791
  %v806 = vpop.permute.xlu0 %805
  %v808 = vmul.f32 %v125, %v801
  %v809 = vmul.f32 %v127, %v801
  %v810 = vmul.f32 %v202, %v801
  %v811 = vmul.f32 %v204, %v801
  %v812 = vmul.f32 %v279, %v801
  %v813 = vmul.f32 %v281, %v801
  %v814 = vmul.f32 %v356, %v801
  %v815 = vmul.f32 %v358, %v801
  %v816 = vmul.f32 %v433, %v801
  %v817 = vmul.f32 %v435, %v801
  %v818 = vmul.f32 %v510, %v801
  %v819 = vmul.f32 %v512, %v801
  %v820 = vmul.f32 %v587, %v801
  %v821 = vmul.f32 %v589, %v801
  %v822 = vmul.f32 %v664, %v801
  %v823 = vmul.f32 %v666, %v801
  %v824 = vmul.f32 %v131, %v806
  %v825 = vmul.f32 %v133, %v806
  %v826 = vmul.f32 %v208, %v806
  %v827 = vmul.f32 %v210, %v806
  %v828 = vmul.f32 %v285, %v806
  %v829 = vmul.f32 %v287, %v806
  %v830 = vmul.f32 %v362, %v806
  %v831 = vmul.f32 %v364, %v806
  %v832 = vmul.f32 %v439, %v806
  %v833 = vmul.f32 %v441, %v806
  %v834 = vmul.f32 %v516, %v806
  %v835 = vmul.f32 %v518, %v806
  %v836 = vmul.f32 %v593, %v806
  %v837 = vmul.f32 %v595, %v806
  %v838 = vmul.f32 %v670, %v806
  %v839 = vmul.f32 %v672, %v806
  %841 = vset.pattern.permute.xlu0 0
  %842 = vperm.xlu0 %841, %v796
  %v843 = vpop.permute.xlu0 %842
  %846 = vset.pattern.permute.xlu0 0
  %847 = vperm.xlu0 %846, %v797
  %v848 = vpop.permute.xlu0 %847
  %v850 = vadd.f32 %v808, %v843
  %v851 = vadd.f32 %v809, %v843
  %v852 = vadd.f32 %v810, %v843
  %v853 = vadd.f32 %v811, %v843
  %v854 = vadd.f32 %v812, %v843
  %v855 = vadd.f32 %v813, %v843
  %v856 = vadd.f32 %v814, %v843
  %v857 = vadd.f32 %v815, %v843
  %v858 = vadd.f32 %v816, %v843
  %v859 = vadd.f32 %v817, %v843
  %v860 = vadd.f32 %v818, %v843
  %v861 = vadd.f32 %v819, %v843
  %v862 = vadd.f32 %v820, %v843
  %v863 = vadd.f32 %v821, %v843
  %v864 = vadd.f32 %v822, %v843
  %v865 = vadd.f32 %v823, %v843
  %v866 = vadd.f32 %v824, %v848
  %v867 = vadd.f32 %v825, %v848
  %v868 = vadd.f32 %v826, %v848
  %v869 = vadd.f32 %v827, %v848
  %v870 = vadd.f32 %v828, %v848
  %v871 = vadd.f32 %v829, %v848
  %v872 = vadd.f32 %v830, %v848
  %v873 = vadd.f32 %v831, %v848
  %v874 = vadd.f32 %v832, %v848
  %v875 = vadd.f32 %v833, %v848
  %v876 = vadd.f32 %v834, %v848
  %v877 = vadd.f32 %v835, %v848
  %v878 = vadd.f32 %v836, %v848
  %v879 = vadd.f32 %v837, %v848
  %v880 = vadd.f32 %v838, %v848
  %v881 = vadd.f32 %v839, %v848
  %882 = vst [vmem:[%s4] sm:$0xff] %v850
  %883 = vst [vmem:[%s4 + $0x8] sm:$0xff] %v851
  %884 = vst [vmem:[%s4 + $0x10] sm:$0xff] %v852
  %885 = vst [vmem:[%s4 + $0x18] sm:$0xff] %v853
  %886 = vst [vmem:[%s4 + $0x20] sm:$0xff] %v854
  %887 = vst [vmem:[%s4 + $0x28] sm:$0xff] %v855
  %888 = vst [vmem:[%s4 + $0x30] sm:$0xff] %v856
  %889 = vst [vmem:[%s4 + $0x38] sm:$0xff] %v857
  %890 = vst [vmem:[%s4 + $0x40] sm:$0xff] %v858
  %891 = vst [vmem:[%s4 + $0x48] sm:$0xff] %v859
  %892 = vst [vmem:[%s4 + $0x50] sm:$0xff] %v860
  %893 = vst [vmem:[%s4 + $0x58] sm:$0xff] %v861
  %894 = vst [vmem:[%s4 + $0x60] sm:$0xff] %v862
  %895 = vst [vmem:[%s4 + $0x68] sm:$0xff] %v863
  %896 = vst [vmem:[%s4 + $0x70] sm:$0xff] %v864
  %897 = vst [vmem:[%s4 + $0x78] sm:$0xff] %v865
  %898 = vst [vmem:[%s4 + $0x80] sm:$0xff] %v866
  %899 = vst [vmem:[%s4 + $0x88] sm:$0xff] %v867
  %900 = vst [vmem:[%s4 + $0x90] sm:$0xff] %v868
  %901 = vst [vmem:[%s4 + $0x98] sm:$0xff] %v869
  %902 = vst [vmem:[%s4 + $0xa0] sm:$0xff] %v870
  %903 = vst [vmem:[%s4 + $0xa8] sm:$0xff] %v871
  %904 = vst [vmem:[%s4 + $0xb0] sm:$0xff] %v872
  %905 = vst [vmem:[%s4 + $0xb8] sm:$0xff] %v873
  %906 = vst [vmem:[%s4 + $0xc0] sm:$0xff] %v874
  %907 = vst [vmem:[%s4 + $0xc8] sm:$0xff] %v875
  %908 = vst [vmem:[%s4 + $0xd0] sm:$0xff] %v876
  %909 = vst [vmem:[%s4 + $0xd8] sm:$0xff] %v877
  %910 = vst [vmem:[%s4 + $0xe0] sm:$0xff] %v878
  %911 = vst [vmem:[%s4 + $0xe8] sm:$0xff] %v879
  %912 = vst [vmem:[%s4 + $0xf0] sm:$0xff] %v880
  %913 = vst [vmem:[%s4 + $0xf8] sm:$0xff] %v881
  // Predicated region
  $region18: #{_lambda_.4} parent=0 // pred_check
    _
  $region19: #{_lambda_.4} parent=0 // pred_check_branch
    %915 = sbr.rel (0) target = $region21
  $region20: #{_lambda_.4} parent=0 // pred_region
    _
  $region21: #{_lambda_.4} parent=0 // pred_fallthru
    _
  // Predicated region
  $region22: #{_lambda_.4} parent=0 // pred_check
    _
  $region23: #{_lambda_.4} parent=0 // pred_check_branch
    %917 = sbr.rel (0) target = $region25
  $region24: #{_lambda_.4} parent=0 // pred_region
    _
  $region25: #{_lambda_.4} parent=0 // pred_fallthru
    _

</llo_original>
